<compile_context>
chip_gen: v6e
topology: v6e:2x2x1
jax: 0.10.0
libtpu: 0.0.40
codegen_flags: <defaults>
</compile_context>

<pallas_src>
from functools import partial

import jax
import jax.numpy as jnp
from jax import lax
from jax.experimental import pallas as pl
from jax.experimental.pallas import tpu as pltpu


# bf16 MXU dots on real TPUs; f32 dots otherwise (XLA:CPU has no BF16xBF16=F32 dot).
_MXU_DTYPE = jnp.bfloat16 if jax.default_backend() == "tpu" else jnp.float32

LANE = 128
SUBLANE = 8


def _round_up(n, m):
    return ((n + m - 1) // m) * m


def _choose_tile_m(n):
    """Node-row tile.  Bigger tiles amortize the ~0.35us/grid-step overhead and get
    close to the HBM roofline on v5e/v6e (128 MiB VMEM); 256 keeps the streamed int8
    mask double-buffer inside v7x's 64 MiB per TensorCore for graphs up to ~32K."""
    if n <= 256:
        return 128
    if n <= 4096:
        return 512          # v5e / v6e sweet spot; also fine on v7x at this size
    return 256              # large graphs: sized for v7x's 64 MiB VMEM per core


def _mosaic_params(resident_bytes):
    # Explicit scoped-VMEM budget (the 32 MiB default is too small for big graphs);
    # clamp to 64 MiB so the value stays legal on v7x.
    limit = int(min(max(int(resident_bytes * 1.5), 8 << 20), 64 << 20))
    return pltpu.CompilerParams(dimension_semantics=("parallel",),
                                vmem_limit_bytes=limit)


# ----------------------------- Pallas kernels --------------------------------
def gat_project_kernel(x_ref, w_ref, asrct_ref, adstt_ref, xw_ref, ssrct_ref, sdst_ref):
    """Per node-row tile: packed xW plus per-head src/dst attention scores.
    Source scores are written pre-transposed ([heads_pad, TILE_M]) via an NT
    contraction so the attention kernel can slice them as sublane rows."""
    x = x_ref[...].astype(_MXU_DTYPE)
    w = w_ref[...].astype(_MXU_DTYPE)
    xw = jnp.dot(x, w, preferred_element_type=jnp.float32)            # [TM, Fp] f32
    xw_ref[...] = xw.astype(xw_ref.dtype)

    xw_m = xw.astype(_MXU_DTYPE)
    asrct = asrct_ref[...].astype(_MXU_DTYPE)                          # [Hp, Fp]
    adstt = adstt_ref[...].astype(_MXU_DTYPE)                          # [Hp, Fp]
    # NT contractions (contract the packed feature axis) -> no explicit transpose.
    ssrct_ref[...] = lax.dot_general(asrct, xw_m, (((1,), (1,)), ((), ())),
                                     preferred_element_type=jnp.float32)   # [Hp, TM]
    sdst_ref[...] = lax.dot_general(xw_m, adstt, (((1,), (1,)), ((), ())),
                                    preferred_element_type=jnp.float32)    # [TM, Hp]


def gat_attention_kernel(mask_ref, sdst_ref, ssrct_ref, xw_ref, b_ref, o_ref, *,
                         heads, head_width, out_valid, negative_slope, activation):
    """Per target-row tile: masked neighbor softmax + aggregation for every head."""
    mask_bool = mask_ref[...] != 0                       # [TM, Np] from the int8 stream
    sdst_all = sdst_ref[...]                             # [TM, Hp] f32
    ssrc_all = ssrct_ref[...]                            # [Hp, Np] f32
    xw = xw_ref[...].astype(_MXU_DTYPE)                  # [Np, Fp] packed heads

    def head_alpha(h):
        e = sdst_all[:, h:h + 1] + ssrc_all[h:h + 1, :]  # [TM, Np]
        e = jnp.maximum(e, negative_slope * e)           # LeakyReLU(0.2)
        logits = jnp.where(mask_bool, e, -1e30)          # one select, no additive mask
        m = jnp.max(logits, axis=1, keepdims=True)
        p = jnp.exp(logits - m)
        denom = jnp.sum(p, axis=1, keepdims=True)
        return p * pl.reciprocal(denom, approx=True)     # softmax over neighbors (EUP)

    if activation == "relu":
        # Layer 1: aggregate all heads into one packed [TM, Fp] value, then do a
        # single lane-dense store (no narrow column-slice stores).
        col = lax.broadcasted_iota(jnp.int32, o_ref.shape, 1)
        acc = jnp.zeros(o_ref.shape, jnp.float32)
        for h in range(heads):
            r_h = jnp.dot(head_alpha(h).astype(_MXU_DTYPE), xw,
                          preferred_element_type=jnp.float32)          # [TM, Fp]
            keep = (col >= h * head_width) & (col < (h + 1) * head_width)
            acc = jnp.where(keep, r_h, acc)
        acc = acc + b_ref[...]
        o_ref[...] = jnp.maximum(acc, 0.0).astype(o_ref.dtype)
    else:
        # Layer 2: single head, + bias, log_softmax over the valid class lanes.
        z = jnp.dot(head_alpha(0).astype(_MXU_DTYPE), xw,
                    preferred_element_type=jnp.float32) + b_ref[...]
        col = lax.broadcasted_iota(jnp.int32, z.shape, 1)
        z = jnp.where(col < out_valid, z, -1e30)
        m = jnp.max(z, axis=1, keepdims=True)
        s = z - m
        lse = jnp.log(jnp.sum(jnp.exp(s), axis=1, keepdims=True))
        o_ref[...] = (s - lse).astype(o_ref.dtype)


# ----------------------------- pallas_call wrappers ---------------------------
def gat_project(x, w, a_src_t, a_dst_t, *, tile_m):
    n_pad, cin_pad = x.shape
    f_pad = w.shape[1]
    sp = a_src_t.shape[0]
    grid = (n_pad // tile_m,)
    resident = (2 * tile_m * cin_pad * x.dtype.itemsize      # streamed x tile (2 bufs)
                + 2 * cin_pad * f_pad * 4                    # weights
                + 4 * sp * f_pad * 4                         # att vectors
                + 2 * tile_m * f_pad * 2                     # xw out tile (bf16)
                + 4 * sp * tile_m * 4)                       # score out tiles
    return pl.pallas_call(
        gat_project_kernel,
        out_shape=(
            jax.ShapeDtypeStruct((n_pad, f_pad), jnp.bfloat16),   # packed xW
            jax.ShapeDtypeStruct((sp, n_pad), jnp.float32),       # src scores (transposed)
            jax.ShapeDtypeStruct((n_pad, sp), jnp.float32),       # dst scores
        ),
        grid=grid,
        in_specs=[
            pl.BlockSpec((tile_m, cin_pad), lambda i: (i, 0)),
            pl.BlockSpec((cin_pad, f_pad), lambda i: (0, 0)),
            pl.BlockSpec((sp, f_pad), lambda i: (0, 0)),
            pl.BlockSpec((sp, f_pad), lambda i: (0, 0)),
        ],
        out_specs=(
            pl.BlockSpec((tile_m, f_pad), lambda i: (i, 0)),
            pl.BlockSpec((sp, tile_m), lambda i: (0, i)),
            pl.BlockSpec((tile_m, sp), lambda i: (i, 0)),
        ),
        compiler_params=_mosaic_params(resident),
    )(x, w, a_src_t, a_dst_t)


def gat_attention(mask, sdst, ssrc_t, xw, bias, *, heads, head_width, activation,
                  out_valid, tile_m, out_dtype):
    n_pad = mask.shape[0]
    f_pad = xw.shape[1]
    sp = ssrc_t.shape[0]
    grid = (n_pad // tile_m,)
    kernel = partial(gat_attention_kernel, heads=heads, head_width=head_width,
                     out_valid=out_valid, negative_slope=0.2, activation=activation)
    resident = (2 * tile_m * n_pad * 1                        # streamed int8 mask tile
                + 2 * sp * n_pad * 4                          # resident src scores
                + 2 * n_pad * f_pad * xw.dtype.itemsize       # resident packed xW
                + 4 * tile_m * sp * 4                         # dst-score tile
                + 2 * tile_m * f_pad * jnp.dtype(out_dtype).itemsize
                + 2 * f_pad * 4)                              # bias
    return pl.pallas_call(
        kernel,
        out_shape=jax.ShapeDtypeStruct((n_pad, f_pad), out_dtype),
        grid=grid,
        in_specs=[
            pl.BlockSpec((tile_m, n_pad), lambda i: (i, 0)),  # streamed int8 mask tile
            pl.BlockSpec((tile_m, sp), lambda i: (i, 0)),     # dst scores for this tile
            pl.BlockSpec((sp, n_pad), lambda i: (0, 0)),      # src scores (resident)
            pl.BlockSpec((n_pad, f_pad), lambda i: (0, 0)),   # packed xW (resident)
            pl.BlockSpec((1, f_pad), lambda i: (0, 0)),       # bias
        ],
        out_specs=pl.BlockSpec((tile_m, f_pad), lambda i: (i, 0)),
        compiler_params=_mosaic_params(resident),
    )(mask, sdst, ssrc_t, xw, bias)


# ------------------------------ host-side glue --------------------------------
def _pad2d(a, rows, cols, dtype=jnp.float32):
    out = jnp.zeros((rows, cols), dtype)
    r, c = a.shape
    return out.at[:r, :c].set(a.astype(dtype))


def _att_rows(att, width, f_pad, score_pad):
    """att [heads, width] -> [score_pad, f_pad]; row h holds a_h at packed cols."""
    heads = att.shape[0]
    out = jnp.zeros((score_pad, f_pad), jnp.float32)
    for h in range(heads):
        out = out.at[h, h * width:(h + 1) * width].set(att[h].astype(jnp.float32))
    return out


def _build_mask(edge_index, n_pad):
    """Dense int8 neighborhood mask: mask[i, j] = 1 if edge j->i or j == i."""
    src, dst = edge_index[0], edge_index[1]
    mask = jnp.zeros((n_pad, n_pad), jnp.int8)
    mask = mask.at[dst, src].set(1)                 # duplicate edges collapse to one
    diag = jnp.arange(n_pad)
    mask = mask.at[diag, diag].set(1)               # self-loops (all rows, incl. padding)
    return mask


@partial(jax.jit, static_argnames=("heads", "hidden", "out_channels"))
def gat_forward(x, edge_index, params, *, heads, hidden, out_channels):
    n, cin = x.shape
    tile_m = _choose_tile_m(n)
    n_pad = _round_up(n, tile_m)
    cin_pad = _round_up(cin, LANE)
    f1_pad = _round_up(heads * hidden, LANE)        # packed heads: 64 -> 128
    f2_pad = _round_up(out_channels, LANE)
    score_pad = _round_up(max(heads, 1), SUBLANE)   # 8 sublanes, not 128 lanes

    # ---- pad / relayout inputs & parameters (host side, tiny) ----
    x_p = _pad2d(x, n_pad, cin_pad, jnp.float32)
    mask = _build_mask(edge_index, n_pad)

    w1_p = _pad2d(params["w1"], cin_pad, f1_pad)
    b1_p = _pad2d(params["b1"].reshape(1, -1), 1, f1_pad)
    a1s_p = _att_rows(params["att_src1"], hidden, f1_pad, score_pad)
    a1d_p = _att_rows(params["att_dst1"], hidden, f1_pad, score_pad)

    w2_p = _pad2d(params["w2"], f1_pad, f2_pad)
    b2_p = _pad2d(params["b2"].reshape(1, -1), 1, f2_pad)
    a2s_p = _att_rows(params["att_src2"], out_channels, f2_pad, score_pad)
    a2d_p = _att_rows(params["att_dst2"], out_channels, f2_pad, score_pad)

    # ---- layer 1: GATConv(in -> hidden, heads, concat) + ReLU ----
    xw1, ssrct1, sdst1 = gat_project(x_p, w1_p, a1s_p, a1d_p, tile_m=tile_m)
    h1 = gat_attention(mask, sdst1, ssrct1, xw1, b1_p,
                       heads=heads, head_width=hidden, activation="relu",
                       out_valid=heads * hidden, tile_m=tile_m, out_dtype=jnp.bfloat16)

    # ---- layer 2: GATConv(hidden*heads -> out, 1 head) + log_softmax ----
    xw2, ssrct2, sdst2 = gat_project(h1, w2_p, a2s_p, a2d_p, tile_m=tile_m)
    out_p = gat_attention(mask, sdst2, ssrct2, xw2, b2_p,
                          heads=1, head_width=out_channels, activation="log_softmax",
                          out_valid=out_channels, tile_m=tile_m, out_dtype=jnp.float32)

    return out_p[:n, :out_channels]


def glorot(key, fan_in, fan_out):
    limit = jnp.sqrt(6.0 / (fan_in + fan_out))
    return jax.random.uniform(key, (fan_in, fan_out), jnp.float32, -limit, limit)


# ------------------------------ example run -----------------------------------
if __name__ == "__main__":
    N = 64          # nodes
    E = 256         # directed edges
    IN_C = 16       # in_channels
    HIDDEN = 8      # hidden_channels (per head)
    HEADS = 8
    OUT_C = 7       # out_channels (classes)

    key = jax.random.PRNGKey(0)
    ks = jax.random.split(key, 10)

    x = jax.random.normal(ks[0], (N, IN_C), jnp.float32)
    edge_index = jnp.stack([
        jax.random.randint(ks[1], (E,), 0, N, dtype=jnp.int32),   # source nodes
        jax.random.randint(ks[2], (E,), 0, N, dtype=jnp.int32),   # target nodes
    ], axis=0)

    params = {
        # layer 1: lin weight [in, heads*hidden], attention vectors [heads, hidden]
        "w1": glorot(ks[3], IN_C, HEADS * HIDDEN),
        "att_src1": glorot(ks[4], HEADS, HIDDEN),
        "att_dst1": glorot(ks[5], HEADS, HIDDEN),
        "b1": jnp.zeros((HEADS * HIDDEN,), jnp.float32),
        # layer 2: lin weight [heads*hidden, out], attention vectors [1, out]
        "w2": glorot(ks[6], HEADS * HIDDEN, OUT_C),
        "att_src2": glorot(ks[7], 1, OUT_C),
        "att_dst2": glorot(ks[8], 1, OUT_C),
        "b2": jnp.zeros((OUT_C,), jnp.float32),
    }

    out = gat_forward(x, edge_index, params,
                      heads=HEADS, hidden=HIDDEN, out_channels=OUT_C)
    jax.block_until_ready(out)

    assert out.shape == (N, OUT_C)
    # log_softmax sanity: rows exponentiate-sum to 1 (normalization is exact f32)
    assert jnp.allclose(jnp.sum(jnp.exp(out), axis=1), 1.0, atol=2e-2)
    assert bool(jnp.all(jnp.isfinite(out)))
    print("KERNEL_OK")
</pallas_src>

<mosaic_0001>
module attributes {stable_mosaic.version = 11 : i64} {
  func.func @gat_project_kernel(%arg0: i32, %arg1: memref<128x128xf32, #tpu.memory_space<vmem>>, %arg2: memref<128x128xf32, #tpu.memory_space<vmem>>, %arg3: memref<8x128xf32, #tpu.memory_space<vmem>>, %arg4: memref<8x128xf32, #tpu.memory_space<vmem>>, %arg5: memref<128x128xbf16, #tpu.memory_space<vmem>>, %arg6: memref<8x128xf32, #tpu.memory_space<vmem>>, %arg7: memref<128x8xf32, #tpu.memory_space<vmem>>) attributes {dimension_semantics = [#tpu.dimension_semantics<parallel>], iteration_bounds = array<i64: 1>, scalar_prefetch = 0 : i64, scratch_operands = 0 : i64, tpu.core_type = #tpu.core_type<tc>, window_params = [{transform_indices = @transform_0, window_bounds = array<i64: 128, 128>}, {pipeline_mode = #tpu.pipeline_mode<synchronous>, transform_indices = @transform_1, window_bounds = array<i64: 128, 128>}, {pipeline_mode = #tpu.pipeline_mode<synchronous>, transform_indices = @transform_2, window_bounds = array<i64: 8, 128>}, {pipeline_mode = #tpu.pipeline_mode<synchronous>, transform_indices = @transform_3, window_bounds = array<i64: 8, 128>}, {transform_indices = @transform_4, window_bounds = array<i64: 128, 128>}, {transform_indices = @transform_5, window_bounds = array<i64: 8, 128>}, {transform_indices = @transform_6, window_bounds = array<i64: 128, 8>}]} {
    %c0 = arith.constant 0 : index
    %c0_0 = arith.constant 0 : index
    %0 = vector.load %arg1[%c0, %c0_0] : memref<128x128xf32, #tpu.memory_space<vmem>>, vector<128x128xf32>
    %c0_1 = arith.constant 0 : index
    %c0_2 = arith.constant 0 : index
    %1 = vector.load %arg2[%c0_1, %c0_2] : memref<128x128xf32, #tpu.memory_space<vmem>>, vector<128x128xf32>
    %cst = arith.constant dense<0.000000e+00> : vector<128x128xf32>
    %2 = tpu.matmul %0, %1, %cst {dimension_numbers = #tpu.dot_dimension_numbers<[1], [0], [0], [1], [0, 0, 1, 1], [], []>} : vector<128x128xf32>, vector<128x128xf32>, vector<128x128xf32> -> vector<128x128xf32>
    %3 = arith.truncf %2 : vector<128x128xf32> to vector<128x128xbf16>
    %c0_3 = arith.constant 0 : index
    %c0_4 = arith.constant 0 : index
    %4 = vector.load %arg5[%c0_3, %c0_4] : memref<128x128xbf16, #tpu.memory_space<vmem>>, vector<128x128xbf16>
    tpu.vector_store %arg5[%c0_3, %c0_4], %3 {strides = array<i32>} : memref<128x128xbf16, #tpu.memory_space<vmem>>, vector<128x128xbf16>,
    %c0_5 = arith.constant 0 : index
    %c0_6 = arith.constant 0 : index
    %5 = vector.load %arg3[%c0_5, %c0_6] : memref<8x128xf32, #tpu.memory_space<vmem>>, vector<8x128xf32>
    %c0_7 = arith.constant 0 : index
    %c0_8 = arith.constant 0 : index
    %6 = vector.load %arg4[%c0_7, %c0_8] : memref<8x128xf32, #tpu.memory_space<vmem>>, vector<8x128xf32>
    %cst_9 = arith.constant dense<0.000000e+00> : vector<8x128xf32>
    %7 = tpu.matmul %5, %2, %cst_9 {dimension_numbers = #tpu.dot_dimension_numbers<[1], [1], [0], [0], [0, 0, 1, 0], [], []>} : vector<8x128xf32>, vector<128x128xf32>, vector<8x128xf32> -> vector<8x128xf32>
    %c0_10 = arith.constant 0 : index
    %c0_11 = arith.constant 0 : index
    %8 = vector.load %arg6[%c0_10, %c0_11] : memref<8x128xf32, #tpu.memory_space<vmem>>, vector<8x128xf32>
    tpu.vector_store %arg6[%c0_10, %c0_11], %7 {strides = array<i32>} : memref<8x128xf32, #tpu.memory_space<vmem>>, vector<8x128xf32>,
    %cst_12 = arith.constant dense<0.000000e+00> : vector<128x8xf32>
    %9 = tpu.matmul %2, %6, %cst_12 {dimension_numbers = #tpu.dot_dimension_numbers<[1], [1], [0], [0], [0, 0, 1, 0], [], []>} : vector<128x128xf32>, vector<8x128xf32>, vector<128x8xf32> -> vector<128x8xf32>
    %c0_13 = arith.constant 0 : index
    %c0_14 = arith.constant 0 : index
    %10 = vector.load %arg7[%c0_13, %c0_14] : memref<128x8xf32, #tpu.memory_space<vmem>>, vector<128x8xf32>
    tpu.vector_store %arg7[%c0_13, %c0_14], %9 {strides = array<i32>} : memref<128x8xf32, #tpu.memory_space<vmem>>, vector<128x8xf32>,
    return
  }
  func.func @transform_0(%arg0: i32) -> (i32, i32) {
    %c0_i32 = arith.constant 0 : i32
    %c0_i32_0 = arith.constant 0 : i32
    return %arg0, %c0_i32 : i32, i32
  }
  func.func @transform_1(%arg0: i32) -> (i32, i32) {
    %c0_i32 = arith.constant 0 : i32
    %c0_i32_0 = arith.constant 0 : i32
    %c0_i32_1 = arith.constant 0 : i32
    return %c0_i32, %c0_i32_0 : i32, i32
  }
  func.func @transform_2(%arg0: i32) -> (i32, i32) {
    %c0_i32 = arith.constant 0 : i32
    %c0_i32_0 = arith.constant 0 : i32
    %c0_i32_1 = arith.constant 0 : i32
    return %c0_i32, %c0_i32_0 : i32, i32
  }
  func.func @transform_3(%arg0: i32) -> (i32, i32) {
    %c0_i32 = arith.constant 0 : i32
    %c0_i32_0 = arith.constant 0 : i32
    %c0_i32_1 = arith.constant 0 : i32
    return %c0_i32, %c0_i32_0 : i32, i32
  }
  func.func @transform_4(%arg0: i32) -> (i32, i32) {
    %c0_i32 = arith.constant 0 : i32
    %c0_i32_0 = arith.constant 0 : i32
    return %arg0, %c0_i32 : i32, i32
  }
  func.func @transform_5(%arg0: i32) -> (i32, i32) {
    %c0_i32 = arith.constant 0 : i32
    %c0_i32_0 = arith.constant 0 : i32
    return %c0_i32, %arg0 : i32, i32
  }
  func.func @transform_6(%arg0: i32) -> (i32, i32) {
    %c0_i32 = arith.constant 0 : i32
    %c0_i32_0 = arith.constant 0 : i32
    return %arg0, %c0_i32 : i32, i32
  }
}

module attributes {stable_mosaic.version = 11 : i64} {
  func.func @gat_attention_kernel(%arg0: i32, %arg1: memref<128x128xi8, #tpu.memory_space<vmem>>, %arg2: memref<128x8xf32, #tpu.memory_space<vmem>>, %arg3: memref<8x128xf32, #tpu.memory_space<vmem>>, %arg4: memref<128x128xbf16, #tpu.memory_space<vmem>>, %arg5: memref<1x128xf32, #tpu.memory_space<vmem>>, %arg6: memref<128x128xbf16, #tpu.memory_space<vmem>>) attributes {dimension_semantics = [#tpu.dimension_semantics<parallel>], iteration_bounds = array<i64: 1>, scalar_prefetch = 0 : i64, scratch_operands = 0 : i64, tpu.core_type = #tpu.core_type<tc>, window_params = [{transform_indices = @transform_0, window_bounds = array<i64: 128, 128>}, {transform_indices = @transform_1, window_bounds = array<i64: 128, 8>}, {pipeline_mode = #tpu.pipeline_mode<synchronous>, transform_indices = @transform_2, window_bounds = array<i64: 8, 128>}, {pipeline_mode = #tpu.pipeline_mode<synchronous>, transform_indices = @transform_3, window_bounds = array<i64: 128, 128>}, {pipeline_mode = #tpu.pipeline_mode<synchronous>, transform_indices = @transform_4, window_bounds = array<i64: 1, 128>}, {transform_indices = @transform_5, window_bounds = array<i64: 128, 128>}]} {
    %c0 = arith.constant 0 : index
    %c0_0 = arith.constant 0 : index
    %0 = vector.load %arg1[%c0, %c0_0] : memref<128x128xi8, #tpu.memory_space<vmem>>, vector<128x128xi8>
    %c0_i8 = arith.constant 0 : i8
    %1 = vector.broadcast %c0_i8 : i8 to vector<128x128xi8>
    %2 = arith.cmpi ne, %0, %1 : vector<128x128xi8>
    %c0_1 = arith.constant 0 : index
    %c0_2 = arith.constant 0 : index
    %3 = vector.load %arg2[%c0_1, %c0_2] : memref<128x8xf32, #tpu.memory_space<vmem>>, vector<128x8xf32>
    %c0_3 = arith.constant 0 : index
    %c0_4 = arith.constant 0 : index
    %4 = vector.load %arg3[%c0_3, %c0_4] : memref<8x128xf32, #tpu.memory_space<vmem>>, vector<8x128xf32>
    %c0_5 = arith.constant 0 : index
    %c0_6 = arith.constant 0 : index
    %5 = vector.load %arg4[%c0_5, %c0_6] : memref<128x128xbf16, #tpu.memory_space<vmem>>, vector<128x128xbf16>
    %6 = arith.extf %5 : vector<128x128xbf16> to vector<128x128xf32>
    %7 = tpu.iota {dimensions = array<i32: 1>} : vector<128x128xi32>
    %cst = arith.constant 0.000000e+00 : f32
    %8 = vector.broadcast %cst : f32 to vector<128x128xf32>
    %9 = vector.extract_strided_slice %3 {offsets = [0, 0], sizes = [128, 1], strides = [1, 1]} : vector<128x8xf32> to vector<128x1xf32>
    %10 = vector.extract_strided_slice %4 {offsets = [0, 0], sizes = [1, 128], strides = [1, 1]} : vector<8x128xf32> to vector<1x128xf32>
    %11 = vector.broadcast %9 : vector<128x1xf32> to vector<128x128xf32>
    %12 = vector.broadcast %10 : vector<1x128xf32> to vector<128x128xf32>
    %13 = arith.addf %11, %12 : vector<128x128xf32>
    %cst_7 = arith.constant 2.000000e-01 : f32
    %14 = vector.broadcast %cst_7 : f32 to vector<128x128xf32>
    %15 = arith.mulf %14, %13 : vector<128x128xf32>
    %16 = arith.maximumf %13, %15 : vector<128x128xf32>
    %cst_8 = arith.constant -1.000000e+30 : f32
    %17 = vector.broadcast %cst_8 : f32 to vector<128x128xf32>
    %18 = arith.select %2, %16, %17 : vector<128x128xi1>, vector<128x128xf32>
    %cst_9 = arith.constant dense<0xFF800000> : vector<128xf32>
    %19 = vector.multi_reduction <maximumf>, %18, %cst_9 [1] : vector<128x128xf32> to vector<128xf32>
    %20 = vector.shape_cast %19 : vector<128xf32> to vector<128x1xf32>
    %21 = vector.broadcast %20 : vector<128x1xf32> to vector<128x128xf32>
    %22 = arith.subf %18, %21 : vector<128x128xf32>
    %23 = math.exp %22 : vector<128x128xf32>
    %cst_10 = arith.constant dense<0.000000e+00> : vector<128xf32>
    %24 = vector.multi_reduction <add>, %23, %cst_10 [1] : vector<128x128xf32> to vector<128xf32>
    %25 = vector.shape_cast %24 : vector<128xf32> to vector<128x1xf32>
    %26 = tpu.reciprocal %25 {approx = true} : vector<128x1xf32> -> vector<128x1xf32>
    %27 = vector.broadcast %26 : vector<128x1xf32> to vector<128x128xf32>
    %28 = arith.mulf %23, %27 : vector<128x128xf32>
    %cst_11 = arith.constant dense<0.000000e+00> : vector<128x128xf32>
    %29 = tpu.matmul %28, %6, %cst_11 {dimension_numbers = #tpu.dot_dimension_numbers<[1], [0], [0], [1], [0, 0, 1, 1], [], []>} : vector<128x128xf32>, vector<128x128xf32>, vector<128x128xf32> -> vector<128x128xf32>
    %c0_i32 = arith.constant 0 : i32
    %30 = vector.broadcast %c0_i32 : i32 to vector<128x128xi32>
    %31 = arith.cmpi sge, %7, %30 : vector<128x128xi32>
    %c8_i32 = arith.constant 8 : i32
    %32 = vector.broadcast %c8_i32 : i32 to vector<128x128xi32>
    %33 = arith.cmpi slt, %7, %32 : vector<128x128xi32>
    %34 = arith.andi %31, %33 : vector<128x128xi1>
    %35 = arith.select %34, %29, %8 : vector<128x128xi1>, vector<128x128xf32>
    %36 = vector.extract_strided_slice %3 {offsets = [0, 1], sizes = [128, 1], strides = [1, 1]} : vector<128x8xf32> to vector<128x1xf32>
    %37 = vector.extract_strided_slice %4 {offsets = [1, 0], sizes = [1, 128], strides = [1, 1]} : vector<8x128xf32> to vector<1x128xf32>
    %38 = vector.broadcast %36 : vector<128x1xf32> to vector<128x128xf32>
    %39 = vector.broadcast %37 : vector<1x128xf32> to vector<128x128xf32>
    %40 = arith.addf %38, %39 : vector<128x128xf32>
    %cst_12 = arith.constant 2.000000e-01 : f32
    %41 = vector.broadcast %cst_12 : f32 to vector<128x128xf32>
    %42 = arith.mulf %41, %40 : vector<128x128xf32>
    %43 = arith.maximumf %40, %42 : vector<128x128xf32>
    %cst_13 = arith.constant -1.000000e+30 : f32
    %44 = vector.broadcast %cst_13 : f32 to vector<128x128xf32>
    %45 = arith.select %2, %43, %44 : vector<128x128xi1>, vector<128x128xf32>
    %cst_14 = arith.constant dense<0xFF800000> : vector<128xf32>
    %46 = vector.multi_reduction <maximumf>, %45, %cst_14 [1] : vector<128x128xf32> to vector<128xf32>
    %47 = vector.shape_cast %46 : vector<128xf32> to vector<128x1xf32>
    %48 = vector.broadcast %47 : vector<128x1xf32> to vector<128x128xf32>
    %49 = arith.subf %45, %48 : vector<128x128xf32>
    %50 = math.exp %49 : vector<128x128xf32>
    %cst_15 = arith.constant dense<0.000000e+00> : vector<128xf32>
    %51 = vector.multi_reduction <add>, %50, %cst_15 [1] : vector<128x128xf32> to vector<128xf32>
    %52 = vector.shape_cast %51 : vector<128xf32> to vector<128x1xf32>
    %53 = tpu.reciprocal %52 {approx = true} : vector<128x1xf32> -> vector<128x1xf32>
    %54 = vector.broadcast %53 : vector<128x1xf32> to vector<128x128xf32>
    %55 = arith.mulf %50, %54 : vector<128x128xf32>
    %cst_16 = arith.constant dense<0.000000e+00> : vector<128x128xf32>
    %56 = tpu.matmul %55, %6, %cst_16 {dimension_numbers = #tpu.dot_dimension_numbers<[1], [0], [0], [1], [0, 0, 1, 1], [], []>} : vector<128x128xf32>, vector<128x128xf32>, vector<128x128xf32> -> vector<128x128xf32>
    %c8_i32_17 = arith.constant 8 : i32
    %57 = vector.broadcast %c8_i32_17 : i32 to vector<128x128xi32>
    %58 = arith.cmpi sge, %7, %57 : vector<128x128xi32>
    %c16_i32 = arith.constant 16 : i32
    %59 = vector.broadcast %c16_i32 : i32 to vector<128x128xi32>
    %60 = arith.cmpi slt, %7, %59 : vector<128x128xi32>
    %61 = arith.andi %58, %60 : vector<128x128xi1>
    %62 = arith.select %61, %56, %35 : vector<128x128xi1>, vector<128x128xf32>
    %63 = vector.extract_strided_slice %3 {offsets = [0, 2], sizes = [128, 1], strides = [1, 1]} : vector<128x8xf32> to vector<128x1xf32>
    %64 = vector.extract_strided_slice %4 {offsets = [2, 0], sizes = [1, 128], strides = [1, 1]} : vector<8x128xf32> to vector<1x128xf32>
    %65 = vector.broadcast %63 : vector<128x1xf32> to vector<128x128xf32>
    %66 = vector.broadcast %64 : vector<1x128xf32> to vector<128x128xf32>
    %67 = arith.addf %65, %66 : vector<128x128xf32>
    %cst_18 = arith.constant 2.000000e-01 : f32
    %68 = vector.broadcast %cst_18 : f32 to vector<128x128xf32>
    %69 = arith.mulf %68, %67 : vector<128x128xf32>
    %70 = arith.maximumf %67, %69 : vector<128x128xf32>
    %cst_19 = arith.constant -1.000000e+30 : f32
    %71 = vector.broadcast %cst_19 : f32 to vector<128x128xf32>
    %72 = arith.select %2, %70, %71 : vector<128x128xi1>, vector<128x128xf32>
    %cst_20 = arith.constant dense<0xFF800000> : vector<128xf32>
    %73 = vector.multi_reduction <maximumf>, %72, %cst_20 [1] : vector<128x128xf32> to vector<128xf32>
    %74 = vector.shape_cast %73 : vector<128xf32> to vector<128x1xf32>
    %75 = vector.broadcast %74 : vector<128x1xf32> to vector<128x128xf32>
    %76 = arith.subf %72, %75 : vector<128x128xf32>
    %77 = math.exp %76 : vector<128x128xf32>
    %cst_21 = arith.constant dense<0.000000e+00> : vector<128xf32>
    %78 = vector.multi_reduction <add>, %77, %cst_21 [1] : vector<128x128xf32> to vector<128xf32>
    %79 = vector.shape_cast %78 : vector<128xf32> to vector<128x1xf32>
    %80 = tpu.reciprocal %79 {approx = true} : vector<128x1xf32> -> vector<128x1xf32>
    %81 = vector.broadcast %80 : vector<128x1xf32> to vector<128x128xf32>
    %82 = arith.mulf %77, %81 : vector<128x128xf32>
    %cst_22 = arith.constant dense<0.000000e+00> : vector<128x128xf32>
    %83 = tpu.matmul %82, %6, %cst_22 {dimension_numbers = #tpu.dot_dimension_numbers<[1], [0], [0], [1], [0, 0, 1, 1], [], []>} : vector<128x128xf32>, vector<128x128xf32>, vector<128x128xf32> -> vector<128x128xf32>
    %c16_i32_23 = arith.constant 16 : i32
    %84 = vector.broadcast %c16_i32_23 : i32 to vector<128x128xi32>
    %85 = arith.cmpi sge, %7, %84 : vector<128x128xi32>
    %c24_i32 = arith.constant 24 : i32
    %86 = vector.broadcast %c24_i32 : i32 to vector<128x128xi32>
    %87 = arith.cmpi slt, %7, %86 : vector<128x128xi32>
    %88 = arith.andi %85, %87 : vector<128x128xi1>
    %89 = arith.select %88, %83, %62 : vector<128x128xi1>, vector<128x128xf32>
    %90 = vector.extract_strided_slice %3 {offsets = [0, 3], sizes = [128, 1], strides = [1, 1]} : vector<128x8xf32> to vector<128x1xf32>
    %91 = vector.extract_strided_slice %4 {offsets = [3, 0], sizes = [1, 128], strides = [1, 1]} : vector<8x128xf32> to vector<1x128xf32>
    %92 = vector.broadcast %90 : vector<128x1xf32> to vector<128x128xf32>
    %93 = vector.broadcast %91 : vector<1x128xf32> to vector<128x128xf32>
    %94 = arith.addf %92, %93 : vector<128x128xf32>
    %cst_24 = arith.constant 2.000000e-01 : f32
    %95 = vector.broadcast %cst_24 : f32 to vector<128x128xf32>
    %96 = arith.mulf %95, %94 : vector<128x128xf32>
    %97 = arith.maximumf %94, %96 : vector<128x128xf32>
    %cst_25 = arith.constant -1.000000e+30 : f32
    %98 = vector.broadcast %cst_25 : f32 to vector<128x128xf32>
    %99 = arith.select %2, %97, %98 : vector<128x128xi1>, vector<128x128xf32>
    %cst_26 = arith.constant dense<0xFF800000> : vector<128xf32>
    %100 = vector.multi_reduction <maximumf>, %99, %cst_26 [1] : vector<128x128xf32> to vector<128xf32>
    %101 = vector.shape_cast %100 : vector<128xf32> to vector<128x1xf32>
    %102 = vector.broadcast %101 : vector<128x1xf32> to vector<128x128xf32>
    %103 = arith.subf %99, %102 : vector<128x128xf32>
    %104 = math.exp %103 : vector<128x128xf32>
    %cst_27 = arith.constant dense<0.000000e+00> : vector<128xf32>
    %105 = vector.multi_reduction <add>, %104, %cst_27 [1] : vector<128x128xf32> to vector<128xf32>
    %106 = vector.shape_cast %105 : vector<128xf32> to vector<128x1xf32>
    %107 = tpu.reciprocal %106 {approx = true} : vector<128x1xf32> -> vector<128x1xf32>
    %108 = vector.broadcast %107 : vector<128x1xf32> to vector<128x128xf32>
    %109 = arith.mulf %104, %108 : vector<128x128xf32>
    %cst_28 = arith.constant dense<0.000000e+00> : vector<128x128xf32>
    %110 = tpu.matmul %109, %6, %cst_28 {dimension_numbers = #tpu.dot_dimension_numbers<[1], [0], [0], [1], [0, 0, 1, 1], [], []>} : vector<128x128xf32>, vector<128x128xf32>, vector<128x128xf32> -> vector<128x128xf32>
    %c24_i32_29 = arith.constant 24 : i32
    %111 = vector.broadcast %c24_i32_29 : i32 to vector<128x128xi32>
    %112 = arith.cmpi sge, %7, %111 : vector<128x128xi32>
    %c32_i32 = arith.constant 32 : i32
    %113 = vector.broadcast %c32_i32 : i32 to vector<128x128xi32>
    %114 = arith.cmpi slt, %7, %113 : vector<128x128xi32>
    %115 = arith.andi %112, %114 : vector<128x128xi1>
    %116 = arith.select %115, %110, %89 : vector<128x128xi1>, vector<128x128xf32>
    %117 = vector.extract_strided_slice %3 {offsets = [0, 4], sizes = [128, 1], strides = [1, 1]} : vector<128x8xf32> to vector<128x1xf32>
    %118 = vector.extract_strided_slice %4 {offsets = [4, 0], sizes = [1, 128], strides = [1, 1]} : vector<8x128xf32> to vector<1x128xf32>
    %119 = vector.broadcast %117 : vector<128x1xf32> to vector<128x128xf32>
    %120 = vector.broadcast %118 : vector<1x128xf32> to vector<128x128xf32>
    %121 = arith.addf %119, %120 : vector<128x128xf32>
    %cst_30 = arith.constant 2.000000e-01 : f32
    %122 = vector.broadcast %cst_30 : f32 to vector<128x128xf32>
    %123 = arith.mulf %122, %121 : vector<128x128xf32>
    %124 = arith.maximumf %121, %123 : vector<128x128xf32>
    %cst_31 = arith.constant -1.000000e+30 : f32
    %125 = vector.broadcast %cst_31 : f32 to vector<128x128xf32>
    %126 = arith.select %2, %124, %125 : vector<128x128xi1>, vector<128x128xf32>
    %cst_32 = arith.constant dense<0xFF800000> : vector<128xf32>
    %127 = vector.multi_reduction <maximumf>, %126, %cst_32 [1] : vector<128x128xf32> to vector<128xf32>
    %128 = vector.shape_cast %127 : vector<128xf32> to vector<128x1xf32>
    %129 = vector.broadcast %128 : vector<128x1xf32> to vector<128x128xf32>
    %130 = arith.subf %126, %129 : vector<128x128xf32>
    %131 = math.exp %130 : vector<128x128xf32>
    %cst_33 = arith.constant dense<0.000000e+00> : vector<128xf32>
    %132 = vector.multi_reduction <add>, %131, %cst_33 [1] : vector<128x128xf32> to vector<128xf32>
    %133 = vector.shape_cast %132 : vector<128xf32> to vector<128x1xf32>
    %134 = tpu.reciprocal %133 {approx = true} : vector<128x1xf32> -> vector<128x1xf32>
    %135 = vector.broadcast %134 : vector<128x1xf32> to vector<128x128xf32>
    %136 = arith.mulf %131, %135 : vector<128x128xf32>
    %cst_34 = arith.constant dense<0.000000e+00> : vector<128x128xf32>
    %137 = tpu.matmul %136, %6, %cst_34 {dimension_numbers = #tpu.dot_dimension_numbers<[1], [0], [0], [1], [0, 0, 1, 1], [], []>} : vector<128x128xf32>, vector<128x128xf32>, vector<128x128xf32> -> vector<128x128xf32>
    %c32_i32_35 = arith.constant 32 : i32
    %138 = vector.broadcast %c32_i32_35 : i32 to vector<128x128xi32>
    %139 = arith.cmpi sge, %7, %138 : vector<128x128xi32>
    %c40_i32 = arith.constant 40 : i32
    %140 = vector.broadcast %c40_i32 : i32 to vector<128x128xi32>
    %141 = arith.cmpi slt, %7, %140 : vector<128x128xi32>
    %142 = arith.andi %139, %141 : vector<128x128xi1>
    %143 = arith.select %142, %137, %116 : vector<128x128xi1>, vector<128x128xf32>
    %144 = vector.extract_strided_slice %3 {offsets = [0, 5], sizes = [128, 1], strides = [1, 1]} : vector<128x8xf32> to vector<128x1xf32>
    %145 = vector.extract_strided_slice %4 {offsets = [5, 0], sizes = [1, 128], strides = [1, 1]} : vector<8x128xf32> to vector<1x128xf32>
    %146 = vector.broadcast %144 : vector<128x1xf32> to vector<128x128xf32>
    %147 = vector.broadcast %145 : vector<1x128xf32> to vector<128x128xf32>
    %148 = arith.addf %146, %147 : vector<128x128xf32>
    %cst_36 = arith.constant 2.000000e-01 : f32
    %149 = vector.broadcast %cst_36 : f32 to vector<128x128xf32>
    %150 = arith.mulf %149, %148 : vector<128x128xf32>
    %151 = arith.maximumf %148, %150 : vector<128x128xf32>
    %cst_37 = arith.constant -1.000000e+30 : f32
    %152 = vector.broadcast %cst_37 : f32 to vector<128x128xf32>
    %153 = arith.select %2, %151, %152 : vector<128x128xi1>, vector<128x128xf32>
    %cst_38 = arith.constant dense<0xFF800000> : vector<128xf32>
    %154 = vector.multi_reduction <maximumf>, %153, %cst_38 [1] : vector<128x128xf32> to vector<128xf32>
    %155 = vector.shape_cast %154 : vector<128xf32> to vector<128x1xf32>
    %156 = vector.broadcast %155 : vector<128x1xf32> to vector<128x128xf32>
    %157 = arith.subf %153, %156 : vector<128x128xf32>
    %158 = math.exp %157 : vector<128x128xf32>
    %cst_39 = arith.constant dense<0.000000e+00> : vector<128xf32>
    %159 = vector.multi_reduction <add>, %158, %cst_39 [1] : vector<128x128xf32> to vector<128xf32>
    %160 = vector.shape_cast %159 : vector<128xf32> to vector<128x1xf32>
    %161 = tpu.reciprocal %160 {approx = true} : vector<128x1xf32> -> vector<128x1xf32>
    %162 = vector.broadcast %161 : vector<128x1xf32> to vector<128x128xf32>
    %163 = arith.mulf %158, %162 : vector<128x128xf32>
    %cst_40 = arith.constant dense<0.000000e+00> : vector<128x128xf32>
    %164 = tpu.matmul %163, %6, %cst_40 {dimension_numbers = #tpu.dot_dimension_numbers<[1], [0], [0], [1], [0, 0, 1, 1], [], []>} : vector<128x128xf32>, vector<128x128xf32>, vector<128x128xf32> -> vector<128x128xf32>
    %c40_i32_41 = arith.constant 40 : i32
    %165 = vector.broadcast %c40_i32_41 : i32 to vector<128x128xi32>
    %166 = arith.cmpi sge, %7, %165 : vector<128x128xi32>
    %c48_i32 = arith.constant 48 : i32
    %167 = vector.broadcast %c48_i32 : i32 to vector<128x128xi32>
    %168 = arith.cmpi slt, %7, %167 : vector<128x128xi32>
    %169 = arith.andi %166, %168 : vector<128x128xi1>
    %170 = arith.select %169, %164, %143 : vector<128x128xi1>, vector<128x128xf32>
    %171 = vector.extract_strided_slice %3 {offsets = [0, 6], sizes = [128, 1], strides = [1, 1]} : vector<128x8xf32> to vector<128x1xf32>
    %172 = vector.extract_strided_slice %4 {offsets = [6, 0], sizes = [1, 128], strides = [1, 1]} : vector<8x128xf32> to vector<1x128xf32>
    %173 = vector.broadcast %171 : vector<128x1xf32> to vector<128x128xf32>
    %174 = vector.broadcast %172 : vector<1x128xf32> to vector<128x128xf32>
    %175 = arith.addf %173, %174 : vector<128x128xf32>
    %cst_42 = arith.constant 2.000000e-01 : f32
    %176 = vector.broadcast %cst_42 : f32 to vector<128x128xf32>
    %177 = arith.mulf %176, %175 : vector<128x128xf32>
    %178 = arith.maximumf %175, %177 : vector<128x128xf32>
    %cst_43 = arith.constant -1.000000e+30 : f32
    %179 = vector.broadcast %cst_43 : f32 to vector<128x128xf32>
    %180 = arith.select %2, %178, %179 : vector<128x128xi1>, vector<128x128xf32>
    %cst_44 = arith.constant dense<0xFF800000> : vector<128xf32>
    %181 = vector.multi_reduction <maximumf>, %180, %cst_44 [1] : vector<128x128xf32> to vector<128xf32>
    %182 = vector.shape_cast %181 : vector<128xf32> to vector<128x1xf32>
    %183 = vector.broadcast %182 : vector<128x1xf32> to vector<128x128xf32>
    %184 = arith.subf %180, %183 : vector<128x128xf32>
    %185 = math.exp %184 : vector<128x128xf32>
    %cst_45 = arith.constant dense<0.000000e+00> : vector<128xf32>
    %186 = vector.multi_reduction <add>, %185, %cst_45 [1] : vector<128x128xf32> to vector<128xf32>
    %187 = vector.shape_cast %186 : vector<128xf32> to vector<128x1xf32>
    %188 = tpu.reciprocal %187 {approx = true} : vector<128x1xf32> -> vector<128x1xf32>
    %189 = vector.broadcast %188 : vector<128x1xf32> to vector<128x128xf32>
    %190 = arith.mulf %185, %189 : vector<128x128xf32>
    %cst_46 = arith.constant dense<0.000000e+00> : vector<128x128xf32>
    %191 = tpu.matmul %190, %6, %cst_46 {dimension_numbers = #tpu.dot_dimension_numbers<[1], [0], [0], [1], [0, 0, 1, 1], [], []>} : vector<128x128xf32>, vector<128x128xf32>, vector<128x128xf32> -> vector<128x128xf32>
    %c48_i32_47 = arith.constant 48 : i32
    %192 = vector.broadcast %c48_i32_47 : i32 to vector<128x128xi32>
    %193 = arith.cmpi sge, %7, %192 : vector<128x128xi32>
    %c56_i32 = arith.constant 56 : i32
    %194 = vector.broadcast %c56_i32 : i32 to vector<128x128xi32>
    %195 = arith.cmpi slt, %7, %194 : vector<128x128xi32>
    %196 = arith.andi %193, %195 : vector<128x128xi1>
    %197 = arith.select %196, %191, %170 : vector<128x128xi1>, vector<128x128xf32>
    %198 = vector.extract_strided_slice %3 {offsets = [0, 7], sizes = [128, 1], strides = [1, 1]} : vector<128x8xf32> to vector<128x1xf32>
    %199 = vector.extract_strided_slice %4 {offsets = [7, 0], sizes = [1, 128], strides = [1, 1]} : vector<8x128xf32> to vector<1x128xf32>
    %200 = vector.broadcast %198 : vector<128x1xf32> to vector<128x128xf32>
    %201 = vector.broadcast %199 : vector<1x128xf32> to vector<128x128xf32>
    %202 = arith.addf %200, %201 : vector<128x128xf32>
    %cst_48 = arith.constant 2.000000e-01 : f32
    %203 = vector.broadcast %cst_48 : f32 to vector<128x128xf32>
    %204 = arith.mulf %203, %202 : vector<128x128xf32>
    %205 = arith.maximumf %202, %204 : vector<128x128xf32>
    %cst_49 = arith.constant -1.000000e+30 : f32
    %206 = vector.broadcast %cst_49 : f32 to vector<128x128xf32>
    %207 = arith.select %2, %205, %206 : vector<128x128xi1>, vector<128x128xf32>
    %cst_50 = arith.constant dense<0xFF800000> : vector<128xf32>
    %208 = vector.multi_reduction <maximumf>, %207, %cst_50 [1] : vector<128x128xf32> to vector<128xf32>
    %209 = vector.shape_cast %208 : vector<128xf32> to vector<128x1xf32>
    %210 = vector.broadcast %209 : vector<128x1xf32> to vector<128x128xf32>
    %211 = arith.subf %207, %210 : vector<128x128xf32>
    %212 = math.exp %211 : vector<128x128xf32>
    %cst_51 = arith.constant dense<0.000000e+00> : vector<128xf32>
    %213 = vector.multi_reduction <add>, %212, %cst_51 [1] : vector<128x128xf32> to vector<128xf32>
    %214 = vector.shape_cast %213 : vector<128xf32> to vector<128x1xf32>
    %215 = tpu.reciprocal %214 {approx = true} : vector<128x1xf32> -> vector<128x1xf32>
    %216 = vector.broadcast %215 : vector<128x1xf32> to vector<128x128xf32>
    %217 = arith.mulf %212, %216 : vector<128x128xf32>
    %cst_52 = arith.constant dense<0.000000e+00> : vector<128x128xf32>
    %218 = tpu.matmul %217, %6, %cst_52 {dimension_numbers = #tpu.dot_dimension_numbers<[1], [0], [0], [1], [0, 0, 1, 1], [], []>} : vector<128x128xf32>, vector<128x128xf32>, vector<128x128xf32> -> vector<128x128xf32>
    %c56_i32_53 = arith.constant 56 : i32
    %219 = vector.broadcast %c56_i32_53 : i32 to vector<128x128xi32>
    %220 = arith.cmpi sge, %7, %219 : vector<128x128xi32>
    %c64_i32 = arith.constant 64 : i32
    %221 = vector.broadcast %c64_i32 : i32 to vector<128x128xi32>
    %222 = arith.cmpi slt, %7, %221 : vector<128x128xi32>
    %223 = arith.andi %220, %222 : vector<128x128xi1>
    %224 = arith.select %223, %218, %197 : vector<128x128xi1>, vector<128x128xf32>
    %c0_54 = arith.constant 0 : index
    %c0_55 = arith.constant 0 : index
    %225 = vector.load %arg5[%c0_54, %c0_55] : memref<1x128xf32, #tpu.memory_space<vmem>>, vector<1x128xf32>
    %226 = vector.broadcast %225 : vector<1x128xf32> to vector<128x128xf32>
    %227 = arith.addf %224, %226 : vector<128x128xf32>
    %cst_56 = arith.constant 0.000000e+00 : f32
    %228 = vector.broadcast %cst_56 : f32 to vector<128x128xf32>
    %229 = arith.maximumf %227, %228 : vector<128x128xf32>
    %230 = arith.truncf %229 : vector<128x128xf32> to vector<128x128xbf16>
    %c0_57 = arith.constant 0 : index
    %c0_58 = arith.constant 0 : index
    %231 = vector.load %arg6[%c0_57, %c0_58] : memref<128x128xbf16, #tpu.memory_space<vmem>>, vector<128x128xbf16>
    tpu.vector_store %arg6[%c0_57, %c0_58], %230 {strides = array<i32>} : memref<128x128xbf16, #tpu.memory_space<vmem>>, vector<128x128xbf16>,
    return
  }
  func.func @transform_0(%arg0: i32) -> (i32, i32) {
    %c0_i32 = arith.constant 0 : i32
    %c0_i32_0 = arith.constant 0 : i32
    return %arg0, %c0_i32 : i32, i32
  }
  func.func @transform_1(%arg0: i32) -> (i32, i32) {
    %c0_i32 = arith.constant 0 : i32
    %c0_i32_0 = arith.constant 0 : i32
    return %arg0, %c0_i32 : i32, i32
  }
  func.func @transform_2(%arg0: i32) -> (i32, i32) {
    %c0_i32 = arith.constant 0 : i32
    %c0_i32_0 = arith.constant 0 : i32
    %c0_i32_1 = arith.constant 0 : i32
    return %c0_i32, %c0_i32_0 : i32, i32
  }
  func.func @transform_3(%arg0: i32) -> (i32, i32) {
    %c0_i32 = arith.constant 0 : i32
    %c0_i32_0 = arith.constant 0 : i32
    %c0_i32_1 = arith.constant 0 : i32
    return %c0_i32, %c0_i32_0 : i32, i32
  }
  func.func @transform_4(%arg0: i32) -> (i32, i32) {
    %c0_i32 = arith.constant 0 : i32
    %c0_i32_0 = arith.constant 0 : i32
    %c0_i32_1 = arith.constant 0 : i32
    return %c0_i32, %c0_i32_0 : i32, i32
  }
  func.func @transform_5(%arg0: i32) -> (i32, i32) {
    %c0_i32 = arith.constant 0 : i32
    %c0_i32_0 = arith.constant 0 : i32
    return %arg0, %c0_i32 : i32, i32
  }
}

module attributes {stable_mosaic.version = 11 : i64} {
  func.func @gat_project_kernel(%arg0: i32, %arg1: memref<128x128xbf16, #tpu.memory_space<vmem>>, %arg2: memref<128x128xf32, #tpu.memory_space<vmem>>, %arg3: memref<8x128xf32, #tpu.memory_space<vmem>>, %arg4: memref<8x128xf32, #tpu.memory_space<vmem>>, %arg5: memref<128x128xbf16, #tpu.memory_space<vmem>>, %arg6: memref<8x128xf32, #tpu.memory_space<vmem>>, %arg7: memref<128x8xf32, #tpu.memory_space<vmem>>) attributes {dimension_semantics = [#tpu.dimension_semantics<parallel>], iteration_bounds = array<i64: 1>, scalar_prefetch = 0 : i64, scratch_operands = 0 : i64, tpu.core_type = #tpu.core_type<tc>, window_params = [{transform_indices = @transform_0, window_bounds = array<i64: 128, 128>}, {pipeline_mode = #tpu.pipeline_mode<synchronous>, transform_indices = @transform_1, window_bounds = array<i64: 128, 128>}, {pipeline_mode = #tpu.pipeline_mode<synchronous>, transform_indices = @transform_2, window_bounds = array<i64: 8, 128>}, {pipeline_mode = #tpu.pipeline_mode<synchronous>, transform_indices = @transform_3, window_bounds = array<i64: 8, 128>}, {transform_indices = @transform_4, window_bounds = array<i64: 128, 128>}, {transform_indices = @transform_5, window_bounds = array<i64: 8, 128>}, {transform_indices = @transform_6, window_bounds = array<i64: 128, 8>}]} {
    %c0 = arith.constant 0 : index
    %c0_0 = arith.constant 0 : index
    %0 = vector.load %arg1[%c0, %c0_0] : memref<128x128xbf16, #tpu.memory_space<vmem>>, vector<128x128xbf16>
    %1 = arith.extf %0 : vector<128x128xbf16> to vector<128x128xf32>
    %c0_1 = arith.constant 0 : index
    %c0_2 = arith.constant 0 : index
    %2 = vector.load %arg2[%c0_1, %c0_2] : memref<128x128xf32, #tpu.memory_space<vmem>>, vector<128x128xf32>
    %cst = arith.constant dense<0.000000e+00> : vector<128x128xf32>
    %3 = tpu.matmul %1, %2, %cst {dimension_numbers = #tpu.dot_dimension_numbers<[1], [0], [0], [1], [0, 0, 1, 1], [], []>} : vector<128x128xf32>, vector<128x128xf32>, vector<128x128xf32> -> vector<128x128xf32>
    %4 = arith.truncf %3 : vector<128x128xf32> to vector<128x128xbf16>
    %c0_3 = arith.constant 0 : index
    %c0_4 = arith.constant 0 : index
    %5 = vector.load %arg5[%c0_3, %c0_4] : memref<128x128xbf16, #tpu.memory_space<vmem>>, vector<128x128xbf16>
    tpu.vector_store %arg5[%c0_3, %c0_4], %4 {strides = array<i32>} : memref<128x128xbf16, #tpu.memory_space<vmem>>, vector<128x128xbf16>,
    %c0_5 = arith.constant 0 : index
    %c0_6 = arith.constant 0 : index
    %6 = vector.load %arg3[%c0_5, %c0_6] : memref<8x128xf32, #tpu.memory_space<vmem>>, vector<8x128xf32>
    %c0_7 = arith.constant 0 : index
    %c0_8 = arith.constant 0 : index
    %7 = vector.load %arg4[%c0_7, %c0_8] : memref<8x128xf32, #tpu.memory_space<vmem>>, vector<8x128xf32>
    %cst_9 = arith.constant dense<0.000000e+00> : vector<8x128xf32>
    %8 = tpu.matmul %6, %3, %cst_9 {dimension_numbers = #tpu.dot_dimension_numbers<[1], [1], [0], [0], [0, 0, 1, 0], [], []>} : vector<8x128xf32>, vector<128x128xf32>, vector<8x128xf32> -> vector<8x128xf32>
    %c0_10 = arith.constant 0 : index
    %c0_11 = arith.constant 0 : index
    %9 = vector.load %arg6[%c0_10, %c0_11] : memref<8x128xf32, #tpu.memory_space<vmem>>, vector<8x128xf32>
    tpu.vector_store %arg6[%c0_10, %c0_11], %8 {strides = array<i32>} : memref<8x128xf32, #tpu.memory_space<vmem>>, vector<8x128xf32>,
    %cst_12 = arith.constant dense<0.000000e+00> : vector<128x8xf32>
    %10 = tpu.matmul %3, %7, %cst_12 {dimension_numbers = #tpu.dot_dimension_numbers<[1], [1], [0], [0], [0, 0, 1, 0], [], []>} : vector<128x128xf32>, vector<8x128xf32>, vector<128x8xf32> -> vector<128x8xf32>
    %c0_13 = arith.constant 0 : index
    %c0_14 = arith.constant 0 : index
    %11 = vector.load %arg7[%c0_13, %c0_14] : memref<128x8xf32, #tpu.memory_space<vmem>>, vector<128x8xf32>
    tpu.vector_store %arg7[%c0_13, %c0_14], %10 {strides = array<i32>} : memref<128x8xf32, #tpu.memory_space<vmem>>, vector<128x8xf32>,
    return
  }
  func.func @transform_0(%arg0: i32) -> (i32, i32) {
    %c0_i32 = arith.constant 0 : i32
    %c0_i32_0 = arith.constant 0 : i32
    return %arg0, %c0_i32 : i32, i32
  }
  func.func @transform_1(%arg0: i32) -> (i32, i32) {
    %c0_i32 = arith.constant 0 : i32
    %c0_i32_0 = arith.constant 0 : i32
    %c0_i32_1 = arith.constant 0 : i32
    return %c0_i32, %c0_i32_0 : i32, i32
  }
  func.func @transform_2(%arg0: i32) -> (i32, i32) {
    %c0_i32 = arith.constant 0 : i32
    %c0_i32_0 = arith.constant 0 : i32
    %c0_i32_1 = arith.constant 0 : i32
    return %c0_i32, %c0_i32_0 : i32, i32
  }
  func.func @transform_3(%arg0: i32) -> (i32, i32) {
    %c0_i32 = arith.constant 0 : i32
    %c0_i32_0 = arith.constant 0 : i32
    %c0_i32_1 = arith.constant 0 : i32
    return %c0_i32, %c0_i32_0 : i32, i32
  }
  func.func @transform_4(%arg0: i32) -> (i32, i32) {
    %c0_i32 = arith.constant 0 : i32
    %c0_i32_0 = arith.constant 0 : i32
    return %arg0, %c0_i32 : i32, i32
  }
  func.func @transform_5(%arg0: i32) -> (i32, i32) {
    %c0_i32 = arith.constant 0 : i32
    %c0_i32_0 = arith.constant 0 : i32
    return %c0_i32, %arg0 : i32, i32
  }
  func.func @transform_6(%arg0: i32) -> (i32, i32) {
    %c0_i32 = arith.constant 0 : i32
    %c0_i32_0 = arith.constant 0 : i32
    return %arg0, %c0_i32 : i32, i32
  }
}

module attributes {stable_mosaic.version = 11 : i64} {
  func.func @gat_attention_kernel(%arg0: i32, %arg1: memref<128x128xi8, #tpu.memory_space<vmem>>, %arg2: memref<128x8xf32, #tpu.memory_space<vmem>>, %arg3: memref<8x128xf32, #tpu.memory_space<vmem>>, %arg4: memref<128x128xbf16, #tpu.memory_space<vmem>>, %arg5: memref<1x128xf32, #tpu.memory_space<vmem>>, %arg6: memref<128x128xf32, #tpu.memory_space<vmem>>) attributes {dimension_semantics = [#tpu.dimension_semantics<parallel>], iteration_bounds = array<i64: 1>, scalar_prefetch = 0 : i64, scratch_operands = 0 : i64, tpu.core_type = #tpu.core_type<tc>, window_params = [{transform_indices = @transform_0, window_bounds = array<i64: 128, 128>}, {transform_indices = @transform_1, window_bounds = array<i64: 128, 8>}, {pipeline_mode = #tpu.pipeline_mode<synchronous>, transform_indices = @transform_2, window_bounds = array<i64: 8, 128>}, {pipeline_mode = #tpu.pipeline_mode<synchronous>, transform_indices = @transform_3, window_bounds = array<i64: 128, 128>}, {pipeline_mode = #tpu.pipeline_mode<synchronous>, transform_indices = @transform_4, window_bounds = array<i64: 1, 128>}, {transform_indices = @transform_5, window_bounds = array<i64: 128, 128>}]} {
    %c0 = arith.constant 0 : index
    %c0_0 = arith.constant 0 : index
    %0 = vector.load %arg1[%c0, %c0_0] : memref<128x128xi8, #tpu.memory_space<vmem>>, vector<128x128xi8>
    %c0_i8 = arith.constant 0 : i8
    %1 = vector.broadcast %c0_i8 : i8 to vector<128x128xi8>
    %2 = arith.cmpi ne, %0, %1 : vector<128x128xi8>
    %c0_1 = arith.constant 0 : index
    %c0_2 = arith.constant 0 : index
    %3 = vector.load %arg2[%c0_1, %c0_2] : memref<128x8xf32, #tpu.memory_space<vmem>>, vector<128x8xf32>
    %c0_3 = arith.constant 0 : index
    %c0_4 = arith.constant 0 : index
    %4 = vector.load %arg3[%c0_3, %c0_4] : memref<8x128xf32, #tpu.memory_space<vmem>>, vector<8x128xf32>
    %c0_5 = arith.constant 0 : index
    %c0_6 = arith.constant 0 : index
    %5 = vector.load %arg4[%c0_5, %c0_6] : memref<128x128xbf16, #tpu.memory_space<vmem>>, vector<128x128xbf16>
    %6 = arith.extf %5 : vector<128x128xbf16> to vector<128x128xf32>
    %7 = vector.extract_strided_slice %3 {offsets = [0, 0], sizes = [128, 1], strides = [1, 1]} : vector<128x8xf32> to vector<128x1xf32>
    %8 = vector.extract_strided_slice %4 {offsets = [0, 0], sizes = [1, 128], strides = [1, 1]} : vector<8x128xf32> to vector<1x128xf32>
    %9 = vector.broadcast %7 : vector<128x1xf32> to vector<128x128xf32>
    %10 = vector.broadcast %8 : vector<1x128xf32> to vector<128x128xf32>
    %11 = arith.addf %9, %10 : vector<128x128xf32>
    %cst = arith.constant 2.000000e-01 : f32
    %12 = vector.broadcast %cst : f32 to vector<128x128xf32>
    %13 = arith.mulf %12, %11 : vector<128x128xf32>
    %14 = arith.maximumf %11, %13 : vector<128x128xf32>
    %cst_7 = arith.constant -1.000000e+30 : f32
    %15 = vector.broadcast %cst_7 : f32 to vector<128x128xf32>
    %16 = arith.select %2, %14, %15 : vector<128x128xi1>, vector<128x128xf32>
    %cst_8 = arith.constant dense<0xFF800000> : vector<128xf32>
    %17 = vector.multi_reduction <maximumf>, %16, %cst_8 [1] : vector<128x128xf32> to vector<128xf32>
    %18 = vector.shape_cast %17 : vector<128xf32> to vector<128x1xf32>
    %19 = vector.broadcast %18 : vector<128x1xf32> to vector<128x128xf32>
    %20 = arith.subf %16, %19 : vector<128x128xf32>
    %21 = math.exp %20 : vector<128x128xf32>
    %cst_9 = arith.constant dense<0.000000e+00> : vector<128xf32>
    %22 = vector.multi_reduction <add>, %21, %cst_9 [1] : vector<128x128xf32> to vector<128xf32>
    %23 = vector.shape_cast %22 : vector<128xf32> to vector<128x1xf32>
    %24 = tpu.reciprocal %23 {approx = true} : vector<128x1xf32> -> vector<128x1xf32>
    %25 = vector.broadcast %24 : vector<128x1xf32> to vector<128x128xf32>
    %26 = arith.mulf %21, %25 : vector<128x128xf32>
    %cst_10 = arith.constant dense<0.000000e+00> : vector<128x128xf32>
    %27 = tpu.matmul %26, %6, %cst_10 {dimension_numbers = #tpu.dot_dimension_numbers<[1], [0], [0], [1], [0, 0, 1, 1], [], []>} : vector<128x128xf32>, vector<128x128xf32>, vector<128x128xf32> -> vector<128x128xf32>
    %c0_11 = arith.constant 0 : index
    %c0_12 = arith.constant 0 : index
    %28 = vector.load %arg5[%c0_11, %c0_12] : memref<1x128xf32, #tpu.memory_space<vmem>>, vector<1x128xf32>
    %29 = vector.broadcast %28 : vector<1x128xf32> to vector<128x128xf32>
    %30 = arith.addf %27, %29 : vector<128x128xf32>
    %31 = tpu.iota {dimensions = array<i32: 1>} : vector<128x128xi32>
    %c7_i32 = arith.constant 7 : i32
    %32 = vector.broadcast %c7_i32 : i32 to vector<128x128xi32>
    %33 = arith.cmpi slt, %31, %32 : vector<128x128xi32>
    %cst_13 = arith.constant -1.000000e+30 : f32
    %34 = vector.broadcast %cst_13 : f32 to vector<128x128xf32>
    %35 = arith.select %33, %30, %34 : vector<128x128xi1>, vector<128x128xf32>
    %cst_14 = arith.constant dense<0xFF800000> : vector<128xf32>
    %36 = vector.multi_reduction <maximumf>, %35, %cst_14 [1] : vector<128x128xf32> to vector<128xf32>
    %37 = vector.shape_cast %36 : vector<128xf32> to vector<128x1xf32>
    %38 = vector.broadcast %37 : vector<128x1xf32> to vector<128x128xf32>
    %39 = arith.subf %35, %38 : vector<128x128xf32>
    %40 = math.exp %39 : vector<128x128xf32>
    %cst_15 = arith.constant dense<0.000000e+00> : vector<128xf32>
    %41 = vector.multi_reduction <add>, %40, %cst_15 [1] : vector<128x128xf32> to vector<128xf32>
    %42 = vector.shape_cast %41 : vector<128xf32> to vector<128x1xf32>
    %43 = math.log %42 : vector<128x1xf32>
    %44 = vector.broadcast %43 : vector<128x1xf32> to vector<128x128xf32>
    %45 = arith.subf %39, %44 : vector<128x128xf32>
    %c0_16 = arith.constant 0 : index
    %c0_17 = arith.constant 0 : index
    %46 = vector.load %arg6[%c0_16, %c0_17] : memref<128x128xf32, #tpu.memory_space<vmem>>, vector<128x128xf32>
    tpu.vector_store %arg6[%c0_16, %c0_17], %45 {strides = array<i32>} : memref<128x128xf32, #tpu.memory_space<vmem>>, vector<128x128xf32>,
    return
  }
  func.func @transform_0(%arg0: i32) -> (i32, i32) {
    %c0_i32 = arith.constant 0 : i32
    %c0_i32_0 = arith.constant 0 : i32
    return %arg0, %c0_i32 : i32, i32
  }
  func.func @transform_1(%arg0: i32) -> (i32, i32) {
    %c0_i32 = arith.constant 0 : i32
    %c0_i32_0 = arith.constant 0 : i32
    return %arg0, %c0_i32 : i32, i32
  }
  func.func @transform_2(%arg0: i32) -> (i32, i32) {
    %c0_i32 = arith.constant 0 : i32
    %c0_i32_0 = arith.constant 0 : i32
    %c0_i32_1 = arith.constant 0 : i32
    return %c0_i32, %c0_i32_0 : i32, i32
  }
  func.func @transform_3(%arg0: i32) -> (i32, i32) {
    %c0_i32 = arith.constant 0 : i32
    %c0_i32_0 = arith.constant 0 : i32
    %c0_i32_1 = arith.constant 0 : i32
    return %c0_i32, %c0_i32_0 : i32, i32
  }
  func.func @transform_4(%arg0: i32) -> (i32, i32) {
    %c0_i32 = arith.constant 0 : i32
    %c0_i32_0 = arith.constant 0 : i32
    %c0_i32_1 = arith.constant 0 : i32
    return %c0_i32, %c0_i32_0 : i32, i32
  }
  func.func @transform_5(%arg0: i32) -> (i32, i32) {
    %c0_i32 = arith.constant 0 : i32
    %c0_i32_0 = arith.constant 0 : i32
    return %arg0, %c0_i32 : i32, i32
  }
}

</mosaic_0001>

<llo_original>
// kernel: gat_forward.4
$region0: #{gat_forward.4}
  #allocation0 [shape = 'u32[]', space=smem, size = 0x4, offset = 0x4, fixed_abs, tag = 'smem constant byte address 0x4 - core index']
  #allocation1 [shape = 'u32[144,128]{1,0:T(1,128)}', space=vmem, size = 0x12000, scoped, tag = 'internal scratch']
  %s0 = inlined_call_operand.vmem [shape: f32[128,128], index: 0, kind: input, shape index: {}]
  %s1 = inlined_call_operand.vmem [shape: f32[128,128], index: 1, kind: input, shape index: {}]
  %s2 = inlined_call_operand.vmem [shape: f32[8,128], index: 2, kind: input, shape index: {}]
  %s3 = inlined_call_operand.vmem [shape: f32[8,128], index: 3, kind: input, shape index: {}]
  %s4 = inlined_call_operand.vmem [shape: bf16[128,128], index: 4, kind: output, shape index: {0}]
  %s5 = inlined_call_operand.vmem [shape: f32[8,128], index: 5, kind: output, shape index: {1}]
  %s6 = inlined_call_operand.vmem [shape: f32[128,8], index: 6, kind: output, shape index: {2}]
  %7 = xla_tuple %s4, %s5, %s6
  %s8 = sld [smem:[#allocation0]]
  $region42: #{gat_forward.4} parent=0
    _
  %s10 = ssub.s32 1, %s8
  %s11 = scalar_select 0, %s10, %s8
  // Predicated region
  $region2: #{gat_forward.4} parent=0 // pred_check
    _
  $region3: #{gat_forward.4} parent=0 // pred_check_branch
    %13 = sbr.rel (0) target = $region5
  $region4: #{gat_forward.4} parent=0 // pred_region
    _
  $region5: #{gat_forward.4} parent=0 // pred_fallthru
    _
  // Predicated region
  $region6: #{gat_forward.4} parent=0 // pred_check
    _
  $region7: #{gat_forward.4} parent=0 // pred_check_branch
    %15 = sbr.rel (0) target = $region9
  $region8: #{gat_forward.4} parent=0 // pred_region
    _
  $region9: #{gat_forward.4} parent=0 // pred_fallthru
    _
  // Predicated region
  $region10: #{gat_forward.4} parent=0 // pred_check
    _
  $region11: #{gat_forward.4} parent=0 // pred_check_branch
    %17 = sbr.rel (0) target = $region13
  $region12: #{gat_forward.4} parent=0 // pred_region
    _
  $region13: #{gat_forward.4} parent=0 // pred_fallthru
    _
  // Predicated region
  $region14: #{gat_forward.4} parent=0 // pred_check
    _
  $region15: #{gat_forward.4} parent=0 // pred_check_branch
    %19 = sbr.rel (0) target = $region17
  $region16: #{gat_forward.4} parent=0 // pred_region
    _
  $region17: #{gat_forward.4} parent=0 // pred_fallthru
    _
  %v20 = vld [vmem:[%s0] sm:$0xff]
  %v21 = vld [vmem:[%s0 + $0x8] sm:$0xff]
  %v22 = vld [vmem:[%s0 + $0x10] sm:$0xff]
  %v23 = vld [vmem:[%s0 + $0x18] sm:$0xff]
  %v24 = vld [vmem:[%s0 + $0x20] sm:$0xff]
  %v25 = vld [vmem:[%s0 + $0x28] sm:$0xff]
  %v26 = vld [vmem:[%s0 + $0x30] sm:$0xff]
  %v27 = vld [vmem:[%s0 + $0x38] sm:$0xff]
  %v28 = vld [vmem:[%s0 + $0x40] sm:$0xff]
  %v29 = vld [vmem:[%s0 + $0x48] sm:$0xff]
  %v30 = vld [vmem:[%s0 + $0x50] sm:$0xff]
  %v31 = vld [vmem:[%s0 + $0x58] sm:$0xff]
  %v32 = vld [vmem:[%s0 + $0x60] sm:$0xff]
  %v33 = vld [vmem:[%s0 + $0x68] sm:$0xff]
  %v34 = vld [vmem:[%s0 + $0x70] sm:$0xff]
  %v35 = vld [vmem:[%s0 + $0x78] sm:$0xff]
  %v36 = vld [vmem:[%s1] sm:$0xff]
  %v37 = vld [vmem:[%s1 + $0x8] sm:$0xff]
  %v38 = vld [vmem:[%s1 + $0x10] sm:$0xff]
  %v39 = vld [vmem:[%s1 + $0x18] sm:$0xff]
  %v40 = vld [vmem:[%s1 + $0x20] sm:$0xff]
  %v41 = vld [vmem:[%s1 + $0x28] sm:$0xff]
  %v42 = vld [vmem:[%s1 + $0x30] sm:$0xff]
  %v43 = vld [vmem:[%s1 + $0x38] sm:$0xff]
  %v44 = vld [vmem:[%s1 + $0x40] sm:$0xff]
  %v45 = vld [vmem:[%s1 + $0x48] sm:$0xff]
  %v46 = vld [vmem:[%s1 + $0x50] sm:$0xff]
  %v47 = vld [vmem:[%s1 + $0x58] sm:$0xff]
  %v48 = vld [vmem:[%s1 + $0x60] sm:$0xff]
  %v49 = vld [vmem:[%s1 + $0x68] sm:$0xff]
  %v50 = vld [vmem:[%s1 + $0x70] sm:$0xff]
  %v51 = vld [vmem:[%s1 + $0x78] sm:$0xff]
  %52 = vmatprep.subr.mxu0 0.0
  %53 = vmatpush1.msra.mxu0 %v51
  %54 = vmatprep.subr.mxu0 0.0
  %55 = vmatpush1.msra.mxu0 %v50
  %56 = vmatprep.subr.mxu0 0.0
  %57 = vmatpush1.msra.mxu0 %v49
  %58 = vmatprep.subr.mxu0 0.0
  %59 = vmatpush1.msra.mxu0 %v48
  %60 = vmatprep.subr.mxu0 0.0
  %61 = vmatpush1.msra.mxu0 %v47
  %62 = vmatprep.subr.mxu0 0.0
  %63 = vmatpush1.msra.mxu0 %v46
  %64 = vmatprep.subr.mxu0 0.0
  %65 = vmatpush1.msra.mxu0 %v45
  %66 = vmatprep.subr.mxu0 0.0
  %67 = vmatpush1.msra.mxu0 %v44
  %68 = vmatprep.subr.mxu0 0.0
  %69 = vmatpush1.msra.mxu0 %v43
  %70 = vmatprep.subr.mxu0 0.0
  %71 = vmatpush1.msra.mxu0 %v42
  %72 = vmatprep.subr.mxu0 0.0
  %73 = vmatpush1.msra.mxu0 %v41
  %74 = vmatprep.subr.mxu0 0.0
  %75 = vmatpush1.msra.mxu0 %v40
  %76 = vmatprep.subr.mxu0 0.0
  %77 = vmatpush1.msra.mxu0 %v39
  %78 = vmatprep.subr.mxu0 0.0
  %79 = vmatpush1.msra.mxu0 %v38
  %80 = vmatprep.subr.mxu0 0.0
  %81 = vmatpush1.msra.mxu0 %v37
  %82 = vmatprep.subr.mxu0 0.0
  %83 = vmatpush1.msra.mxu0 %v36
  %84 = vmatprep.subr.mxu0 0.0
  %85 = vmatpush2.msra.mxu0 0.0
  %86 = vmatprep.subr.mxu0 0.0
  %87 = vmatpush2.msra.mxu0 0.0
  %88 = vmatprep.subr.mxu0 0.0
  %89 = vmatpush2.msra.mxu0 0.0
  %90 = vmatprep.subr.mxu0 0.0
  %91 = vmatpush2.msra.mxu0 0.0
  %92 = vmatprep.subr.mxu0 0.0
  %93 = vmatpush2.msra.mxu0 0.0
  %94 = vmatprep.subr.mxu0 0.0
  %95 = vmatpush2.msra.mxu0 0.0
  %96 = vmatprep.subr.mxu0 0.0
  %97 = vmatpush2.msra.mxu0 0.0
  %98 = vmatprep.subr.mxu0 0.0
  %99 = vmatpush2.msra.mxu0 0.0
  %100 = vmatprep.subr.mxu0 0.0
  %101 = vmatpush2.msra.mxu0 0.0
  %102 = vmatprep.subr.mxu0 0.0
  %103 = vmatpush2.msra.mxu0 0.0
  %104 = vmatprep.subr.mxu0 0.0
  %105 = vmatpush2.msra.mxu0 0.0
  %106 = vmatprep.subr.mxu0 0.0
  %107 = vmatpush2.msra.mxu0 0.0
  %108 = vmatprep.subr.mxu0 0.0
  %109 = vmatpush2.msra.mxu0 0.0
  %110 = vmatprep.subr.mxu0 0.0
  %111 = vmatpush2.msra.mxu0 0.0
  %112 = vmatprep.subr.mxu0 0.0
  %113 = vmatpush2.msra.mxu0 0.0
  %114 = vmatprep.subr.mxu0 0.0
  %115 = vmatpush2.msra.mxu0 0.0
  %116 = vmatprep.mubr.f32.mxu0 0.0
  %117 = vmatmul.mubr.f32.gmra.mxu0 %v20
  %v118 = vpop.f32.mrf.mxu0
  %v119 = vadd.f32 0.0, %v118
  %v120 = vpop.f32.mrf.mxu0
  %121 = vmatprep.mubr.f32.mxu0 0.0
  %122 = vmatmul.mubr.f32.gmra.mxu0 %v21
  %v123 = vpop.f32.mrf.mxu0
  %v124 = vadd.f32 0.0, %v123
  %v125 = vpop.f32.mrf.mxu0
  %126 = vmatprep.mubr.f32.mxu0 0.0
  %127 = vmatmul.mubr.f32.gmra.mxu0 %v22
  %v128 = vpop.f32.mrf.mxu0
  %v129 = vadd.f32 0.0, %v128
  %v130 = vpop.f32.mrf.mxu0
  %131 = vmatprep.mubr.f32.mxu0 0.0
  %132 = vmatmul.mubr.f32.gmra.mxu0 %v23
  %v133 = vpop.f32.mrf.mxu0
  %v134 = vadd.f32 0.0, %v133
  %v135 = vpop.f32.mrf.mxu0
  %136 = vmatprep.mubr.f32.mxu0 0.0
  %137 = vmatmul.mubr.f32.gmra.mxu0 %v24
  %v138 = vpop.f32.mrf.mxu0
  %v139 = vadd.f32 0.0, %v138
  %v140 = vpop.f32.mrf.mxu0
  %141 = vmatprep.mubr.f32.mxu0 0.0
  %142 = vmatmul.mubr.f32.gmra.mxu0 %v25
  %v143 = vpop.f32.mrf.mxu0
  %v144 = vadd.f32 0.0, %v143
  %v145 = vpop.f32.mrf.mxu0
  %146 = vmatprep.mubr.f32.mxu0 0.0
  %147 = vmatmul.mubr.f32.gmra.mxu0 %v26
  %v148 = vpop.f32.mrf.mxu0
  %v149 = vadd.f32 0.0, %v148
  %v150 = vpop.f32.mrf.mxu0
  %151 = vmatprep.mubr.f32.mxu0 0.0
  %152 = vmatmul.mubr.f32.gmra.mxu0 %v27
  %v153 = vpop.f32.mrf.mxu0
  %v154 = vadd.f32 0.0, %v153
  %v155 = vpop.f32.mrf.mxu0
  %156 = vmatprep.mubr.f32.mxu0 0.0
  %157 = vmatmul.mubr.f32.gmra.mxu0 %v28
  %v158 = vpop.f32.mrf.mxu0
  %v159 = vadd.f32 0.0, %v158
  %v160 = vpop.f32.mrf.mxu0
  %161 = vmatprep.mubr.f32.mxu0 0.0
  %162 = vmatmul.mubr.f32.gmra.mxu0 %v29
  %v163 = vpop.f32.mrf.mxu0
  %v164 = vadd.f32 0.0, %v163
  %v165 = vpop.f32.mrf.mxu0
  %166 = vmatprep.mubr.f32.mxu0 0.0
  %167 = vmatmul.mubr.f32.gmra.mxu0 %v30
  %v168 = vpop.f32.mrf.mxu0
  %v169 = vadd.f32 0.0, %v168
  %v170 = vpop.f32.mrf.mxu0
  %171 = vmatprep.mubr.f32.mxu0 0.0
  %172 = vmatmul.mubr.f32.gmra.mxu0 %v31
  %v173 = vpop.f32.mrf.mxu0
  %v174 = vadd.f32 0.0, %v173
  %v175 = vpop.f32.mrf.mxu0
  %176 = vmatprep.mubr.f32.mxu0 0.0
  %177 = vmatmul.mubr.f32.gmra.mxu0 %v32
  %v178 = vpop.f32.mrf.mxu0
  %v179 = vadd.f32 0.0, %v178
  %v180 = vpop.f32.mrf.mxu0
  %181 = vmatprep.mubr.f32.mxu0 0.0
  %182 = vmatmul.mubr.f32.gmra.mxu0 %v33
  %v183 = vpop.f32.mrf.mxu0
  %v184 = vadd.f32 0.0, %v183
  %v185 = vpop.f32.mrf.mxu0
  %186 = vmatprep.mubr.f32.mxu0 0.0
  %187 = vmatmul.mubr.f32.gmra.mxu0 %v34
  %v188 = vpop.f32.mrf.mxu0
  %v189 = vadd.f32 0.0, %v188
  %v190 = vpop.f32.mrf.mxu0
  %191 = vmatprep.mubr.f32.mxu0 0.0
  %192 = vmatmul.mubr.f32.gmra.mxu0 %v35
  %v193 = vpop.f32.mrf.mxu0
  %v194 = vadd.f32 0.0, %v193
  %v195 = vpop.f32.mrf.mxu0
  %196 = vdwg.mxu0
  %v197 = vpack.c.bf16 %v124, %v119
  %v198 = vpack.c.bf16 %v134, %v129
  %v199 = vpack.c.bf16 %v144, %v139
  %v200 = vpack.c.bf16 %v154, %v149
  %v201 = vpack.c.bf16 %v164, %v159
  %v202 = vpack.c.bf16 %v174, %v169
  %v203 = vpack.c.bf16 %v184, %v179
  %v204 = vpack.c.bf16 %v194, %v189
  %v213 = vunpack.c.l.b16 %v197
  %v214 = vunpack.c.h.b16 %v197
  %v215 = vunpack.c.l.b16 %v198
  %v216 = vunpack.c.h.b16 %v198
  %v217 = vunpack.c.l.b16 %v199
  %v218 = vunpack.c.h.b16 %v199
  %v219 = vunpack.c.l.b16 %v200
  %v220 = vunpack.c.h.b16 %v200
  %v221 = vunpack.c.l.b16 %v201
  %v222 = vunpack.c.h.b16 %v201
  %v223 = vunpack.c.l.b16 %v202
  %v224 = vunpack.c.h.b16 %v202
  %v225 = vunpack.c.l.b16 %v203
  %v226 = vunpack.c.h.b16 %v203
  %v227 = vunpack.c.l.b16 %v204
  %v228 = vunpack.c.h.b16 %v204
  %v229 = vpack.c.b16 %v213, %v213
  %v230 = vpack.c.b16 %v214, %v214
  %v231 = vpack.c.b16 %v215, %v215
  %v232 = vpack.c.b16 %v216, %v216
  %v233 = vpack.c.b16 %v217, %v217
  %v234 = vpack.c.b16 %v218, %v218
  %v235 = vpack.c.b16 %v219, %v219
  %v236 = vpack.c.b16 %v220, %v220
  %v237 = vpack.c.b16 %v221, %v221
  %v238 = vpack.c.b16 %v222, %v222
  %v239 = vpack.c.b16 %v223, %v223
  %v240 = vpack.c.b16 %v224, %v224
  %v241 = vpack.c.b16 %v225, %v225
  %v242 = vpack.c.b16 %v226, %v226
  %v243 = vpack.c.b16 %v227, %v227
  %v244 = vpack.c.b16 %v228, %v228
  %261 = vst [vmem:[%s4] sm:$0xf] %v229
  %262 = vst [vmem:[%s4 + $0x4] sm:$0xf] %v230
  %263 = vst [vmem:[%s4 + $0x8] sm:$0xf] %v231
  %264 = vst [vmem:[%s4 + $0xc] sm:$0xf] %v232
  %265 = vst [vmem:[%s4 + $0x10] sm:$0xf] %v233
  %266 = vst [vmem:[%s4 + $0x14] sm:$0xf] %v234
  %267 = vst [vmem:[%s4 + $0x18] sm:$0xf] %v235
  %268 = vst [vmem:[%s4 + $0x1c] sm:$0xf] %v236
  %269 = vst [vmem:[%s4 + $0x20] sm:$0xf] %v237
  %270 = vst [vmem:[%s4 + $0x24] sm:$0xf] %v238
  %271 = vst [vmem:[%s4 + $0x28] sm:$0xf] %v239
  %272 = vst [vmem:[%s4 + $0x2c] sm:$0xf] %v240
  %273 = vst [vmem:[%s4 + $0x30] sm:$0xf] %v241
  %274 = vst [vmem:[%s4 + $0x34] sm:$0xf] %v242
  %275 = vst [vmem:[%s4 + $0x38] sm:$0xf] %v243
  %276 = vst [vmem:[%s4 + $0x3c] sm:$0xf] %v244
  %v277 = vld [vmem:[%s2] sm:$0xff]
  %v278 = vld [vmem:[%s3] sm:$0xff]
  %279 = vmatprep.subr.mxu0 0.0
  %280 = vmatpush1.xpose.msra.mxu0 %v194
  %281 = vmatprep.subr.mxu0 0.0
  %282 = vmatpush1.xpose.msra.mxu0 %v189
  %283 = vmatprep.subr.mxu0 0.0
  %284 = vmatpush1.xpose.msra.mxu0 %v184
  %285 = vmatprep.subr.mxu0 0.0
  %286 = vmatpush1.xpose.msra.mxu0 %v179
  %287 = vmatprep.subr.mxu0 0.0
  %288 = vmatpush1.xpose.msra.mxu0 %v174
  %289 = vmatprep.subr.mxu0 0.0
  %290 = vmatpush1.xpose.msra.mxu0 %v169
  %291 = vmatprep.subr.mxu0 0.0
  %292 = vmatpush1.xpose.msra.mxu0 %v164
  %293 = vmatprep.subr.mxu0 0.0
  %294 = vmatpush1.xpose.msra.mxu0 %v159
  %295 = vmatprep.subr.mxu0 0.0
  %296 = vmatpush1.xpose.msra.mxu0 %v154
  %297 = vmatprep.subr.mxu0 0.0
  %298 = vmatpush1.xpose.msra.mxu0 %v149
  %299 = vmatprep.subr.mxu0 0.0
  %300 = vmatpush1.xpose.msra.mxu0 %v144
  %301 = vmatprep.subr.mxu0 0.0
  %302 = vmatpush1.xpose.msra.mxu0 %v139
  %303 = vmatprep.subr.mxu0 0.0
  %304 = vmatpush1.xpose.msra.mxu0 %v134
  %305 = vmatprep.subr.mxu0 0.0
  %306 = vmatpush1.xpose.msra.mxu0 %v129
  %307 = vmatprep.subr.mxu0 0.0
  %308 = vmatpush1.xpose.msra.mxu0 %v124
  %309 = vmatprep.subr.mxu0 0.0
  %310 = vmatpush1.xpose.msra.mxu0 %v119
  %311 = vmatprep.subr.mxu0 0.0
  %312 = vmatpush2.xpose.msra.mxu0 0.0
  %313 = vmatprep.subr.mxu0 0.0
  %314 = vmatpush2.xpose.msra.mxu0 0.0
  %315 = vmatprep.subr.mxu0 0.0
  %316 = vmatpush2.xpose.msra.mxu0 0.0
  %317 = vmatprep.subr.mxu0 0.0
  %318 = vmatpush2.xpose.msra.mxu0 0.0
  %319 = vmatprep.subr.mxu0 0.0
  %320 = vmatpush2.xpose.msra.mxu0 0.0
  %321 = vmatprep.subr.mxu0 0.0
  %322 = vmatpush2.xpose.msra.mxu0 0.0
  %323 = vmatprep.subr.mxu0 0.0
  %324 = vmatpush2.xpose.msra.mxu0 0.0
  %325 = vmatprep.subr.mxu0 0.0
  %326 = vmatpush2.xpose.msra.mxu0 0.0
  %327 = vmatprep.subr.mxu0 0.0
  %328 = vmatpush2.xpose.msra.mxu0 0.0
  %329 = vmatprep.subr.mxu0 0.0
  %330 = vmatpush2.xpose.msra.mxu0 0.0
  %331 = vmatprep.subr.mxu0 0.0
  %332 = vmatpush2.xpose.msra.mxu0 0.0
  %333 = vmatprep.subr.mxu0 0.0
  %334 = vmatpush2.xpose.msra.mxu0 0.0
  %335 = vmatprep.subr.mxu0 0.0
  %336 = vmatpush2.xpose.msra.mxu0 0.0
  %337 = vmatprep.subr.mxu0 0.0
  %338 = vmatpush2.xpose.msra.mxu0 0.0
  %339 = vmatprep.subr.mxu0 0.0
  %340 = vmatpush2.xpose.msra.mxu0 0.0
  %341 = vmatprep.subr.mxu0 0.0
  %342 = vmatpush2.xpose.msra.mxu0 0.0
  %343 = vmatprep.mubr.f32.mxu0 0.0
  %344 = vmatmul.mubr.f32.gmra.mxu0 %v277
  %v345 = vpop.f32.mrf.mxu0
  %v346 = vadd.f32 0.0, %v345
  %v347 = vpop.f32.mrf.mxu0
  %348 = vdwg.mxu0
  %349 = vst [vmem:[%s5] sm:$0xff] %v346
  %350 = vmatprep.subr.mxu0 0.0
  %351 = vmatpush1.xpose.msra.mxu0 0.0
  %352 = vmatprep.subr.mxu0 0.0
  %353 = vmatpush1.xpose.msra.mxu0 0.0
  %354 = vmatprep.subr.mxu0 0.0
  %355 = vmatpush1.xpose.msra.mxu0 0.0
  %356 = vmatprep.subr.mxu0 0.0
  %357 = vmatpush1.xpose.msra.mxu0 0.0
  %358 = vmatprep.subr.mxu0 0.0
  %359 = vmatpush1.xpose.msra.mxu0 0.0
  %360 = vmatprep.subr.mxu0 0.0
  %361 = vmatpush1.xpose.msra.mxu0 0.0
  %362 = vmatprep.subr.mxu0 0.0
  %363 = vmatpush1.xpose.msra.mxu0 0.0
  %364 = vmatprep.subr.mxu0 0.0
  %365 = vmatpush1.xpose.msra.mxu0 0.0
  %366 = vmatprep.subr.mxu0 0.0
  %367 = vmatpush1.xpose.msra.mxu0 0.0
  %368 = vmatprep.subr.mxu0 0.0
  %369 = vmatpush1.xpose.msra.mxu0 0.0
  %370 = vmatprep.subr.mxu0 0.0
  %371 = vmatpush1.xpose.msra.mxu0 0.0
  %372 = vmatprep.subr.mxu0 0.0
  %373 = vmatpush1.xpose.msra.mxu0 0.0
  %374 = vmatprep.subr.mxu0 0.0
  %375 = vmatpush1.xpose.msra.mxu0 0.0
  %376 = vmatprep.subr.mxu0 0.0
  %377 = vmatpush1.xpose.msra.mxu0 0.0
  %378 = vmatprep.subr.mxu0 0.0
  %379 = vmatpush1.xpose.msra.mxu0 0.0
  %380 = vmatprep.subr.mxu0 0.0
  %381 = vmatpush1.xpose.msra.mxu0 %v278
  %382 = vmatprep.subr.mxu0 0.0
  %383 = vmatpush2.xpose.msra.mxu0 0.0
  %384 = vmatprep.subr.mxu0 0.0
  %385 = vmatpush2.xpose.msra.mxu0 0.0
  %386 = vmatprep.subr.mxu0 0.0
  %387 = vmatpush2.xpose.msra.mxu0 0.0
  %388 = vmatprep.subr.mxu0 0.0
  %389 = vmatpush2.xpose.msra.mxu0 0.0
  %390 = vmatprep.subr.mxu0 0.0
  %391 = vmatpush2.xpose.msra.mxu0 0.0
  %392 = vmatprep.subr.mxu0 0.0
  %393 = vmatpush2.xpose.msra.mxu0 0.0
  %394 = vmatprep.subr.mxu0 0.0
  %395 = vmatpush2.xpose.msra.mxu0 0.0
  %396 = vmatprep.subr.mxu0 0.0
  %397 = vmatpush2.xpose.msra.mxu0 0.0
  %398 = vmatprep.subr.mxu0 0.0
  %399 = vmatpush2.xpose.msra.mxu0 0.0
  %400 = vmatprep.subr.mxu0 0.0
  %401 = vmatpush2.xpose.msra.mxu0 0.0
  %402 = vmatprep.subr.mxu0 0.0
  %403 = vmatpush2.xpose.msra.mxu0 0.0
  %404 = vmatprep.subr.mxu0 0.0
  %405 = vmatpush2.xpose.msra.mxu0 0.0
  %406 = vmatprep.subr.mxu0 0.0
  %407 = vmatpush2.xpose.msra.mxu0 0.0
  %408 = vmatprep.subr.mxu0 0.0
  %409 = vmatpush2.xpose.msra.mxu0 0.0
  %410 = vmatprep.subr.mxu0 0.0
  %411 = vmatpush2.xpose.msra.mxu0 0.0
  %412 = vmatprep.subr.mxu0 0.0
  %413 = vmatpush2.xpose.msra.mxu0 0.0
  %414 = vmatprep.mubr.f32.mxu0 0.0
  %415 = vmatmul.mubr.f32.gmra.mxu0 %v119
  %v416 = vpop.f32.mrf.mxu0
  %v417 = vadd.f32 0.0, %v416
  %v418 = vpop.f32.mrf.mxu0
  %419 = vmatprep.mubr.f32.mxu0 0.0
  %420 = vmatmul.mubr.f32.gmra.mxu0 %v124
  %v421 = vpop.f32.mrf.mxu0
  %v422 = vadd.f32 0.0, %v421
  %v423 = vpop.f32.mrf.mxu0
  %424 = vmatprep.mubr.f32.mxu0 0.0
  %425 = vmatmul.mubr.f32.gmra.mxu0 %v129
  %v426 = vpop.f32.mrf.mxu0
  %v427 = vadd.f32 0.0, %v426
  %v428 = vpop.f32.mrf.mxu0
  %429 = vmatprep.mubr.f32.mxu0 0.0
  %430 = vmatmul.mubr.f32.gmra.mxu0 %v134
  %v431 = vpop.f32.mrf.mxu0
  %v432 = vadd.f32 0.0, %v431
  %v433 = vpop.f32.mrf.mxu0
  %434 = vmatprep.mubr.f32.mxu0 0.0
  %435 = vmatmul.mubr.f32.gmra.mxu0 %v139
  %v436 = vpop.f32.mrf.mxu0
  %v437 = vadd.f32 0.0, %v436
  %v438 = vpop.f32.mrf.mxu0
  %439 = vmatprep.mubr.f32.mxu0 0.0
  %440 = vmatmul.mubr.f32.gmra.mxu0 %v144
  %v441 = vpop.f32.mrf.mxu0
  %v442 = vadd.f32 0.0, %v441
  %v443 = vpop.f32.mrf.mxu0
  %444 = vmatprep.mubr.f32.mxu0 0.0
  %445 = vmatmul.mubr.f32.gmra.mxu0 %v149
  %v446 = vpop.f32.mrf.mxu0
  %v447 = vadd.f32 0.0, %v446
  %v448 = vpop.f32.mrf.mxu0
  %449 = vmatprep.mubr.f32.mxu0 0.0
  %450 = vmatmul.mubr.f32.gmra.mxu0 %v154
  %v451 = vpop.f32.mrf.mxu0
  %v452 = vadd.f32 0.0, %v451
  %v453 = vpop.f32.mrf.mxu0
  %454 = vmatprep.mubr.f32.mxu0 0.0
  %455 = vmatmul.mubr.f32.gmra.mxu0 %v159
  %v456 = vpop.f32.mrf.mxu0
  %v457 = vadd.f32 0.0, %v456
  %v458 = vpop.f32.mrf.mxu0
  %459 = vmatprep.mubr.f32.mxu0 0.0
  %460 = vmatmul.mubr.f32.gmra.mxu0 %v164
  %v461 = vpop.f32.mrf.mxu0
  %v462 = vadd.f32 0.0, %v461
  %v463 = vpop.f32.mrf.mxu0
  %464 = vmatprep.mubr.f32.mxu0 0.0
  %465 = vmatmul.mubr.f32.gmra.mxu0 %v169
  %v466 = vpop.f32.mrf.mxu0
  %v467 = vadd.f32 0.0, %v466
  %v468 = vpop.f32.mrf.mxu0
  %469 = vmatprep.mubr.f32.mxu0 0.0
  %470 = vmatmul.mubr.f32.gmra.mxu0 %v174
  %v471 = vpop.f32.mrf.mxu0
  %v472 = vadd.f32 0.0, %v471
  %v473 = vpop.f32.mrf.mxu0
  %474 = vmatprep.mubr.f32.mxu0 0.0
  %475 = vmatmul.mubr.f32.gmra.mxu0 %v179
  %v476 = vpop.f32.mrf.mxu0
  %v477 = vadd.f32 0.0, %v476
  %v478 = vpop.f32.mrf.mxu0
  %479 = vmatprep.mubr.f32.mxu0 0.0
  %480 = vmatmul.mubr.f32.gmra.mxu0 %v184
  %v481 = vpop.f32.mrf.mxu0
  %v482 = vadd.f32 0.0, %v481
  %v483 = vpop.f32.mrf.mxu0
  %484 = vmatprep.mubr.f32.mxu0 0.0
  %485 = vmatmul.mubr.f32.gmra.mxu0 %v189
  %v486 = vpop.f32.mrf.mxu0
  %v487 = vadd.f32 0.0, %v486
  %v488 = vpop.f32.mrf.mxu0
  %489 = vmatprep.mubr.f32.mxu0 0.0
  %490 = vmatmul.mubr.f32.gmra.mxu0 %v194
  %v491 = vpop.f32.mrf.mxu0
  %v492 = vadd.f32 0.0, %v491
  %v493 = vpop.f32.mrf.mxu0
  %494 = vdwg.mxu0
  %vm495 = vcmask 64512
  %496 = vst.msk [vmem:[%s6] sm:$0xff] %vm495, %v417
  %497 = vst.msk [vmem:[%s6 + $0x8] sm:$0xff] %vm495, %v422
  %498 = vst.msk [vmem:[%s6 + $0x10] sm:$0xff] %vm495, %v427
  %499 = vst.msk [vmem:[%s6 + $0x18] sm:$0xff] %vm495, %v432
  %500 = vst.msk [vmem:[%s6 + $0x20] sm:$0xff] %vm495, %v437
  %501 = vst.msk [vmem:[%s6 + $0x28] sm:$0xff] %vm495, %v442
  %502 = vst.msk [vmem:[%s6 + $0x30] sm:$0xff] %vm495, %v447
  %503 = vst.msk [vmem:[%s6 + $0x38] sm:$0xff] %vm495, %v452
  %504 = vst.msk [vmem:[%s6 + $0x40] sm:$0xff] %vm495, %v457
  %505 = vst.msk [vmem:[%s6 + $0x48] sm:$0xff] %vm495, %v462
  %506 = vst.msk [vmem:[%s6 + $0x50] sm:$0xff] %vm495, %v467
  %507 = vst.msk [vmem:[%s6 + $0x58] sm:$0xff] %vm495, %v472
  %508 = vst.msk [vmem:[%s6 + $0x60] sm:$0xff] %vm495, %v477
  %509 = vst.msk [vmem:[%s6 + $0x68] sm:$0xff] %vm495, %v482
  %510 = vst.msk [vmem:[%s6 + $0x70] sm:$0xff] %vm495, %v487
  %511 = vst.msk [vmem:[%s6 + $0x78] sm:$0xff] %vm495, %v492
  // Predicated region
  $region18: #{gat_forward.4} parent=0 // pred_check
    _
  $region19: #{gat_forward.4} parent=0 // pred_check_branch
    %513 = sbr.rel (0) target = $region21
  $region20: #{gat_forward.4} parent=0 // pred_region
    _
  $region21: #{gat_forward.4} parent=0 // pred_fallthru
    _
  // Predicated region
  $region22: #{gat_forward.4} parent=0 // pred_check
    _
  $region23: #{gat_forward.4} parent=0 // pred_check_branch
    %515 = sbr.rel (0) target = $region25
  $region24: #{gat_forward.4} parent=0 // pred_region
    _
  $region25: #{gat_forward.4} parent=0 // pred_fallthru
    _
  // Predicated region
  $region26: #{gat_forward.4} parent=0 // pred_check
    _
  $region27: #{gat_forward.4} parent=0 // pred_check_branch
    %517 = sbr.rel (0) target = $region29
  $region28: #{gat_forward.4} parent=0 // pred_region
    _
  $region29: #{gat_forward.4} parent=0 // pred_fallthru
    _
  // Predicated region
  $region30: #{gat_forward.4} parent=0 // pred_check
    _
  $region31: #{gat_forward.4} parent=0 // pred_check_branch
    %519 = sbr.rel (0) target = $region33
  $region32: #{gat_forward.4} parent=0 // pred_region
    _
  $region33: #{gat_forward.4} parent=0 // pred_fallthru
    _
  // Predicated region
  $region34: #{gat_forward.4} parent=0 // pred_check
    _
  $region35: #{gat_forward.4} parent=0 // pred_check_branch
    %521 = sbr.rel (0) target = $region37
  $region36: #{gat_forward.4} parent=0 // pred_region
    _
  $region37: #{gat_forward.4} parent=0 // pred_fallthru
    _
  // Predicated region
  $region38: #{gat_forward.4} parent=0 // pred_check
    _
  $region39: #{gat_forward.4} parent=0 // pred_check_branch
    %523 = sbr.rel (0) target = $region41
  $region40: #{gat_forward.4} parent=0 // pred_region
    _
  $region41: #{gat_forward.4} parent=0 // pred_fallthru
    _

// kernel: gat_forward.6
$region0: #{gat_forward.6}
  #allocation0 [shape = 'u32[]', space=smem, size = 0x4, offset = 0x4, fixed_abs, tag = 'smem constant byte address 0x4 - core index']
  #allocation1 [shape = 'u32[144,128]{1,0:T(1,128)}', space=vmem, size = 0x12000, scoped, tag = 'internal scratch']
  %s0 = inlined_call_operand.vmem [shape: bf16[128,128], index: 0, kind: input, shape index: {}]
  %s1 = inlined_call_operand.vmem [shape: f32[128,128], index: 1, kind: input, shape index: {}]
  %s2 = inlined_call_operand.vmem [shape: f32[8,128], index: 2, kind: input, shape index: {}]
  %s3 = inlined_call_operand.vmem [shape: f32[8,128], index: 3, kind: input, shape index: {}]
  %s4 = inlined_call_operand.vmem [shape: bf16[128,128], index: 4, kind: output, shape index: {0}]
  %s5 = inlined_call_operand.vmem [shape: f32[8,128], index: 5, kind: output, shape index: {1}]
  %s6 = inlined_call_operand.vmem [shape: f32[128,8], index: 6, kind: output, shape index: {2}]
  %7 = xla_tuple %s4, %s5, %s6
  %s8 = sld [smem:[#allocation0]]
  $region42: #{gat_forward.6} parent=0
    _
  %s10 = ssub.s32 1, %s8
  %s11 = scalar_select 0, %s10, %s8
  // Predicated region
  $region2: #{gat_forward.6} parent=0 // pred_check
    _
  $region3: #{gat_forward.6} parent=0 // pred_check_branch
    %13 = sbr.rel (0) target = $region5
  $region4: #{gat_forward.6} parent=0 // pred_region
    _
  $region5: #{gat_forward.6} parent=0 // pred_fallthru
    _
  // Predicated region
  $region6: #{gat_forward.6} parent=0 // pred_check
    _
  $region7: #{gat_forward.6} parent=0 // pred_check_branch
    %15 = sbr.rel (0) target = $region9
  $region8: #{gat_forward.6} parent=0 // pred_region
    _
  $region9: #{gat_forward.6} parent=0 // pred_fallthru
    _
  // Predicated region
  $region10: #{gat_forward.6} parent=0 // pred_check
    _
  $region11: #{gat_forward.6} parent=0 // pred_check_branch
    %17 = sbr.rel (0) target = $region13
  $region12: #{gat_forward.6} parent=0 // pred_region
    _
  $region13: #{gat_forward.6} parent=0 // pred_fallthru
    _
  // Predicated region
  $region14: #{gat_forward.6} parent=0 // pred_check
    _
  $region15: #{gat_forward.6} parent=0 // pred_check_branch
    %19 = sbr.rel (0) target = $region17
  $region16: #{gat_forward.6} parent=0 // pred_region
    _
  $region17: #{gat_forward.6} parent=0 // pred_fallthru
    _
  %v20 = vld [vmem:[%s0] sm:$0xf]
  %v21 = vld [vmem:[%s0 + $0x4] sm:$0xf]
  %v22 = vld [vmem:[%s0 + $0x8] sm:$0xf]
  %v23 = vld [vmem:[%s0 + $0xc] sm:$0xf]
  %v24 = vld [vmem:[%s0 + $0x10] sm:$0xf]
  %v25 = vld [vmem:[%s0 + $0x14] sm:$0xf]
  %v26 = vld [vmem:[%s0 + $0x18] sm:$0xf]
  %v27 = vld [vmem:[%s0 + $0x1c] sm:$0xf]
  %v28 = vld [vmem:[%s0 + $0x20] sm:$0xf]
  %v29 = vld [vmem:[%s0 + $0x24] sm:$0xf]
  %v30 = vld [vmem:[%s0 + $0x28] sm:$0xf]
  %v31 = vld [vmem:[%s0 + $0x2c] sm:$0xf]
  %v32 = vld [vmem:[%s0 + $0x30] sm:$0xf]
  %v33 = vld [vmem:[%s0 + $0x34] sm:$0xf]
  %v34 = vld [vmem:[%s0 + $0x38] sm:$0xf]
  %v35 = vld [vmem:[%s0 + $0x3c] sm:$0xf]
  %v36 = vunpack.c.l.bf16 %v20
  %v37 = vunpack.c.l.bf16 %v21
  %v38 = vunpack.c.l.bf16 %v22
  %v39 = vunpack.c.l.bf16 %v23
  %v40 = vunpack.c.l.bf16 %v24
  %v41 = vunpack.c.l.bf16 %v25
  %v42 = vunpack.c.l.bf16 %v26
  %v43 = vunpack.c.l.bf16 %v27
  %v44 = vunpack.c.l.bf16 %v28
  %v45 = vunpack.c.l.bf16 %v29
  %v46 = vunpack.c.l.bf16 %v30
  %v47 = vunpack.c.l.bf16 %v31
  %v48 = vunpack.c.l.bf16 %v32
  %v49 = vunpack.c.l.bf16 %v33
  %v50 = vunpack.c.l.bf16 %v34
  %v51 = vunpack.c.l.bf16 %v35
  %v52 = vld [vmem:[%s1] sm:$0xff]
  %v53 = vld [vmem:[%s1 + $0x8] sm:$0xff]
  %v54 = vld [vmem:[%s1 + $0x10] sm:$0xff]
  %v55 = vld [vmem:[%s1 + $0x18] sm:$0xff]
  %v56 = vld [vmem:[%s1 + $0x20] sm:$0xff]
  %v57 = vld [vmem:[%s1 + $0x28] sm:$0xff]
  %v58 = vld [vmem:[%s1 + $0x30] sm:$0xff]
  %v59 = vld [vmem:[%s1 + $0x38] sm:$0xff]
  %v60 = vld [vmem:[%s1 + $0x40] sm:$0xff]
  %v61 = vld [vmem:[%s1 + $0x48] sm:$0xff]
  %v62 = vld [vmem:[%s1 + $0x50] sm:$0xff]
  %v63 = vld [vmem:[%s1 + $0x58] sm:$0xff]
  %v64 = vld [vmem:[%s1 + $0x60] sm:$0xff]
  %v65 = vld [vmem:[%s1 + $0x68] sm:$0xff]
  %v66 = vld [vmem:[%s1 + $0x70] sm:$0xff]
  %v67 = vld [vmem:[%s1 + $0x78] sm:$0xff]
  %68 = vmatprep.subr.mxu0 0.0
  %69 = vmatpush1.msra.mxu0 %v67
  %70 = vmatprep.subr.mxu0 0.0
  %71 = vmatpush1.msra.mxu0 %v66
  %72 = vmatprep.subr.mxu0 0.0
  %73 = vmatpush1.msra.mxu0 %v65
  %74 = vmatprep.subr.mxu0 0.0
  %75 = vmatpush1.msra.mxu0 %v64
  %76 = vmatprep.subr.mxu0 0.0
  %77 = vmatpush1.msra.mxu0 %v63
  %78 = vmatprep.subr.mxu0 0.0
  %79 = vmatpush1.msra.mxu0 %v62
  %80 = vmatprep.subr.mxu0 0.0
  %81 = vmatpush1.msra.mxu0 %v61
  %82 = vmatprep.subr.mxu0 0.0
  %83 = vmatpush1.msra.mxu0 %v60
  %84 = vmatprep.subr.mxu0 0.0
  %85 = vmatpush1.msra.mxu0 %v59
  %86 = vmatprep.subr.mxu0 0.0
  %87 = vmatpush1.msra.mxu0 %v58
  %88 = vmatprep.subr.mxu0 0.0
  %89 = vmatpush1.msra.mxu0 %v57
  %90 = vmatprep.subr.mxu0 0.0
  %91 = vmatpush1.msra.mxu0 %v56
  %92 = vmatprep.subr.mxu0 0.0
  %93 = vmatpush1.msra.mxu0 %v55
  %94 = vmatprep.subr.mxu0 0.0
  %95 = vmatpush1.msra.mxu0 %v54
  %96 = vmatprep.subr.mxu0 0.0
  %97 = vmatpush1.msra.mxu0 %v53
  %98 = vmatprep.subr.mxu0 0.0
  %99 = vmatpush1.msra.mxu0 %v52
  %100 = vmatprep.subr.mxu0 0.0
  %101 = vmatpush2.msra.mxu0 0.0
  %102 = vmatprep.subr.mxu0 0.0
  %103 = vmatpush2.msra.mxu0 0.0
  %104 = vmatprep.subr.mxu0 0.0
  %105 = vmatpush2.msra.mxu0 0.0
  %106 = vmatprep.subr.mxu0 0.0
  %107 = vmatpush2.msra.mxu0 0.0
  %108 = vmatprep.subr.mxu0 0.0
  %109 = vmatpush2.msra.mxu0 0.0
  %110 = vmatprep.subr.mxu0 0.0
  %111 = vmatpush2.msra.mxu0 0.0
  %112 = vmatprep.subr.mxu0 0.0
  %113 = vmatpush2.msra.mxu0 0.0
  %114 = vmatprep.subr.mxu0 0.0
  %115 = vmatpush2.msra.mxu0 0.0
  %116 = vmatprep.subr.mxu0 0.0
  %117 = vmatpush2.msra.mxu0 0.0
  %118 = vmatprep.subr.mxu0 0.0
  %119 = vmatpush2.msra.mxu0 0.0
  %120 = vmatprep.subr.mxu0 0.0
  %121 = vmatpush2.msra.mxu0 0.0
  %122 = vmatprep.subr.mxu0 0.0
  %123 = vmatpush2.msra.mxu0 0.0
  %124 = vmatprep.subr.mxu0 0.0
  %125 = vmatpush2.msra.mxu0 0.0
  %126 = vmatprep.subr.mxu0 0.0
  %127 = vmatpush2.msra.mxu0 0.0
  %128 = vmatprep.subr.mxu0 0.0
  %129 = vmatpush2.msra.mxu0 0.0
  %130 = vmatprep.subr.mxu0 0.0
  %131 = vmatpush2.msra.mxu0 0.0
  %132 = vmatprep.mubr.f32.mxu0 0.0
  %133 = vmatmul.mubr.f32.gmra.mxu0 %v36
  %v134 = vpop.f32.mrf.mxu0
  %v135 = vadd.f32 0.0, %v134
  %v136 = vpop.f32.mrf.mxu0
  %137 = vmatprep.mubr.f32.mxu0 0.0
  %138 = vmatmul.mubr.f32.gmra.mxu0 %v37
  %v139 = vpop.f32.mrf.mxu0
  %v140 = vadd.f32 0.0, %v139
  %v141 = vpop.f32.mrf.mxu0
  %142 = vmatprep.mubr.f32.mxu0 0.0
  %143 = vmatmul.mubr.f32.gmra.mxu0 %v38
  %v144 = vpop.f32.mrf.mxu0
  %v145 = vadd.f32 0.0, %v144
  %v146 = vpop.f32.mrf.mxu0
  %147 = vmatprep.mubr.f32.mxu0 0.0
  %148 = vmatmul.mubr.f32.gmra.mxu0 %v39
  %v149 = vpop.f32.mrf.mxu0
  %v150 = vadd.f32 0.0, %v149
  %v151 = vpop.f32.mrf.mxu0
  %152 = vmatprep.mubr.f32.mxu0 0.0
  %153 = vmatmul.mubr.f32.gmra.mxu0 %v40
  %v154 = vpop.f32.mrf.mxu0
  %v155 = vadd.f32 0.0, %v154
  %v156 = vpop.f32.mrf.mxu0
  %157 = vmatprep.mubr.f32.mxu0 0.0
  %158 = vmatmul.mubr.f32.gmra.mxu0 %v41
  %v159 = vpop.f32.mrf.mxu0
  %v160 = vadd.f32 0.0, %v159
  %v161 = vpop.f32.mrf.mxu0
  %162 = vmatprep.mubr.f32.mxu0 0.0
  %163 = vmatmul.mubr.f32.gmra.mxu0 %v42
  %v164 = vpop.f32.mrf.mxu0
  %v165 = vadd.f32 0.0, %v164
  %v166 = vpop.f32.mrf.mxu0
  %167 = vmatprep.mubr.f32.mxu0 0.0
  %168 = vmatmul.mubr.f32.gmra.mxu0 %v43
  %v169 = vpop.f32.mrf.mxu0
  %v170 = vadd.f32 0.0, %v169
  %v171 = vpop.f32.mrf.mxu0
  %172 = vmatprep.mubr.f32.mxu0 0.0
  %173 = vmatmul.mubr.f32.gmra.mxu0 %v44
  %v174 = vpop.f32.mrf.mxu0
  %v175 = vadd.f32 0.0, %v174
  %v176 = vpop.f32.mrf.mxu0
  %177 = vmatprep.mubr.f32.mxu0 0.0
  %178 = vmatmul.mubr.f32.gmra.mxu0 %v45
  %v179 = vpop.f32.mrf.mxu0
  %v180 = vadd.f32 0.0, %v179
  %v181 = vpop.f32.mrf.mxu0
  %182 = vmatprep.mubr.f32.mxu0 0.0
  %183 = vmatmul.mubr.f32.gmra.mxu0 %v46
  %v184 = vpop.f32.mrf.mxu0
  %v185 = vadd.f32 0.0, %v184
  %v186 = vpop.f32.mrf.mxu0
  %187 = vmatprep.mubr.f32.mxu0 0.0
  %188 = vmatmul.mubr.f32.gmra.mxu0 %v47
  %v189 = vpop.f32.mrf.mxu0
  %v190 = vadd.f32 0.0, %v189
  %v191 = vpop.f32.mrf.mxu0
  %192 = vmatprep.mubr.f32.mxu0 0.0
  %193 = vmatmul.mubr.f32.gmra.mxu0 %v48
  %v194 = vpop.f32.mrf.mxu0
  %v195 = vadd.f32 0.0, %v194
  %v196 = vpop.f32.mrf.mxu0
  %197 = vmatprep.mubr.f32.mxu0 0.0
  %198 = vmatmul.mubr.f32.gmra.mxu0 %v49
  %v199 = vpop.f32.mrf.mxu0
  %v200 = vadd.f32 0.0, %v199
  %v201 = vpop.f32.mrf.mxu0
  %202 = vmatprep.mubr.f32.mxu0 0.0
  %203 = vmatmul.mubr.f32.gmra.mxu0 %v50
  %v204 = vpop.f32.mrf.mxu0
  %v205 = vadd.f32 0.0, %v204
  %v206 = vpop.f32.mrf.mxu0
  %207 = vmatprep.mubr.f32.mxu0 0.0
  %208 = vmatmul.mubr.f32.gmra.mxu0 %v51
  %v209 = vpop.f32.mrf.mxu0
  %v210 = vadd.f32 0.0, %v209
  %v211 = vpop.f32.mrf.mxu0
  %212 = vdwg.mxu0
  %v213 = vpack.c.bf16 %v140, %v135
  %v214 = vpack.c.bf16 %v150, %v145
  %v215 = vpack.c.bf16 %v160, %v155
  %v216 = vpack.c.bf16 %v170, %v165
  %v217 = vpack.c.bf16 %v180, %v175
  %v218 = vpack.c.bf16 %v190, %v185
  %v219 = vpack.c.bf16 %v200, %v195
  %v220 = vpack.c.bf16 %v210, %v205
  %v229 = vunpack.c.l.b16 %v213
  %v230 = vunpack.c.h.b16 %v213
  %v231 = vunpack.c.l.b16 %v214
  %v232 = vunpack.c.h.b16 %v214
  %v233 = vunpack.c.l.b16 %v215
  %v234 = vunpack.c.h.b16 %v215
  %v235 = vunpack.c.l.b16 %v216
  %v236 = vunpack.c.h.b16 %v216
  %v237 = vunpack.c.l.b16 %v217
  %v238 = vunpack.c.h.b16 %v217
  %v239 = vunpack.c.l.b16 %v218
  %v240 = vunpack.c.h.b16 %v218
  %v241 = vunpack.c.l.b16 %v219
  %v242 = vunpack.c.h.b16 %v219
  %v243 = vunpack.c.l.b16 %v220
  %v244 = vunpack.c.h.b16 %v220
  %v245 = vpack.c.b16 %v229, %v229
  %v246 = vpack.c.b16 %v230, %v230
  %v247 = vpack.c.b16 %v231, %v231
  %v248 = vpack.c.b16 %v232, %v232
  %v249 = vpack.c.b16 %v233, %v233
  %v250 = vpack.c.b16 %v234, %v234
  %v251 = vpack.c.b16 %v235, %v235
  %v252 = vpack.c.b16 %v236, %v236
  %v253 = vpack.c.b16 %v237, %v237
  %v254 = vpack.c.b16 %v238, %v238
  %v255 = vpack.c.b16 %v239, %v239
  %v256 = vpack.c.b16 %v240, %v240
  %v257 = vpack.c.b16 %v241, %v241
  %v258 = vpack.c.b16 %v242, %v242
  %v259 = vpack.c.b16 %v243, %v243
  %v260 = vpack.c.b16 %v244, %v244
  %277 = vst [vmem:[%s4] sm:$0xf] %v245
  %278 = vst [vmem:[%s4 + $0x4] sm:$0xf] %v246
  %279 = vst [vmem:[%s4 + $0x8] sm:$0xf] %v247
  %280 = vst [vmem:[%s4 + $0xc] sm:$0xf] %v248
  %281 = vst [vmem:[%s4 + $0x10] sm:$0xf] %v249
  %282 = vst [vmem:[%s4 + $0x14] sm:$0xf] %v250
  %283 = vst [vmem:[%s4 + $0x18] sm:$0xf] %v251
  %284 = vst [vmem:[%s4 + $0x1c] sm:$0xf] %v252
  %285 = vst [vmem:[%s4 + $0x20] sm:$0xf] %v253
  %286 = vst [vmem:[%s4 + $0x24] sm:$0xf] %v254
  %287 = vst [vmem:[%s4 + $0x28] sm:$0xf] %v255
  %288 = vst [vmem:[%s4 + $0x2c] sm:$0xf] %v256
  %289 = vst [vmem:[%s4 + $0x30] sm:$0xf] %v257
  %290 = vst [vmem:[%s4 + $0x34] sm:$0xf] %v258
  %291 = vst [vmem:[%s4 + $0x38] sm:$0xf] %v259
  %292 = vst [vmem:[%s4 + $0x3c] sm:$0xf] %v260
  %v293 = vld [vmem:[%s2] sm:$0xff]
  %v294 = vld [vmem:[%s3] sm:$0xff]
  %295 = vmatprep.subr.mxu0 0.0
  %296 = vmatpush1.xpose.msra.mxu0 %v210
  %297 = vmatprep.subr.mxu0 0.0
  %298 = vmatpush1.xpose.msra.mxu0 %v205
  %299 = vmatprep.subr.mxu0 0.0
  %300 = vmatpush1.xpose.msra.mxu0 %v200
  %301 = vmatprep.subr.mxu0 0.0
  %302 = vmatpush1.xpose.msra.mxu0 %v195
  %303 = vmatprep.subr.mxu0 0.0
  %304 = vmatpush1.xpose.msra.mxu0 %v190
  %305 = vmatprep.subr.mxu0 0.0
  %306 = vmatpush1.xpose.msra.mxu0 %v185
  %307 = vmatprep.subr.mxu0 0.0
  %308 = vmatpush1.xpose.msra.mxu0 %v180
  %309 = vmatprep.subr.mxu0 0.0
  %310 = vmatpush1.xpose.msra.mxu0 %v175
  %311 = vmatprep.subr.mxu0 0.0
  %312 = vmatpush1.xpose.msra.mxu0 %v170
  %313 = vmatprep.subr.mxu0 0.0
  %314 = vmatpush1.xpose.msra.mxu0 %v165
  %315 = vmatprep.subr.mxu0 0.0
  %316 = vmatpush1.xpose.msra.mxu0 %v160
  %317 = vmatprep.subr.mxu0 0.0
  %318 = vmatpush1.xpose.msra.mxu0 %v155
  %319 = vmatprep.subr.mxu0 0.0
  %320 = vmatpush1.xpose.msra.mxu0 %v150
  %321 = vmatprep.subr.mxu0 0.0
  %322 = vmatpush1.xpose.msra.mxu0 %v145
  %323 = vmatprep.subr.mxu0 0.0
  %324 = vmatpush1.xpose.msra.mxu0 %v140
  %325 = vmatprep.subr.mxu0 0.0
  %326 = vmatpush1.xpose.msra.mxu0 %v135
  %327 = vmatprep.subr.mxu0 0.0
  %328 = vmatpush2.xpose.msra.mxu0 0.0
  %329 = vmatprep.subr.mxu0 0.0
  %330 = vmatpush2.xpose.msra.mxu0 0.0
  %331 = vmatprep.subr.mxu0 0.0
  %332 = vmatpush2.xpose.msra.mxu0 0.0
  %333 = vmatprep.subr.mxu0 0.0
  %334 = vmatpush2.xpose.msra.mxu0 0.0
  %335 = vmatprep.subr.mxu0 0.0
  %336 = vmatpush2.xpose.msra.mxu0 0.0
  %337 = vmatprep.subr.mxu0 0.0
  %338 = vmatpush2.xpose.msra.mxu0 0.0
  %339 = vmatprep.subr.mxu0 0.0
  %340 = vmatpush2.xpose.msra.mxu0 0.0
  %341 = vmatprep.subr.mxu0 0.0
  %342 = vmatpush2.xpose.msra.mxu0 0.0
  %343 = vmatprep.subr.mxu0 0.0
  %344 = vmatpush2.xpose.msra.mxu0 0.0
  %345 = vmatprep.subr.mxu0 0.0
  %346 = vmatpush2.xpose.msra.mxu0 0.0
  %347 = vmatprep.subr.mxu0 0.0
  %348 = vmatpush2.xpose.msra.mxu0 0.0
  %349 = vmatprep.subr.mxu0 0.0
  %350 = vmatpush2.xpose.msra.mxu0 0.0
  %351 = vmatprep.subr.mxu0 0.0
  %352 = vmatpush2.xpose.msra.mxu0 0.0
  %353 = vmatprep.subr.mxu0 0.0
  %354 = vmatpush2.xpose.msra.mxu0 0.0
  %355 = vmatprep.subr.mxu0 0.0
  %356 = vmatpush2.xpose.msra.mxu0 0.0
  %357 = vmatprep.subr.mxu0 0.0
  %358 = vmatpush2.xpose.msra.mxu0 0.0
  %359 = vmatprep.mubr.f32.mxu0 0.0
  %360 = vmatmul.mubr.f32.gmra.mxu0 %v293
  %v361 = vpop.f32.mrf.mxu0
  %v362 = vadd.f32 0.0, %v361
  %v363 = vpop.f32.mrf.mxu0
  %364 = vdwg.mxu0
  %365 = vst [vmem:[%s5] sm:$0xff] %v362
  %366 = vmatprep.subr.mxu0 0.0
  %367 = vmatpush1.xpose.msra.mxu0 0.0
  %368 = vmatprep.subr.mxu0 0.0
  %369 = vmatpush1.xpose.msra.mxu0 0.0
  %370 = vmatprep.subr.mxu0 0.0
  %371 = vmatpush1.xpose.msra.mxu0 0.0
  %372 = vmatprep.subr.mxu0 0.0
  %373 = vmatpush1.xpose.msra.mxu0 0.0
  %374 = vmatprep.subr.mxu0 0.0
  %375 = vmatpush1.xpose.msra.mxu0 0.0
  %376 = vmatprep.subr.mxu0 0.0
  %377 = vmatpush1.xpose.msra.mxu0 0.0
  %378 = vmatprep.subr.mxu0 0.0
  %379 = vmatpush1.xpose.msra.mxu0 0.0
  %380 = vmatprep.subr.mxu0 0.0
  %381 = vmatpush1.xpose.msra.mxu0 0.0
  %382 = vmatprep.subr.mxu0 0.0
  %383 = vmatpush1.xpose.msra.mxu0 0.0
  %384 = vmatprep.subr.mxu0 0.0
  %385 = vmatpush1.xpose.msra.mxu0 0.0
  %386 = vmatprep.subr.mxu0 0.0
  %387 = vmatpush1.xpose.msra.mxu0 0.0
  %388 = vmatprep.subr.mxu0 0.0
  %389 = vmatpush1.xpose.msra.mxu0 0.0
  %390 = vmatprep.subr.mxu0 0.0
  %391 = vmatpush1.xpose.msra.mxu0 0.0
  %392 = vmatprep.subr.mxu0 0.0
  %393 = vmatpush1.xpose.msra.mxu0 0.0
  %394 = vmatprep.subr.mxu0 0.0
  %395 = vmatpush1.xpose.msra.mxu0 0.0
  %396 = vmatprep.subr.mxu0 0.0
  %397 = vmatpush1.xpose.msra.mxu0 %v294
  %398 = vmatprep.subr.mxu0 0.0
  %399 = vmatpush2.xpose.msra.mxu0 0.0
  %400 = vmatprep.subr.mxu0 0.0
  %401 = vmatpush2.xpose.msra.mxu0 0.0
  %402 = vmatprep.subr.mxu0 0.0
  %403 = vmatpush2.xpose.msra.mxu0 0.0
  %404 = vmatprep.subr.mxu0 0.0
  %405 = vmatpush2.xpose.msra.mxu0 0.0
  %406 = vmatprep.subr.mxu0 0.0
  %407 = vmatpush2.xpose.msra.mxu0 0.0
  %408 = vmatprep.subr.mxu0 0.0
  %409 = vmatpush2.xpose.msra.mxu0 0.0
  %410 = vmatprep.subr.mxu0 0.0
  %411 = vmatpush2.xpose.msra.mxu0 0.0
  %412 = vmatprep.subr.mxu0 0.0
  %413 = vmatpush2.xpose.msra.mxu0 0.0
  %414 = vmatprep.subr.mxu0 0.0
  %415 = vmatpush2.xpose.msra.mxu0 0.0
  %416 = vmatprep.subr.mxu0 0.0
  %417 = vmatpush2.xpose.msra.mxu0 0.0
  %418 = vmatprep.subr.mxu0 0.0
  %419 = vmatpush2.xpose.msra.mxu0 0.0
  %420 = vmatprep.subr.mxu0 0.0
  %421 = vmatpush2.xpose.msra.mxu0 0.0
  %422 = vmatprep.subr.mxu0 0.0
  %423 = vmatpush2.xpose.msra.mxu0 0.0
  %424 = vmatprep.subr.mxu0 0.0
  %425 = vmatpush2.xpose.msra.mxu0 0.0
  %426 = vmatprep.subr.mxu0 0.0
  %427 = vmatpush2.xpose.msra.mxu0 0.0
  %428 = vmatprep.subr.mxu0 0.0
  %429 = vmatpush2.xpose.msra.mxu0 0.0
  %430 = vmatprep.mubr.f32.mxu0 0.0
  %431 = vmatmul.mubr.f32.gmra.mxu0 %v135
  %v432 = vpop.f32.mrf.mxu0
  %v433 = vadd.f32 0.0, %v432
  %v434 = vpop.f32.mrf.mxu0
  %435 = vmatprep.mubr.f32.mxu0 0.0
  %436 = vmatmul.mubr.f32.gmra.mxu0 %v140
  %v437 = vpop.f32.mrf.mxu0
  %v438 = vadd.f32 0.0, %v437
  %v439 = vpop.f32.mrf.mxu0
  %440 = vmatprep.mubr.f32.mxu0 0.0
  %441 = vmatmul.mubr.f32.gmra.mxu0 %v145
  %v442 = vpop.f32.mrf.mxu0
  %v443 = vadd.f32 0.0, %v442
  %v444 = vpop.f32.mrf.mxu0
  %445 = vmatprep.mubr.f32.mxu0 0.0
  %446 = vmatmul.mubr.f32.gmra.mxu0 %v150
  %v447 = vpop.f32.mrf.mxu0
  %v448 = vadd.f32 0.0, %v447
  %v449 = vpop.f32.mrf.mxu0
  %450 = vmatprep.mubr.f32.mxu0 0.0
  %451 = vmatmul.mubr.f32.gmra.mxu0 %v155
  %v452 = vpop.f32.mrf.mxu0
  %v453 = vadd.f32 0.0, %v452
  %v454 = vpop.f32.mrf.mxu0
  %455 = vmatprep.mubr.f32.mxu0 0.0
  %456 = vmatmul.mubr.f32.gmra.mxu0 %v160
  %v457 = vpop.f32.mrf.mxu0
  %v458 = vadd.f32 0.0, %v457
  %v459 = vpop.f32.mrf.mxu0
  %460 = vmatprep.mubr.f32.mxu0 0.0
  %461 = vmatmul.mubr.f32.gmra.mxu0 %v165
  %v462 = vpop.f32.mrf.mxu0
  %v463 = vadd.f32 0.0, %v462
  %v464 = vpop.f32.mrf.mxu0
  %465 = vmatprep.mubr.f32.mxu0 0.0
  %466 = vmatmul.mubr.f32.gmra.mxu0 %v170
  %v467 = vpop.f32.mrf.mxu0
  %v468 = vadd.f32 0.0, %v467
  %v469 = vpop.f32.mrf.mxu0
  %470 = vmatprep.mubr.f32.mxu0 0.0
  %471 = vmatmul.mubr.f32.gmra.mxu0 %v175
  %v472 = vpop.f32.mrf.mxu0
  %v473 = vadd.f32 0.0, %v472
  %v474 = vpop.f32.mrf.mxu0
  %475 = vmatprep.mubr.f32.mxu0 0.0
  %476 = vmatmul.mubr.f32.gmra.mxu0 %v180
  %v477 = vpop.f32.mrf.mxu0
  %v478 = vadd.f32 0.0, %v477
  %v479 = vpop.f32.mrf.mxu0
  %480 = vmatprep.mubr.f32.mxu0 0.0
  %481 = vmatmul.mubr.f32.gmra.mxu0 %v185
  %v482 = vpop.f32.mrf.mxu0
  %v483 = vadd.f32 0.0, %v482
  %v484 = vpop.f32.mrf.mxu0
  %485 = vmatprep.mubr.f32.mxu0 0.0
  %486 = vmatmul.mubr.f32.gmra.mxu0 %v190
  %v487 = vpop.f32.mrf.mxu0
  %v488 = vadd.f32 0.0, %v487
  %v489 = vpop.f32.mrf.mxu0
  %490 = vmatprep.mubr.f32.mxu0 0.0
  %491 = vmatmul.mubr.f32.gmra.mxu0 %v195
  %v492 = vpop.f32.mrf.mxu0
  %v493 = vadd.f32 0.0, %v492
  %v494 = vpop.f32.mrf.mxu0
  %495 = vmatprep.mubr.f32.mxu0 0.0
  %496 = vmatmul.mubr.f32.gmra.mxu0 %v200
  %v497 = vpop.f32.mrf.mxu0
  %v498 = vadd.f32 0.0, %v497
  %v499 = vpop.f32.mrf.mxu0
  %500 = vmatprep.mubr.f32.mxu0 0.0
  %501 = vmatmul.mubr.f32.gmra.mxu0 %v205
  %v502 = vpop.f32.mrf.mxu0
  %v503 = vadd.f32 0.0, %v502
  %v504 = vpop.f32.mrf.mxu0
  %505 = vmatprep.mubr.f32.mxu0 0.0
  %506 = vmatmul.mubr.f32.gmra.mxu0 %v210
  %v507 = vpop.f32.mrf.mxu0
  %v508 = vadd.f32 0.0, %v507
  %v509 = vpop.f32.mrf.mxu0
  %510 = vdwg.mxu0
  %vm511 = vcmask 64512
  %512 = vst.msk [vmem:[%s6] sm:$0xff] %vm511, %v433
  %513 = vst.msk [vmem:[%s6 + $0x8] sm:$0xff] %vm511, %v438
  %514 = vst.msk [vmem:[%s6 + $0x10] sm:$0xff] %vm511, %v443
  %515 = vst.msk [vmem:[%s6 + $0x18] sm:$0xff] %vm511, %v448
  %516 = vst.msk [vmem:[%s6 + $0x20] sm:$0xff] %vm511, %v453
  %517 = vst.msk [vmem:[%s6 + $0x28] sm:$0xff] %vm511, %v458
  %518 = vst.msk [vmem:[%s6 + $0x30] sm:$0xff] %vm511, %v463
  %519 = vst.msk [vmem:[%s6 + $0x38] sm:$0xff] %vm511, %v468
  %520 = vst.msk [vmem:[%s6 + $0x40] sm:$0xff] %vm511, %v473
  %521 = vst.msk [vmem:[%s6 + $0x48] sm:$0xff] %vm511, %v478
  %522 = vst.msk [vmem:[%s6 + $0x50] sm:$0xff] %vm511, %v483
  %523 = vst.msk [vmem:[%s6 + $0x58] sm:$0xff] %vm511, %v488
  %524 = vst.msk [vmem:[%s6 + $0x60] sm:$0xff] %vm511, %v493
  %525 = vst.msk [vmem:[%s6 + $0x68] sm:$0xff] %vm511, %v498
  %526 = vst.msk [vmem:[%s6 + $0x70] sm:$0xff] %vm511, %v503
  %527 = vst.msk [vmem:[%s6 + $0x78] sm:$0xff] %vm511, %v508
  // Predicated region
  $region18: #{gat_forward.6} parent=0 // pred_check
    _
  $region19: #{gat_forward.6} parent=0 // pred_check_branch
    %529 = sbr.rel (0) target = $region21
  $region20: #{gat_forward.6} parent=0 // pred_region
    _
  $region21: #{gat_forward.6} parent=0 // pred_fallthru
    _
  // Predicated region
  $region22: #{gat_forward.6} parent=0 // pred_check
    _
  $region23: #{gat_forward.6} parent=0 // pred_check_branch
    %531 = sbr.rel (0) target = $region25
  $region24: #{gat_forward.6} parent=0 // pred_region
    _
  $region25: #{gat_forward.6} parent=0 // pred_fallthru
    _
  // Predicated region
  $region26: #{gat_forward.6} parent=0 // pred_check
    _
  $region27: #{gat_forward.6} parent=0 // pred_check_branch
    %533 = sbr.rel (0) target = $region29
  $region28: #{gat_forward.6} parent=0 // pred_region
    _
  $region29: #{gat_forward.6} parent=0 // pred_fallthru
    _
  // Predicated region
  $region30: #{gat_forward.6} parent=0 // pred_check
    _
  $region31: #{gat_forward.6} parent=0 // pred_check_branch
    %535 = sbr.rel (0) target = $region33
  $region32: #{gat_forward.6} parent=0 // pred_region
    _
  $region33: #{gat_forward.6} parent=0 // pred_fallthru
    _
  // Predicated region
  $region34: #{gat_forward.6} parent=0 // pred_check
    _
  $region35: #{gat_forward.6} parent=0 // pred_check_branch
    %537 = sbr.rel (0) target = $region37
  $region36: #{gat_forward.6} parent=0 // pred_region
    _
  $region37: #{gat_forward.6} parent=0 // pred_fallthru
    _
  // Predicated region
  $region38: #{gat_forward.6} parent=0 // pred_check
    _
  $region39: #{gat_forward.6} parent=0 // pred_check_branch
    %539 = sbr.rel (0) target = $region41
  $region40: #{gat_forward.6} parent=0 // pred_region
    _
  $region41: #{gat_forward.6} parent=0 // pred_fallthru
    _

// kernel: gat_forward.7
$region0: #{gat_forward.7}
  #allocation0 [shape = 'u32[]', space=smem, size = 0x4, offset = 0x4, fixed_abs, tag = 'smem constant byte address 0x4 - core index']
  #allocation1 [shape = 'u32[144,128]{1,0:T(1,128)}', space=vmem, size = 0x12000, scoped, tag = 'internal scratch']
  %s0 = inlined_call_operand.vmem [shape: s8[128,128], index: 0, kind: input, shape index: {}]
  %s1 = inlined_call_operand.vmem [shape: f32[128,8], index: 1, kind: input, shape index: {}]
  %s2 = inlined_call_operand.vmem [shape: f32[8,128], index: 2, kind: input, shape index: {}]
  %s3 = inlined_call_operand.vmem [shape: bf16[128,128], index: 3, kind: input, shape index: {}]
  %s4 = inlined_call_operand.vmem [shape: f32[1,128], index: 4, kind: input, shape index: {}]
  %s5 = inlined_call_operand.vmem [shape: f32[128,128], index: 5, kind: output, shape index: {}]
  %s6 = sld [smem:[#allocation0]]
  $region30: #{gat_forward.7} parent=0
    _
  %s8 = ssub.s32 1, %s6
  %s9 = scalar_select 0, %s8, %s6
  // Predicated region
  $region2: #{gat_forward.7} parent=0 // pred_check
    _
  $region3: #{gat_forward.7} parent=0 // pred_check_branch
    %11 = sbr.rel (0) target = $region5
  $region4: #{gat_forward.7} parent=0 // pred_region
    _
  $region5: #{gat_forward.7} parent=0 // pred_fallthru
    _
  // Predicated region
  $region6: #{gat_forward.7} parent=0 // pred_check
    _
  $region7: #{gat_forward.7} parent=0 // pred_check_branch
    %13 = sbr.rel (0) target = $region9
  $region8: #{gat_forward.7} parent=0 // pred_region
    _
  $region9: #{gat_forward.7} parent=0 // pred_fallthru
    _
  // Predicated region
  $region10: #{gat_forward.7} parent=0 // pred_check
    _
  $region11: #{gat_forward.7} parent=0 // pred_check_branch
    %15 = sbr.rel (0) target = $region13
  $region12: #{gat_forward.7} parent=0 // pred_region
    _
  $region13: #{gat_forward.7} parent=0 // pred_fallthru
    _
  // Predicated region
  $region14: #{gat_forward.7} parent=0 // pred_check
    _
  $region15: #{gat_forward.7} parent=0 // pred_check_branch
    %17 = sbr.rel (0) target = $region17
  $region16: #{gat_forward.7} parent=0 // pred_region
    _
  $region17: #{gat_forward.7} parent=0 // pred_fallthru
    _
  // Predicated region
  $region18: #{gat_forward.7} parent=0 // pred_check
    _
  $region19: #{gat_forward.7} parent=0 // pred_check_branch
    %19 = sbr.rel (0) target = $region21
  $region20: #{gat_forward.7} parent=0 // pred_region
    _
  $region21: #{gat_forward.7} parent=0 // pred_fallthru
    _
  %v22 = vld [vmem:[%s0] sm:$0x3]
  %v23 = vld [vmem:[%s0 + $0x2] sm:$0x3]
  %v24 = vld [vmem:[%s0 + $0x4] sm:$0x3]
  %v25 = vld [vmem:[%s0 + $0x6] sm:$0x3]
  %v26 = vld [vmem:[%s0 + $0x8] sm:$0x3]
  %v27 = vld [vmem:[%s0 + $0xa] sm:$0x3]
  %v28 = vld [vmem:[%s0 + $0xc] sm:$0x3]
  %v29 = vld [vmem:[%s0 + $0xe] sm:$0x3]
  %v30 = vld [vmem:[%s0 + $0x10] sm:$0x3]
  %v31 = vld [vmem:[%s0 + $0x12] sm:$0x3]
  %v32 = vld [vmem:[%s0 + $0x14] sm:$0x3]
  %v33 = vld [vmem:[%s0 + $0x16] sm:$0x3]
  %v34 = vld [vmem:[%s0 + $0x18] sm:$0x3]
  %v35 = vld [vmem:[%s0 + $0x1a] sm:$0x3]
  %v36 = vld [vmem:[%s0 + $0x1c] sm:$0x3]
  %v37 = vld [vmem:[%s0 + $0x1e] sm:$0x3]
  %vm38 = vnez %v22
  %vm39 = vnez %v23
  %vm40 = vnez %v24
  %vm41 = vnez %v25
  %vm42 = vnez %v26
  %vm43 = vnez %v27
  %vm44 = vnez %v28
  %vm45 = vnez %v29
  %vm46 = vnez %v30
  %vm47 = vnez %v31
  %vm48 = vnez %v32
  %vm49 = vnez %v33
  %vm50 = vnez %v34
  %vm51 = vnez %v35
  %vm52 = vnez %v36
  %vm53 = vnez %v37
  %v54 = vld [vmem:[%s1] sm:$0xff]
  %v55 = vld [vmem:[%s1 + $0x8] sm:$0xff]
  %v56 = vld [vmem:[%s1 + $0x10] sm:$0xff]
  %v57 = vld [vmem:[%s1 + $0x18] sm:$0xff]
  %v58 = vld [vmem:[%s1 + $0x20] sm:$0xff]
  %v59 = vld [vmem:[%s1 + $0x28] sm:$0xff]
  %v60 = vld [vmem:[%s1 + $0x30] sm:$0xff]
  %v61 = vld [vmem:[%s1 + $0x38] sm:$0xff]
  %v62 = vld [vmem:[%s1 + $0x40] sm:$0xff]
  %v63 = vld [vmem:[%s1 + $0x48] sm:$0xff]
  %v64 = vld [vmem:[%s1 + $0x50] sm:$0xff]
  %v65 = vld [vmem:[%s1 + $0x58] sm:$0xff]
  %v66 = vld [vmem:[%s1 + $0x60] sm:$0xff]
  %v67 = vld [vmem:[%s1 + $0x68] sm:$0xff]
  %v68 = vld [vmem:[%s1 + $0x70] sm:$0xff]
  %v69 = vld [vmem:[%s1 + $0x78] sm:$0xff]
  %v70 = vld [vmem:[%s2] sm:$0xff]
  %v71 = vld [vmem:[%s3] sm:$0xf]
  %v72 = vld [vmem:[%s3 + $0x4] sm:$0xf]
  %v73 = vld [vmem:[%s3 + $0x8] sm:$0xf]
  %v74 = vld [vmem:[%s3 + $0xc] sm:$0xf]
  %v75 = vld [vmem:[%s3 + $0x10] sm:$0xf]
  %v76 = vld [vmem:[%s3 + $0x14] sm:$0xf]
  %v77 = vld [vmem:[%s3 + $0x18] sm:$0xf]
  %v78 = vld [vmem:[%s3 + $0x1c] sm:$0xf]
  %v79 = vld [vmem:[%s3 + $0x20] sm:$0xf]
  %v80 = vld [vmem:[%s3 + $0x24] sm:$0xf]
  %v81 = vld [vmem:[%s3 + $0x28] sm:$0xf]
  %v82 = vld [vmem:[%s3 + $0x2c] sm:$0xf]
  %v83 = vld [vmem:[%s3 + $0x30] sm:$0xf]
  %v84 = vld [vmem:[%s3 + $0x34] sm:$0xf]
  %v85 = vld [vmem:[%s3 + $0x38] sm:$0xf]
  %v86 = vld [vmem:[%s3 + $0x3c] sm:$0xf]
  %v87 = vunpack.c.l.bf16 %v71
  %v88 = vunpack.c.l.bf16 %v72
  %v89 = vunpack.c.l.bf16 %v73
  %v90 = vunpack.c.l.bf16 %v74
  %v91 = vunpack.c.l.bf16 %v75
  %v92 = vunpack.c.l.bf16 %v76
  %v93 = vunpack.c.l.bf16 %v77
  %v94 = vunpack.c.l.bf16 %v78
  %v95 = vunpack.c.l.bf16 %v79
  %v96 = vunpack.c.l.bf16 %v80
  %v97 = vunpack.c.l.bf16 %v81
  %v98 = vunpack.c.l.bf16 %v82
  %v99 = vunpack.c.l.bf16 %v83
  %v100 = vunpack.c.l.bf16 %v84
  %v101 = vunpack.c.l.bf16 %v85
  %v102 = vunpack.c.l.bf16 %v86
  %104 = vset.pattern.permute.xlu0 0
  %105 = vperm.xlu0 %104, %v54
  %v106 = vpop.permute.xlu0 %105
  %109 = vset.pattern.permute.xlu0 0
  %110 = vperm.xlu0 %109, %v55
  %v111 = vpop.permute.xlu0 %110
  %114 = vset.pattern.permute.xlu0 0
  %115 = vperm.xlu0 %114, %v56
  %v116 = vpop.permute.xlu0 %115
  %119 = vset.pattern.permute.xlu0 0
  %120 = vperm.xlu0 %119, %v57
  %v121 = vpop.permute.xlu0 %120
  %124 = vset.pattern.permute.xlu0 0
  %125 = vperm.xlu0 %124, %v58
  %v126 = vpop.permute.xlu0 %125
  %129 = vset.pattern.permute.xlu0 0
  %130 = vperm.xlu0 %129, %v59
  %v131 = vpop.permute.xlu0 %130
  %134 = vset.pattern.permute.xlu0 0
  %135 = vperm.xlu0 %134, %v60
  %v136 = vpop.permute.xlu0 %135
  %139 = vset.pattern.permute.xlu0 0
  %140 = vperm.xlu0 %139, %v61
  %v141 = vpop.permute.xlu0 %140
  %144 = vset.pattern.permute.xlu0 0
  %145 = vperm.xlu0 %144, %v62
  %v146 = vpop.permute.xlu0 %145
  %149 = vset.pattern.permute.xlu0 0
  %150 = vperm.xlu0 %149, %v63
  %v151 = vpop.permute.xlu0 %150
  %154 = vset.pattern.permute.xlu0 0
  %155 = vperm.xlu0 %154, %v64
  %v156 = vpop.permute.xlu0 %155
  %159 = vset.pattern.permute.xlu0 0
  %160 = vperm.xlu0 %159, %v65
  %v161 = vpop.permute.xlu0 %160
  %164 = vset.pattern.permute.xlu0 0
  %165 = vperm.xlu0 %164, %v66
  %v166 = vpop.permute.xlu0 %165
  %169 = vset.pattern.permute.xlu0 0
  %170 = vperm.xlu0 %169, %v67
  %v171 = vpop.permute.xlu0 %170
  %174 = vset.pattern.permute.xlu0 0
  %175 = vperm.xlu0 %174, %v68
  %v176 = vpop.permute.xlu0 %175
  %179 = vset.pattern.permute.xlu0 0
  %180 = vperm.xlu0 %179, %v69
  %v181 = vpop.permute.xlu0 %180
  %v183 = vlaneseq
  %v184 = vshrl.u32 %v183, 7
  %v185 = vsub.s32 0, %v184
  %v186 = vrot.slane %v70, %v185
  %v187 = vadd.f32 %v106, %v186
  %v188 = vadd.f32 %v111, %v186
  %v189 = vadd.f32 %v116, %v186
  %v190 = vadd.f32 %v121, %v186
  %v191 = vadd.f32 %v126, %v186
  %v192 = vadd.f32 %v131, %v186
  %v193 = vadd.f32 %v136, %v186
  %v194 = vadd.f32 %v141, %v186
  %v195 = vadd.f32 %v146, %v186
  %v196 = vadd.f32 %v151, %v186
  %v197 = vadd.f32 %v156, %v186
  %v198 = vadd.f32 %v161, %v186
  %v199 = vadd.f32 %v166, %v186
  %v200 = vadd.f32 %v171, %v186
  %v201 = vadd.f32 %v176, %v186
  %v202 = vadd.f32 %v181, %v186
  %v203 = vmul.f32 %v187, 0.2
  %v204 = vmul.f32 %v188, 0.2
  %v205 = vmul.f32 %v189, 0.2
  %v206 = vmul.f32 %v190, 0.2
  %v207 = vmul.f32 %v191, 0.2
  %v208 = vmul.f32 %v192, 0.2
  %v209 = vmul.f32 %v193, 0.2
  %v210 = vmul.f32 %v194, 0.2
  %v211 = vmul.f32 %v195, 0.2
  %v212 = vmul.f32 %v196, 0.2
  %v213 = vmul.f32 %v197, 0.2
  %v214 = vmul.f32 %v198, 0.2
  %v215 = vmul.f32 %v199, 0.2
  %v216 = vmul.f32 %v200, 0.2
  %v217 = vmul.f32 %v201, 0.2
  %v218 = vmul.f32 %v202, 0.2
  %v219 = vmax.f32 %v187, %v203
  %v220 = vmax.f32 %v188, %v204
  %v221 = vmax.f32 %v189, %v205
  %v222 = vmax.f32 %v190, %v206
  %v223 = vmax.f32 %v191, %v207
  %v224 = vmax.f32 %v192, %v208
  %v225 = vmax.f32 %v193, %v209
  %v226 = vmax.f32 %v194, %v210
  %v227 = vmax.f32 %v195, %v211
  %v228 = vmax.f32 %v196, %v212
  %v229 = vmax.f32 %v197, %v213
  %v230 = vmax.f32 %v198, %v214
  %v231 = vmax.f32 %v199, %v215
  %v232 = vmax.f32 %v200, %v216
  %v233 = vmax.f32 %v201, %v217
  %v234 = vmax.f32 %v202, %v218
  %v235 = vsel %vm38, 16843009, 0
  %v236 = vsel %vm39, 16843009, 0
  %v237 = vsel %vm40, 16843009, 0
  %v238 = vsel %vm41, 16843009, 0
  %v239 = vsel %vm42, 16843009, 0
  %v240 = vsel %vm43, 16843009, 0
  %v241 = vsel %vm44, 16843009, 0
  %v242 = vsel %vm45, 16843009, 0
  %v243 = vsel %vm46, 16843009, 0
  %v244 = vsel %vm47, 16843009, 0
  %v245 = vsel %vm48, 16843009, 0
  %v246 = vsel %vm49, 16843009, 0
  %v247 = vsel %vm50, 16843009, 0
  %v248 = vsel %vm51, 16843009, 0
  %v249 = vsel %vm52, 16843009, 0
  %v250 = vsel %vm53, 16843009, 0
  %v251 = vunpack.c.0.s8 %v235
  %v252 = vunpack.c.0.s8 %v236
  %v253 = vunpack.c.0.s8 %v237
  %v254 = vunpack.c.0.s8 %v238
  %v255 = vunpack.c.0.s8 %v239
  %v256 = vunpack.c.0.s8 %v240
  %v257 = vunpack.c.0.s8 %v241
  %v258 = vunpack.c.0.s8 %v242
  %v259 = vunpack.c.0.s8 %v243
  %v260 = vunpack.c.0.s8 %v244
  %v261 = vunpack.c.0.s8 %v245
  %v262 = vunpack.c.0.s8 %v246
  %v263 = vunpack.c.0.s8 %v247
  %v264 = vunpack.c.0.s8 %v248
  %v265 = vunpack.c.0.s8 %v249
  %v266 = vunpack.c.0.s8 %v250
  %vm267 = vcmp.ne.s32.totalorder %v251, 0
  %vm268 = vcmp.ne.s32.totalorder %v252, 0
  %vm269 = vcmp.ne.s32.totalorder %v253, 0
  %vm270 = vcmp.ne.s32.totalorder %v254, 0
  %vm271 = vcmp.ne.s32.totalorder %v255, 0
  %vm272 = vcmp.ne.s32.totalorder %v256, 0
  %vm273 = vcmp.ne.s32.totalorder %v257, 0
  %vm274 = vcmp.ne.s32.totalorder %v258, 0
  %vm275 = vcmp.ne.s32.totalorder %v259, 0
  %vm276 = vcmp.ne.s32.totalorder %v260, 0
  %vm277 = vcmp.ne.s32.totalorder %v261, 0
  %vm278 = vcmp.ne.s32.totalorder %v262, 0
  %vm279 = vcmp.ne.s32.totalorder %v263, 0
  %vm280 = vcmp.ne.s32.totalorder %v264, 0
  %vm281 = vcmp.ne.s32.totalorder %v265, 0
  %vm282 = vcmp.ne.s32.totalorder %v266, 0
  %v283 = vsel %vm267, %v219, -1e+30
  %v284 = vsel %vm268, %v220, -1e+30
  %v285 = vsel %vm269, %v221, -1e+30
  %v286 = vsel %vm270, %v222, -1e+30
  %v287 = vsel %vm271, %v223, -1e+30
  %v288 = vsel %vm272, %v224, -1e+30
  %v289 = vsel %vm273, %v225, -1e+30
  %v290 = vsel %vm274, %v226, -1e+30
  %v291 = vsel %vm275, %v227, -1e+30
  %v292 = vsel %vm276, %v228, -1e+30
  %v293 = vsel %vm277, %v229, -1e+30
  %v294 = vsel %vm278, %v230, -1e+30
  %v295 = vsel %vm279, %v231, -1e+30
  %v296 = vsel %vm280, %v232, -1e+30
  %v297 = vsel %vm281, %v233, -1e+30
  %v298 = vsel %vm282, %v234, -1e+30
  %299 = vmax.xlane.f32.xlu0 %v283
  %v300 = vpop.xlane.xlu0 %299
  %301 = vmax.xlane.f32.xlu0 %v284
  %v302 = vpop.xlane.xlu0 %301
  %303 = vmax.xlane.f32.xlu0 %v285
  %v304 = vpop.xlane.xlu0 %303
  %305 = vmax.xlane.f32.xlu0 %v286
  %v306 = vpop.xlane.xlu0 %305
  %307 = vmax.xlane.f32.xlu0 %v287
  %v308 = vpop.xlane.xlu0 %307
  %309 = vmax.xlane.f32.xlu0 %v288
  %v310 = vpop.xlane.xlu0 %309
  %311 = vmax.xlane.f32.xlu0 %v289
  %v312 = vpop.xlane.xlu0 %311
  %313 = vmax.xlane.f32.xlu0 %v290
  %v314 = vpop.xlane.xlu0 %313
  %315 = vmax.xlane.f32.xlu0 %v291
  %v316 = vpop.xlane.xlu0 %315
  %317 = vmax.xlane.f32.xlu0 %v292
  %v318 = vpop.xlane.xlu0 %317
  %319 = vmax.xlane.f32.xlu0 %v293
  %v320 = vpop.xlane.xlu0 %319
  %321 = vmax.xlane.f32.xlu0 %v294
  %v322 = vpop.xlane.xlu0 %321
  %323 = vmax.xlane.f32.xlu0 %v295
  %v324 = vpop.xlane.xlu0 %323
  %325 = vmax.xlane.f32.xlu0 %v296
  %v326 = vpop.xlane.xlu0 %325
  %327 = vmax.xlane.f32.xlu0 %v297
  %v328 = vpop.xlane.xlu0 %327
  %329 = vmax.xlane.f32.xlu0 %v298
  %v330 = vpop.xlane.xlu0 %329
  %v331 = vsub.f32 %v283, %v300
  %v332 = vsub.f32 %v284, %v302
  %v333 = vsub.f32 %v285, %v304
  %v334 = vsub.f32 %v286, %v306
  %v335 = vsub.f32 %v287, %v308
  %v336 = vsub.f32 %v288, %v310
  %v337 = vsub.f32 %v289, %v312
  %v338 = vsub.f32 %v290, %v314
  %v339 = vsub.f32 %v291, %v316
  %v340 = vsub.f32 %v292, %v318
  %v341 = vsub.f32 %v293, %v320
  %v342 = vsub.f32 %v294, %v322
  %v343 = vsub.f32 %v295, %v324
  %v344 = vsub.f32 %v296, %v326
  %v345 = vsub.f32 %v297, %v328
  %v346 = vsub.f32 %v298, %v330
  %v347 = vmul.f32 %v331, 1.442695
  %v348 = vpow.pop %v347
  %v349 = vmul.f32 %v332, 1.442695
  %v350 = vpow.pop %v349
  %v351 = vmul.f32 %v333, 1.442695
  %v352 = vpow.pop %v351
  %v353 = vmul.f32 %v334, 1.442695
  %v354 = vpow.pop %v353
  %v355 = vmul.f32 %v335, 1.442695
  %v356 = vpow.pop %v355
  %v357 = vmul.f32 %v336, 1.442695
  %v358 = vpow.pop %v357
  %v359 = vmul.f32 %v337, 1.442695
  %v360 = vpow.pop %v359
  %v361 = vmul.f32 %v338, 1.442695
  %v362 = vpow.pop %v361
  %v363 = vmul.f32 %v339, 1.442695
  %v364 = vpow.pop %v363
  %v365 = vmul.f32 %v340, 1.442695
  %v366 = vpow.pop %v365
  %v367 = vmul.f32 %v341, 1.442695
  %v368 = vpow.pop %v367
  %v369 = vmul.f32 %v342, 1.442695
  %v370 = vpow.pop %v369
  %v371 = vmul.f32 %v343, 1.442695
  %v372 = vpow.pop %v371
  %v373 = vmul.f32 %v344, 1.442695
  %v374 = vpow.pop %v373
  %v375 = vmul.f32 %v345, 1.442695
  %v376 = vpow.pop %v375
  %v377 = vmul.f32 %v346, 1.442695
  %v378 = vpow.pop %v377
  %379 = vadd.xlane.f32.xlu0 %v348
  %v380 = vpop.xlane.xlu0 %379
  %381 = vadd.xlane.f32.xlu0 %v350
  %v382 = vpop.xlane.xlu0 %381
  %383 = vadd.xlane.f32.xlu0 %v352
  %v384 = vpop.xlane.xlu0 %383
  %385 = vadd.xlane.f32.xlu0 %v354
  %v386 = vpop.xlane.xlu0 %385
  %387 = vadd.xlane.f32.xlu0 %v356
  %v388 = vpop.xlane.xlu0 %387
  %389 = vadd.xlane.f32.xlu0 %v358
  %v390 = vpop.xlane.xlu0 %389
  %391 = vadd.xlane.f32.xlu0 %v360
  %v392 = vpop.xlane.xlu0 %391
  %393 = vadd.xlane.f32.xlu0 %v362
  %v394 = vpop.xlane.xlu0 %393
  %395 = vadd.xlane.f32.xlu0 %v364
  %v396 = vpop.xlane.xlu0 %395
  %397 = vadd.xlane.f32.xlu0 %v366
  %v398 = vpop.xlane.xlu0 %397
  %399 = vadd.xlane.f32.xlu0 %v368
  %v400 = vpop.xlane.xlu0 %399
  %401 = vadd.xlane.f32.xlu0 %v370
  %v402 = vpop.xlane.xlu0 %401
  %403 = vadd.xlane.f32.xlu0 %v372
  %v404 = vpop.xlane.xlu0 %403
  %405 = vadd.xlane.f32.xlu0 %v374
  %v406 = vpop.xlane.xlu0 %405
  %407 = vadd.xlane.f32.xlu0 %v376
  %v408 = vpop.xlane.xlu0 %407
  %409 = vadd.xlane.f32.xlu0 %v378
  %v410 = vpop.xlane.xlu0 %409
  %v411 = vrcp.pop %v380
  %v412 = vrcp.pop %v382
  %v413 = vrcp.pop %v384
  %v414 = vrcp.pop %v386
  %v415 = vrcp.pop %v388
  %v416 = vrcp.pop %v390
  %v417 = vrcp.pop %v392
  %v418 = vrcp.pop %v394
  %v419 = vrcp.pop %v396
  %v420 = vrcp.pop %v398
  %v421 = vrcp.pop %v400
  %v422 = vrcp.pop %v402
  %v423 = vrcp.pop %v404
  %v424 = vrcp.pop %v406
  %v425 = vrcp.pop %v408
  %v426 = vrcp.pop %v410
  %v427 = vmul.f32 %v348, %v411
  %v428 = vmul.f32 %v350, %v412
  %v429 = vmul.f32 %v352, %v413
  %v430 = vmul.f32 %v354, %v414
  %v431 = vmul.f32 %v356, %v415
  %v432 = vmul.f32 %v358, %v416
  %v433 = vmul.f32 %v360, %v417
  %v434 = vmul.f32 %v362, %v418
  %v435 = vmul.f32 %v364, %v419
  %v436 = vmul.f32 %v366, %v420
  %v437 = vmul.f32 %v368, %v421
  %v438 = vmul.f32 %v370, %v422
  %v439 = vmul.f32 %v372, %v423
  %v440 = vmul.f32 %v374, %v424
  %v441 = vmul.f32 %v376, %v425
  %v442 = vmul.f32 %v378, %v426
  %v443 = vld [vmem:[%s4] sm:$0x1]
  %v445 = vlaneseq
  %v446 = vshrl.u32 %v445, 7
  %v447 = vsub.s32 0, %v446
  %v448 = vrot.slane %v443, %v447
  %450 = vmatprep.subr.mxu0 0.0
  %451 = vmatpush1.msra.mxu0 %v102
  %452 = vmatprep.subr.mxu0 0.0
  %453 = vmatpush1.msra.mxu0 %v101
  %454 = vmatprep.subr.mxu0 0.0
  %455 = vmatpush1.msra.mxu0 %v100
  %456 = vmatprep.subr.mxu0 0.0
  %457 = vmatpush1.msra.mxu0 %v99
  %458 = vmatprep.subr.mxu0 0.0
  %459 = vmatpush1.msra.mxu0 %v98
  %460 = vmatprep.subr.mxu0 0.0
  %461 = vmatpush1.msra.mxu0 %v97
  %462 = vmatprep.subr.mxu0 0.0
  %463 = vmatpush1.msra.mxu0 %v96
  %464 = vmatprep.subr.mxu0 0.0
  %465 = vmatpush1.msra.mxu0 %v95
  %466 = vmatprep.subr.mxu0 0.0
  %467 = vmatpush1.msra.mxu0 %v94
  %468 = vmatprep.subr.mxu0 0.0
  %469 = vmatpush1.msra.mxu0 %v93
  %470 = vmatprep.subr.mxu0 0.0
  %471 = vmatpush1.msra.mxu0 %v92
  %472 = vmatprep.subr.mxu0 0.0
  %473 = vmatpush1.msra.mxu0 %v91
  %474 = vmatprep.subr.mxu0 0.0
  %475 = vmatpush1.msra.mxu0 %v90
  %476 = vmatprep.subr.mxu0 0.0
  %477 = vmatpush1.msra.mxu0 %v89
  %478 = vmatprep.subr.mxu0 0.0
  %479 = vmatpush1.msra.mxu0 %v88
  %480 = vmatprep.subr.mxu0 0.0
  %481 = vmatpush1.msra.mxu0 %v87
  %482 = vmatprep.subr.mxu0 0.0
  %483 = vmatpush2.msra.mxu0 0.0
  %484 = vmatprep.subr.mxu0 0.0
  %485 = vmatpush2.msra.mxu0 0.0
  %486 = vmatprep.subr.mxu0 0.0
  %487 = vmatpush2.msra.mxu0 0.0
  %488 = vmatprep.subr.mxu0 0.0
  %489 = vmatpush2.msra.mxu0 0.0
  %490 = vmatprep.subr.mxu0 0.0
  %491 = vmatpush2.msra.mxu0 0.0
  %492 = vmatprep.subr.mxu0 0.0
  %493 = vmatpush2.msra.mxu0 0.0
  %494 = vmatprep.subr.mxu0 0.0
  %495 = vmatpush2.msra.mxu0 0.0
  %496 = vmatprep.subr.mxu0 0.0
  %497 = vmatpush2.msra.mxu0 0.0
  %498 = vmatprep.subr.mxu0 0.0
  %499 = vmatpush2.msra.mxu0 0.0
  %500 = vmatprep.subr.mxu0 0.0
  %501 = vmatpush2.msra.mxu0 0.0
  %502 = vmatprep.subr.mxu0 0.0
  %503 = vmatpush2.msra.mxu0 0.0
  %504 = vmatprep.subr.mxu0 0.0
  %505 = vmatpush2.msra.mxu0 0.0
  %506 = vmatprep.subr.mxu0 0.0
  %507 = vmatpush2.msra.mxu0 0.0
  %508 = vmatprep.subr.mxu0 0.0
  %509 = vmatpush2.msra.mxu0 0.0
  %510 = vmatprep.subr.mxu0 0.0
  %511 = vmatpush2.msra.mxu0 0.0
  %512 = vmatprep.subr.mxu0 0.0
  %513 = vmatpush2.msra.mxu0 0.0
  %514 = vmatprep.mubr.f32.mxu0 0.0
  %515 = vmatmul.mubr.f32.gmra.mxu0 %v427
  %v516 = vpop.f32.mrf.mxu0
  %v517 = vadd.f32 %v448, %v516
  %v518 = vpop.f32.mrf.mxu0
  %519 = vmatprep.mubr.f32.mxu0 0.0
  %520 = vmatmul.mubr.f32.gmra.mxu0 %v428
  %v521 = vpop.f32.mrf.mxu0
  %v522 = vadd.f32 %v448, %v521
  %v523 = vpop.f32.mrf.mxu0
  %524 = vmatprep.mubr.f32.mxu0 0.0
  %525 = vmatmul.mubr.f32.gmra.mxu0 %v429
  %v526 = vpop.f32.mrf.mxu0
  %v527 = vadd.f32 %v448, %v526
  %v528 = vpop.f32.mrf.mxu0
  %529 = vmatprep.mubr.f32.mxu0 0.0
  %530 = vmatmul.mubr.f32.gmra.mxu0 %v430
  %v531 = vpop.f32.mrf.mxu0
  %v532 = vadd.f32 %v448, %v531
  %v533 = vpop.f32.mrf.mxu0
  %534 = vmatprep.mubr.f32.mxu0 0.0
  %535 = vmatmul.mubr.f32.gmra.mxu0 %v431
  %v536 = vpop.f32.mrf.mxu0
  %v537 = vadd.f32 %v448, %v536
  %v538 = vpop.f32.mrf.mxu0
  %539 = vmatprep.mubr.f32.mxu0 0.0
  %540 = vmatmul.mubr.f32.gmra.mxu0 %v432
  %v541 = vpop.f32.mrf.mxu0
  %v542 = vadd.f32 %v448, %v541
  %v543 = vpop.f32.mrf.mxu0
  %544 = vmatprep.mubr.f32.mxu0 0.0
  %545 = vmatmul.mubr.f32.gmra.mxu0 %v433
  %v546 = vpop.f32.mrf.mxu0
  %v547 = vadd.f32 %v448, %v546
  %v548 = vpop.f32.mrf.mxu0
  %549 = vmatprep.mubr.f32.mxu0 0.0
  %550 = vmatmul.mubr.f32.gmra.mxu0 %v434
  %v551 = vpop.f32.mrf.mxu0
  %v552 = vadd.f32 %v448, %v551
  %v553 = vpop.f32.mrf.mxu0
  %554 = vmatprep.mubr.f32.mxu0 0.0
  %555 = vmatmul.mubr.f32.gmra.mxu0 %v435
  %v556 = vpop.f32.mrf.mxu0
  %v557 = vadd.f32 %v448, %v556
  %v558 = vpop.f32.mrf.mxu0
  %559 = vmatprep.mubr.f32.mxu0 0.0
  %560 = vmatmul.mubr.f32.gmra.mxu0 %v436
  %v561 = vpop.f32.mrf.mxu0
  %v562 = vadd.f32 %v448, %v561
  %v563 = vpop.f32.mrf.mxu0
  %564 = vmatprep.mubr.f32.mxu0 0.0
  %565 = vmatmul.mubr.f32.gmra.mxu0 %v437
  %v566 = vpop.f32.mrf.mxu0
  %v567 = vadd.f32 %v448, %v566
  %v568 = vpop.f32.mrf.mxu0
  %569 = vmatprep.mubr.f32.mxu0 0.0
  %570 = vmatmul.mubr.f32.gmra.mxu0 %v438
  %v571 = vpop.f32.mrf.mxu0
  %v572 = vadd.f32 %v448, %v571
  %v573 = vpop.f32.mrf.mxu0
  %574 = vmatprep.mubr.f32.mxu0 0.0
  %575 = vmatmul.mubr.f32.gmra.mxu0 %v439
  %v576 = vpop.f32.mrf.mxu0
  %v577 = vadd.f32 %v448, %v576
  %v578 = vpop.f32.mrf.mxu0
  %579 = vmatprep.mubr.f32.mxu0 0.0
  %580 = vmatmul.mubr.f32.gmra.mxu0 %v440
  %v581 = vpop.f32.mrf.mxu0
  %v582 = vadd.f32 %v448, %v581
  %v583 = vpop.f32.mrf.mxu0
  %584 = vmatprep.mubr.f32.mxu0 0.0
  %585 = vmatmul.mubr.f32.gmra.mxu0 %v441
  %v586 = vpop.f32.mrf.mxu0
  %v587 = vadd.f32 %v448, %v586
  %v588 = vpop.f32.mrf.mxu0
  %589 = vmatprep.mubr.f32.mxu0 0.0
  %590 = vmatmul.mubr.f32.gmra.mxu0 %v442
  %v591 = vpop.f32.mrf.mxu0
  %v592 = vadd.f32 %v448, %v591
  %v593 = vpop.f32.mrf.mxu0
  %594 = vdwg.mxu0
  %v595 = vlaneseq
  %v596 = vand.u32 %v595, 127
  %vm597 = vcmp.lt.s32.totalorder %v596, 7
  %v598 = vsel %vm597, %v517, -1e+30
  %v599 = vsel %vm597, %v522, -1e+30
  %v600 = vsel %vm597, %v527, -1e+30
  %v601 = vsel %vm597, %v532, -1e+30
  %v602 = vsel %vm597, %v537, -1e+30
  %v603 = vsel %vm597, %v542, -1e+30
  %v604 = vsel %vm597, %v547, -1e+30
  %v605 = vsel %vm597, %v552, -1e+30
  %v606 = vsel %vm597, %v557, -1e+30
  %v607 = vsel %vm597, %v562, -1e+30
  %v608 = vsel %vm597, %v567, -1e+30
  %v609 = vsel %vm597, %v572, -1e+30
  %v610 = vsel %vm597, %v577, -1e+30
  %v611 = vsel %vm597, %v582, -1e+30
  %v612 = vsel %vm597, %v587, -1e+30
  %v613 = vsel %vm597, %v592, -1e+30
  %614 = vmax.xlane.f32.xlu0 %v598
  %v615 = vpop.xlane.xlu0 %614
  %616 = vmax.xlane.f32.xlu0 %v599
  %v617 = vpop.xlane.xlu0 %616
  %618 = vmax.xlane.f32.xlu0 %v600
  %v619 = vpop.xlane.xlu0 %618
  %620 = vmax.xlane.f32.xlu0 %v601
  %v621 = vpop.xlane.xlu0 %620
  %622 = vmax.xlane.f32.xlu0 %v602
  %v623 = vpop.xlane.xlu0 %622
  %624 = vmax.xlane.f32.xlu0 %v603
  %v625 = vpop.xlane.xlu0 %624
  %626 = vmax.xlane.f32.xlu0 %v604
  %v627 = vpop.xlane.xlu0 %626
  %628 = vmax.xlane.f32.xlu0 %v605
  %v629 = vpop.xlane.xlu0 %628
  %630 = vmax.xlane.f32.xlu0 %v606
  %v631 = vpop.xlane.xlu0 %630
  %632 = vmax.xlane.f32.xlu0 %v607
  %v633 = vpop.xlane.xlu0 %632
  %634 = vmax.xlane.f32.xlu0 %v608
  %v635 = vpop.xlane.xlu0 %634
  %636 = vmax.xlane.f32.xlu0 %v609
  %v637 = vpop.xlane.xlu0 %636
  %638 = vmax.xlane.f32.xlu0 %v610
  %v639 = vpop.xlane.xlu0 %638
  %640 = vmax.xlane.f32.xlu0 %v611
  %v641 = vpop.xlane.xlu0 %640
  %642 = vmax.xlane.f32.xlu0 %v612
  %v643 = vpop.xlane.xlu0 %642
  %644 = vmax.xlane.f32.xlu0 %v613
  %v645 = vpop.xlane.xlu0 %644
  %v646 = vsub.f32 %v598, %v615
  %v647 = vsub.f32 %v599, %v617
  %v648 = vsub.f32 %v600, %v619
  %v649 = vsub.f32 %v601, %v621
  %v650 = vsub.f32 %v602, %v623
  %v651 = vsub.f32 %v603, %v625
  %v652 = vsub.f32 %v604, %v627
  %v653 = vsub.f32 %v605, %v629
  %v654 = vsub.f32 %v606, %v631
  %v655 = vsub.f32 %v607, %v633
  %v656 = vsub.f32 %v608, %v635
  %v657 = vsub.f32 %v609, %v637
  %v658 = vsub.f32 %v610, %v639
  %v659 = vsub.f32 %v611, %v641
  %v660 = vsub.f32 %v612, %v643
  %v661 = vsub.f32 %v613, %v645
  %v662 = vmul.f32 %v646, 1.442695
  %v663 = vpow.pop %v662
  %v664 = vmul.f32 %v647, 1.442695
  %v665 = vpow.pop %v664
  %v666 = vmul.f32 %v648, 1.442695
  %v667 = vpow.pop %v666
  %v668 = vmul.f32 %v649, 1.442695
  %v669 = vpow.pop %v668
  %v670 = vmul.f32 %v650, 1.442695
  %v671 = vpow.pop %v670
  %v672 = vmul.f32 %v651, 1.442695
  %v673 = vpow.pop %v672
  %v674 = vmul.f32 %v652, 1.442695
  %v675 = vpow.pop %v674
  %v676 = vmul.f32 %v653, 1.442695
  %v677 = vpow.pop %v676
  %v678 = vmul.f32 %v654, 1.442695
  %v679 = vpow.pop %v678
  %v680 = vmul.f32 %v655, 1.442695
  %v681 = vpow.pop %v680
  %v682 = vmul.f32 %v656, 1.442695
  %v683 = vpow.pop %v682
  %v684 = vmul.f32 %v657, 1.442695
  %v685 = vpow.pop %v684
  %v686 = vmul.f32 %v658, 1.442695
  %v687 = vpow.pop %v686
  %v688 = vmul.f32 %v659, 1.442695
  %v689 = vpow.pop %v688
  %v690 = vmul.f32 %v660, 1.442695
  %v691 = vpow.pop %v690
  %v692 = vmul.f32 %v661, 1.442695
  %v693 = vpow.pop %v692
  %694 = vadd.xlane.f32.xlu0 %v663
  %v695 = vpop.xlane.xlu0 %694
  %696 = vadd.xlane.f32.xlu0 %v665
  %v697 = vpop.xlane.xlu0 %696
  %698 = vadd.xlane.f32.xlu0 %v667
  %v699 = vpop.xlane.xlu0 %698
  %700 = vadd.xlane.f32.xlu0 %v669
  %v701 = vpop.xlane.xlu0 %700
  %702 = vadd.xlane.f32.xlu0 %v671
  %v703 = vpop.xlane.xlu0 %702
  %704 = vadd.xlane.f32.xlu0 %v673
  %v705 = vpop.xlane.xlu0 %704
  %706 = vadd.xlane.f32.xlu0 %v675
  %v707 = vpop.xlane.xlu0 %706
  %708 = vadd.xlane.f32.xlu0 %v677
  %v709 = vpop.xlane.xlu0 %708
  %710 = vadd.xlane.f32.xlu0 %v679
  %v711 = vpop.xlane.xlu0 %710
  %712 = vadd.xlane.f32.xlu0 %v681
  %v713 = vpop.xlane.xlu0 %712
  %714 = vadd.xlane.f32.xlu0 %v683
  %v715 = vpop.xlane.xlu0 %714
  %716 = vadd.xlane.f32.xlu0 %v685
  %v717 = vpop.xlane.xlu0 %716
  %718 = vadd.xlane.f32.xlu0 %v687
  %v719 = vpop.xlane.xlu0 %718
  %720 = vadd.xlane.f32.xlu0 %v689
  %v721 = vpop.xlane.xlu0 %720
  %722 = vadd.xlane.f32.xlu0 %v691
  %v723 = vpop.xlane.xlu0 %722
  %724 = vadd.xlane.f32.xlu0 %v693
  %v725 = vpop.xlane.xlu0 %724
  %v726 = vlog2.pop %v695
  %v727 = vmul.f32 %v726, 0.6931472
  %v728 = vlog2.pop %v697
  %v729 = vmul.f32 %v728, 0.6931472
  %v730 = vlog2.pop %v699
  %v731 = vmul.f32 %v730, 0.6931472
  %v732 = vlog2.pop %v701
  %v733 = vmul.f32 %v732, 0.6931472
  %v734 = vlog2.pop %v703
  %v735 = vmul.f32 %v734, 0.6931472
  %v736 = vlog2.pop %v705
  %v737 = vmul.f32 %v736, 0.6931472
  %v738 = vlog2.pop %v707
  %v739 = vmul.f32 %v738, 0.6931472
  %v740 = vlog2.pop %v709
  %v741 = vmul.f32 %v740, 0.6931472
  %v742 = vlog2.pop %v711
  %v743 = vmul.f32 %v742, 0.6931472
  %v744 = vlog2.pop %v713
  %v745 = vmul.f32 %v744, 0.6931472
  %v746 = vlog2.pop %v715
  %v747 = vmul.f32 %v746, 0.6931472
  %v748 = vlog2.pop %v717
  %v749 = vmul.f32 %v748, 0.6931472
  %v750 = vlog2.pop %v719
  %v751 = vmul.f32 %v750, 0.6931472
  %v752 = vlog2.pop %v721
  %v753 = vmul.f32 %v752, 0.6931472
  %v754 = vlog2.pop %v723
  %v755 = vmul.f32 %v754, 0.6931472
  %v756 = vlog2.pop %v725
  %v757 = vmul.f32 %v756, 0.6931472
  %v758 = vsub.f32 %v646, %v727
  %v759 = vsub.f32 %v647, %v729
  %v760 = vsub.f32 %v648, %v731
  %v761 = vsub.f32 %v649, %v733
  %v762 = vsub.f32 %v650, %v735
  %v763 = vsub.f32 %v651, %v737
  %v764 = vsub.f32 %v652, %v739
  %v765 = vsub.f32 %v653, %v741
  %v766 = vsub.f32 %v654, %v743
  %v767 = vsub.f32 %v655, %v745
  %v768 = vsub.f32 %v656, %v747
  %v769 = vsub.f32 %v657, %v749
  %v770 = vsub.f32 %v658, %v751
  %v771 = vsub.f32 %v659, %v753
  %v772 = vsub.f32 %v660, %v755
  %v773 = vsub.f32 %v661, %v757
  %774 = vst [vmem:[%s5] sm:$0xff] %v758
  %775 = vst [vmem:[%s5 + $0x8] sm:$0xff] %v759
  %776 = vst [vmem:[%s5 + $0x10] sm:$0xff] %v760
  %777 = vst [vmem:[%s5 + $0x18] sm:$0xff] %v761
  %778 = vst [vmem:[%s5 + $0x20] sm:$0xff] %v762
  %779 = vst [vmem:[%s5 + $0x28] sm:$0xff] %v763
  %780 = vst [vmem:[%s5 + $0x30] sm:$0xff] %v764
  %781 = vst [vmem:[%s5 + $0x38] sm:$0xff] %v765
  %782 = vst [vmem:[%s5 + $0x40] sm:$0xff] %v766
  %783 = vst [vmem:[%s5 + $0x48] sm:$0xff] %v767
  %784 = vst [vmem:[%s5 + $0x50] sm:$0xff] %v768
  %785 = vst [vmem:[%s5 + $0x58] sm:$0xff] %v769
  %786 = vst [vmem:[%s5 + $0x60] sm:$0xff] %v770
  %787 = vst [vmem:[%s5 + $0x68] sm:$0xff] %v771
  %788 = vst [vmem:[%s5 + $0x70] sm:$0xff] %v772
  %789 = vst [vmem:[%s5 + $0x78] sm:$0xff] %v773
  // Predicated region
  $region22: #{gat_forward.7} parent=0 // pred_check
    _
  $region23: #{gat_forward.7} parent=0 // pred_check_branch
    %791 = sbr.rel (0) target = $region25
  $region24: #{gat_forward.7} parent=0 // pred_region
    _
  $region25: #{gat_forward.7} parent=0 // pred_fallthru
    _
  // Predicated region
  $region26: #{gat_forward.7} parent=0 // pred_check
    _
  $region27: #{gat_forward.7} parent=0 // pred_check_branch
    %793 = sbr.rel (0) target = $region29
  $region28: #{gat_forward.7} parent=0 // pred_region
    _
  $region29: #{gat_forward.7} parent=0 // pred_fallthru
    _

// kernel: gat_forward.5
$region0: #{gat_forward.5}
  #allocation0 [shape = 'u32[]', space=smem, size = 0x4, offset = 0x4, fixed_abs, tag = 'smem constant byte address 0x4 - core index']
  #allocation1 [shape = 'u32[144,128]{1,0:T(1,128)}', space=vmem, size = 0x12000, scoped, tag = 'internal scratch']
  %s0 = inlined_call_operand.vmem [shape: s8[128,128], index: 0, kind: input, shape index: {}]
  %s1 = inlined_call_operand.vmem [shape: f32[128,8], index: 1, kind: input, shape index: {}]
  %s2 = inlined_call_operand.vmem [shape: f32[8,128], index: 2, kind: input, shape index: {}]
  %s3 = inlined_call_operand.vmem [shape: bf16[128,128], index: 3, kind: input, shape index: {}]
  %s4 = inlined_call_operand.vmem [shape: f32[1,128], index: 4, kind: input, shape index: {}]
  %s5 = inlined_call_operand.vmem [shape: bf16[128,128], index: 5, kind: output, shape index: {}]
  %s6 = sld [smem:[#allocation0]]
  $region30: #{gat_forward.5} parent=0
    _
  %s8 = ssub.s32 1, %s6
  %s9 = scalar_select 0, %s8, %s6
  // Predicated region
  $region2: #{gat_forward.5} parent=0 // pred_check
    _
  $region3: #{gat_forward.5} parent=0 // pred_check_branch
    %11 = sbr.rel (0) target = $region5
  $region4: #{gat_forward.5} parent=0 // pred_region
    _
  $region5: #{gat_forward.5} parent=0 // pred_fallthru
    _
  // Predicated region
  $region6: #{gat_forward.5} parent=0 // pred_check
    _
  $region7: #{gat_forward.5} parent=0 // pred_check_branch
    %13 = sbr.rel (0) target = $region9
  $region8: #{gat_forward.5} parent=0 // pred_region
    _
  $region9: #{gat_forward.5} parent=0 // pred_fallthru
    _
  // Predicated region
  $region10: #{gat_forward.5} parent=0 // pred_check
    _
  $region11: #{gat_forward.5} parent=0 // pred_check_branch
    %15 = sbr.rel (0) target = $region13
  $region12: #{gat_forward.5} parent=0 // pred_region
    _
  $region13: #{gat_forward.5} parent=0 // pred_fallthru
    _
  // Predicated region
  $region14: #{gat_forward.5} parent=0 // pred_check
    _
  $region15: #{gat_forward.5} parent=0 // pred_check_branch
    %17 = sbr.rel (0) target = $region17
  $region16: #{gat_forward.5} parent=0 // pred_region
    _
  $region17: #{gat_forward.5} parent=0 // pred_fallthru
    _
  // Predicated region
  $region18: #{gat_forward.5} parent=0 // pred_check
    _
  $region19: #{gat_forward.5} parent=0 // pred_check_branch
    %19 = sbr.rel (0) target = $region21
  $region20: #{gat_forward.5} parent=0 // pred_region
    _
  $region21: #{gat_forward.5} parent=0 // pred_fallthru
    _
  %v22 = vld [vmem:[%s0] sm:$0x3]
  %v23 = vld [vmem:[%s0 + $0x2] sm:$0x3]
  %v24 = vld [vmem:[%s0 + $0x4] sm:$0x3]
  %v25 = vld [vmem:[%s0 + $0x6] sm:$0x3]
  %v26 = vld [vmem:[%s0 + $0x8] sm:$0x3]
  %v27 = vld [vmem:[%s0 + $0xa] sm:$0x3]
  %v28 = vld [vmem:[%s0 + $0xc] sm:$0x3]
  %v29 = vld [vmem:[%s0 + $0xe] sm:$0x3]
  %v30 = vld [vmem:[%s0 + $0x10] sm:$0x3]
  %v31 = vld [vmem:[%s0 + $0x12] sm:$0x3]
  %v32 = vld [vmem:[%s0 + $0x14] sm:$0x3]
  %v33 = vld [vmem:[%s0 + $0x16] sm:$0x3]
  %v34 = vld [vmem:[%s0 + $0x18] sm:$0x3]
  %v35 = vld [vmem:[%s0 + $0x1a] sm:$0x3]
  %v36 = vld [vmem:[%s0 + $0x1c] sm:$0x3]
  %v37 = vld [vmem:[%s0 + $0x1e] sm:$0x3]
  %vm38 = vnez %v22
  %vm39 = vnez %v23
  %vm40 = vnez %v24
  %vm41 = vnez %v25
  %vm42 = vnez %v26
  %vm43 = vnez %v27
  %vm44 = vnez %v28
  %vm45 = vnez %v29
  %vm46 = vnez %v30
  %vm47 = vnez %v31
  %vm48 = vnez %v32
  %vm49 = vnez %v33
  %vm50 = vnez %v34
  %vm51 = vnez %v35
  %vm52 = vnez %v36
  %vm53 = vnez %v37
  %v54 = vld [vmem:[%s1] sm:$0xff]
  %v55 = vld [vmem:[%s1 + $0x8] sm:$0xff]
  %v56 = vld [vmem:[%s1 + $0x10] sm:$0xff]
  %v57 = vld [vmem:[%s1 + $0x18] sm:$0xff]
  %v58 = vld [vmem:[%s1 + $0x20] sm:$0xff]
  %v59 = vld [vmem:[%s1 + $0x28] sm:$0xff]
  %v60 = vld [vmem:[%s1 + $0x30] sm:$0xff]
  %v61 = vld [vmem:[%s1 + $0x38] sm:$0xff]
  %v62 = vld [vmem:[%s1 + $0x40] sm:$0xff]
  %v63 = vld [vmem:[%s1 + $0x48] sm:$0xff]
  %v64 = vld [vmem:[%s1 + $0x50] sm:$0xff]
  %v65 = vld [vmem:[%s1 + $0x58] sm:$0xff]
  %v66 = vld [vmem:[%s1 + $0x60] sm:$0xff]
  %v67 = vld [vmem:[%s1 + $0x68] sm:$0xff]
  %v68 = vld [vmem:[%s1 + $0x70] sm:$0xff]
  %v69 = vld [vmem:[%s1 + $0x78] sm:$0xff]
  %v70 = vld [vmem:[%s2] sm:$0xff]
  %v71 = vld [vmem:[%s3] sm:$0xf]
  %v72 = vld [vmem:[%s3 + $0x4] sm:$0xf]
  %v73 = vld [vmem:[%s3 + $0x8] sm:$0xf]
  %v74 = vld [vmem:[%s3 + $0xc] sm:$0xf]
  %v75 = vld [vmem:[%s3 + $0x10] sm:$0xf]
  %v76 = vld [vmem:[%s3 + $0x14] sm:$0xf]
  %v77 = vld [vmem:[%s3 + $0x18] sm:$0xf]
  %v78 = vld [vmem:[%s3 + $0x1c] sm:$0xf]
  %v79 = vld [vmem:[%s3 + $0x20] sm:$0xf]
  %v80 = vld [vmem:[%s3 + $0x24] sm:$0xf]
  %v81 = vld [vmem:[%s3 + $0x28] sm:$0xf]
  %v82 = vld [vmem:[%s3 + $0x2c] sm:$0xf]
  %v83 = vld [vmem:[%s3 + $0x30] sm:$0xf]
  %v84 = vld [vmem:[%s3 + $0x34] sm:$0xf]
  %v85 = vld [vmem:[%s3 + $0x38] sm:$0xf]
  %v86 = vld [vmem:[%s3 + $0x3c] sm:$0xf]
  %v87 = vunpack.c.l.bf16 %v71
  %v88 = vunpack.c.l.bf16 %v72
  %v89 = vunpack.c.l.bf16 %v73
  %v90 = vunpack.c.l.bf16 %v74
  %v91 = vunpack.c.l.bf16 %v75
  %v92 = vunpack.c.l.bf16 %v76
  %v93 = vunpack.c.l.bf16 %v77
  %v94 = vunpack.c.l.bf16 %v78
  %v95 = vunpack.c.l.bf16 %v79
  %v96 = vunpack.c.l.bf16 %v80
  %v97 = vunpack.c.l.bf16 %v81
  %v98 = vunpack.c.l.bf16 %v82
  %v99 = vunpack.c.l.bf16 %v83
  %v100 = vunpack.c.l.bf16 %v84
  %v101 = vunpack.c.l.bf16 %v85
  %v102 = vunpack.c.l.bf16 %v86
  %v103 = vlaneseq
  %v104 = vand.u32 %v103, 127
  %106 = vset.pattern.permute.xlu0 0
  %107 = vperm.xlu0 %106, %v54
  %v108 = vpop.permute.xlu0 %107
  %111 = vset.pattern.permute.xlu0 0
  %112 = vperm.xlu0 %111, %v55
  %v113 = vpop.permute.xlu0 %112
  %116 = vset.pattern.permute.xlu0 0
  %117 = vperm.xlu0 %116, %v56
  %v118 = vpop.permute.xlu0 %117
  %121 = vset.pattern.permute.xlu0 0
  %122 = vperm.xlu0 %121, %v57
  %v123 = vpop.permute.xlu0 %122
  %126 = vset.pattern.permute.xlu0 0
  %127 = vperm.xlu0 %126, %v58
  %v128 = vpop.permute.xlu0 %127
  %131 = vset.pattern.permute.xlu0 0
  %132 = vperm.xlu0 %131, %v59
  %v133 = vpop.permute.xlu0 %132
  %136 = vset.pattern.permute.xlu0 0
  %137 = vperm.xlu0 %136, %v60
  %v138 = vpop.permute.xlu0 %137
  %141 = vset.pattern.permute.xlu0 0
  %142 = vperm.xlu0 %141, %v61
  %v143 = vpop.permute.xlu0 %142
  %146 = vset.pattern.permute.xlu0 0
  %147 = vperm.xlu0 %146, %v62
  %v148 = vpop.permute.xlu0 %147
  %151 = vset.pattern.permute.xlu0 0
  %152 = vperm.xlu0 %151, %v63
  %v153 = vpop.permute.xlu0 %152
  %156 = vset.pattern.permute.xlu0 0
  %157 = vperm.xlu0 %156, %v64
  %v158 = vpop.permute.xlu0 %157
  %161 = vset.pattern.permute.xlu0 0
  %162 = vperm.xlu0 %161, %v65
  %v163 = vpop.permute.xlu0 %162
  %166 = vset.pattern.permute.xlu0 0
  %167 = vperm.xlu0 %166, %v66
  %v168 = vpop.permute.xlu0 %167
  %171 = vset.pattern.permute.xlu0 0
  %172 = vperm.xlu0 %171, %v67
  %v173 = vpop.permute.xlu0 %172
  %176 = vset.pattern.permute.xlu0 0
  %177 = vperm.xlu0 %176, %v68
  %v178 = vpop.permute.xlu0 %177
  %181 = vset.pattern.permute.xlu0 0
  %182 = vperm.xlu0 %181, %v69
  %v183 = vpop.permute.xlu0 %182
  %v185 = vlaneseq
  %v186 = vshrl.u32 %v185, 7
  %v187 = vsub.s32 0, %v186
  %v188 = vrot.slane %v70, %v187
  %v189 = vadd.f32 %v108, %v188
  %v190 = vadd.f32 %v113, %v188
  %v191 = vadd.f32 %v118, %v188
  %v192 = vadd.f32 %v123, %v188
  %v193 = vadd.f32 %v128, %v188
  %v194 = vadd.f32 %v133, %v188
  %v195 = vadd.f32 %v138, %v188
  %v196 = vadd.f32 %v143, %v188
  %v197 = vadd.f32 %v148, %v188
  %v198 = vadd.f32 %v153, %v188
  %v199 = vadd.f32 %v158, %v188
  %v200 = vadd.f32 %v163, %v188
  %v201 = vadd.f32 %v168, %v188
  %v202 = vadd.f32 %v173, %v188
  %v203 = vadd.f32 %v178, %v188
  %v204 = vadd.f32 %v183, %v188
  %v205 = vmul.f32 %v189, 0.2
  %v206 = vmul.f32 %v190, 0.2
  %v207 = vmul.f32 %v191, 0.2
  %v208 = vmul.f32 %v192, 0.2
  %v209 = vmul.f32 %v193, 0.2
  %v210 = vmul.f32 %v194, 0.2
  %v211 = vmul.f32 %v195, 0.2
  %v212 = vmul.f32 %v196, 0.2
  %v213 = vmul.f32 %v197, 0.2
  %v214 = vmul.f32 %v198, 0.2
  %v215 = vmul.f32 %v199, 0.2
  %v216 = vmul.f32 %v200, 0.2
  %v217 = vmul.f32 %v201, 0.2
  %v218 = vmul.f32 %v202, 0.2
  %v219 = vmul.f32 %v203, 0.2
  %v220 = vmul.f32 %v204, 0.2
  %v221 = vmax.f32 %v189, %v205
  %v222 = vmax.f32 %v190, %v206
  %v223 = vmax.f32 %v191, %v207
  %v224 = vmax.f32 %v192, %v208
  %v225 = vmax.f32 %v193, %v209
  %v226 = vmax.f32 %v194, %v210
  %v227 = vmax.f32 %v195, %v211
  %v228 = vmax.f32 %v196, %v212
  %v229 = vmax.f32 %v197, %v213
  %v230 = vmax.f32 %v198, %v214
  %v231 = vmax.f32 %v199, %v215
  %v232 = vmax.f32 %v200, %v216
  %v233 = vmax.f32 %v201, %v217
  %v234 = vmax.f32 %v202, %v218
  %v235 = vmax.f32 %v203, %v219
  %v236 = vmax.f32 %v204, %v220
  %v237 = vsel %vm38, 16843009, 0
  %v238 = vsel %vm39, 16843009, 0
  %v239 = vsel %vm40, 16843009, 0
  %v240 = vsel %vm41, 16843009, 0
  %v241 = vsel %vm42, 16843009, 0
  %v242 = vsel %vm43, 16843009, 0
  %v243 = vsel %vm44, 16843009, 0
  %v244 = vsel %vm45, 16843009, 0
  %v245 = vsel %vm46, 16843009, 0
  %v246 = vsel %vm47, 16843009, 0
  %v247 = vsel %vm48, 16843009, 0
  %v248 = vsel %vm49, 16843009, 0
  %v249 = vsel %vm50, 16843009, 0
  %v250 = vsel %vm51, 16843009, 0
  %v251 = vsel %vm52, 16843009, 0
  %v252 = vsel %vm53, 16843009, 0
  %v253 = vunpack.c.0.s8 %v237
  %v254 = vunpack.c.0.s8 %v238
  %v255 = vunpack.c.0.s8 %v239
  %v256 = vunpack.c.0.s8 %v240
  %v257 = vunpack.c.0.s8 %v241
  %v258 = vunpack.c.0.s8 %v242
  %v259 = vunpack.c.0.s8 %v243
  %v260 = vunpack.c.0.s8 %v244
  %v261 = vunpack.c.0.s8 %v245
  %v262 = vunpack.c.0.s8 %v246
  %v263 = vunpack.c.0.s8 %v247
  %v264 = vunpack.c.0.s8 %v248
  %v265 = vunpack.c.0.s8 %v249
  %v266 = vunpack.c.0.s8 %v250
  %v267 = vunpack.c.0.s8 %v251
  %v268 = vunpack.c.0.s8 %v252
  %vm269 = vcmp.ne.s32.totalorder %v253, 0
  %vm270 = vcmp.ne.s32.totalorder %v254, 0
  %vm271 = vcmp.ne.s32.totalorder %v255, 0
  %vm272 = vcmp.ne.s32.totalorder %v256, 0
  %vm273 = vcmp.ne.s32.totalorder %v257, 0
  %vm274 = vcmp.ne.s32.totalorder %v258, 0
  %vm275 = vcmp.ne.s32.totalorder %v259, 0
  %vm276 = vcmp.ne.s32.totalorder %v260, 0
  %vm277 = vcmp.ne.s32.totalorder %v261, 0
  %vm278 = vcmp.ne.s32.totalorder %v262, 0
  %vm279 = vcmp.ne.s32.totalorder %v263, 0
  %vm280 = vcmp.ne.s32.totalorder %v264, 0
  %vm281 = vcmp.ne.s32.totalorder %v265, 0
  %vm282 = vcmp.ne.s32.totalorder %v266, 0
  %vm283 = vcmp.ne.s32.totalorder %v267, 0
  %vm284 = vcmp.ne.s32.totalorder %v268, 0
  %v285 = vsel %vm269, %v221, -1e+30
  %v286 = vsel %vm270, %v222, -1e+30
  %v287 = vsel %vm271, %v223, -1e+30
  %v288 = vsel %vm272, %v224, -1e+30
  %v289 = vsel %vm273, %v225, -1e+30
  %v290 = vsel %vm274, %v226, -1e+30
  %v291 = vsel %vm275, %v227, -1e+30
  %v292 = vsel %vm276, %v228, -1e+30
  %v293 = vsel %vm277, %v229, -1e+30
  %v294 = vsel %vm278, %v230, -1e+30
  %v295 = vsel %vm279, %v231, -1e+30
  %v296 = vsel %vm280, %v232, -1e+30
  %v297 = vsel %vm281, %v233, -1e+30
  %v298 = vsel %vm282, %v234, -1e+30
  %v299 = vsel %vm283, %v235, -1e+30
  %v300 = vsel %vm284, %v236, -1e+30
  %301 = vmax.xlane.f32.xlu0 %v285
  %v302 = vpop.xlane.xlu0 %301
  %303 = vmax.xlane.f32.xlu0 %v286
  %v304 = vpop.xlane.xlu0 %303
  %305 = vmax.xlane.f32.xlu0 %v287
  %v306 = vpop.xlane.xlu0 %305
  %307 = vmax.xlane.f32.xlu0 %v288
  %v308 = vpop.xlane.xlu0 %307
  %309 = vmax.xlane.f32.xlu0 %v289
  %v310 = vpop.xlane.xlu0 %309
  %311 = vmax.xlane.f32.xlu0 %v290
  %v312 = vpop.xlane.xlu0 %311
  %313 = vmax.xlane.f32.xlu0 %v291
  %v314 = vpop.xlane.xlu0 %313
  %315 = vmax.xlane.f32.xlu0 %v292
  %v316 = vpop.xlane.xlu0 %315
  %317 = vmax.xlane.f32.xlu0 %v293
  %v318 = vpop.xlane.xlu0 %317
  %319 = vmax.xlane.f32.xlu0 %v294
  %v320 = vpop.xlane.xlu0 %319
  %321 = vmax.xlane.f32.xlu0 %v295
  %v322 = vpop.xlane.xlu0 %321
  %323 = vmax.xlane.f32.xlu0 %v296
  %v324 = vpop.xlane.xlu0 %323
  %325 = vmax.xlane.f32.xlu0 %v297
  %v326 = vpop.xlane.xlu0 %325
  %327 = vmax.xlane.f32.xlu0 %v298
  %v328 = vpop.xlane.xlu0 %327
  %329 = vmax.xlane.f32.xlu0 %v299
  %v330 = vpop.xlane.xlu0 %329
  %331 = vmax.xlane.f32.xlu0 %v300
  %v332 = vpop.xlane.xlu0 %331
  %v333 = vsub.f32 %v285, %v302
  %v334 = vsub.f32 %v286, %v304
  %v335 = vsub.f32 %v287, %v306
  %v336 = vsub.f32 %v288, %v308
  %v337 = vsub.f32 %v289, %v310
  %v338 = vsub.f32 %v290, %v312
  %v339 = vsub.f32 %v291, %v314
  %v340 = vsub.f32 %v292, %v316
  %v341 = vsub.f32 %v293, %v318
  %v342 = vsub.f32 %v294, %v320
  %v343 = vsub.f32 %v295, %v322
  %v344 = vsub.f32 %v296, %v324
  %v345 = vsub.f32 %v297, %v326
  %v346 = vsub.f32 %v298, %v328
  %v347 = vsub.f32 %v299, %v330
  %v348 = vsub.f32 %v300, %v332
  %v349 = vmul.f32 %v333, 1.442695
  %v350 = vpow.pop %v349
  %v351 = vmul.f32 %v334, 1.442695
  %v352 = vpow.pop %v351
  %v353 = vmul.f32 %v335, 1.442695
  %v354 = vpow.pop %v353
  %v355 = vmul.f32 %v336, 1.442695
  %v356 = vpow.pop %v355
  %v357 = vmul.f32 %v337, 1.442695
  %v358 = vpow.pop %v357
  %v359 = vmul.f32 %v338, 1.442695
  %v360 = vpow.pop %v359
  %v361 = vmul.f32 %v339, 1.442695
  %v362 = vpow.pop %v361
  %v363 = vmul.f32 %v340, 1.442695
  %v364 = vpow.pop %v363
  %v365 = vmul.f32 %v341, 1.442695
  %v366 = vpow.pop %v365
  %v367 = vmul.f32 %v342, 1.442695
  %v368 = vpow.pop %v367
  %v369 = vmul.f32 %v343, 1.442695
  %v370 = vpow.pop %v369
  %v371 = vmul.f32 %v344, 1.442695
  %v372 = vpow.pop %v371
  %v373 = vmul.f32 %v345, 1.442695
  %v374 = vpow.pop %v373
  %v375 = vmul.f32 %v346, 1.442695
  %v376 = vpow.pop %v375
  %v377 = vmul.f32 %v347, 1.442695
  %v378 = vpow.pop %v377
  %v379 = vmul.f32 %v348, 1.442695
  %v380 = vpow.pop %v379
  %381 = vadd.xlane.f32.xlu0 %v350
  %v382 = vpop.xlane.xlu0 %381
  %383 = vadd.xlane.f32.xlu0 %v352
  %v384 = vpop.xlane.xlu0 %383
  %385 = vadd.xlane.f32.xlu0 %v354
  %v386 = vpop.xlane.xlu0 %385
  %387 = vadd.xlane.f32.xlu0 %v356
  %v388 = vpop.xlane.xlu0 %387
  %389 = vadd.xlane.f32.xlu0 %v358
  %v390 = vpop.xlane.xlu0 %389
  %391 = vadd.xlane.f32.xlu0 %v360
  %v392 = vpop.xlane.xlu0 %391
  %393 = vadd.xlane.f32.xlu0 %v362
  %v394 = vpop.xlane.xlu0 %393
  %395 = vadd.xlane.f32.xlu0 %v364
  %v396 = vpop.xlane.xlu0 %395
  %397 = vadd.xlane.f32.xlu0 %v366
  %v398 = vpop.xlane.xlu0 %397
  %399 = vadd.xlane.f32.xlu0 %v368
  %v400 = vpop.xlane.xlu0 %399
  %401 = vadd.xlane.f32.xlu0 %v370
  %v402 = vpop.xlane.xlu0 %401
  %403 = vadd.xlane.f32.xlu0 %v372
  %v404 = vpop.xlane.xlu0 %403
  %405 = vadd.xlane.f32.xlu0 %v374
  %v406 = vpop.xlane.xlu0 %405
  %407 = vadd.xlane.f32.xlu0 %v376
  %v408 = vpop.xlane.xlu0 %407
  %409 = vadd.xlane.f32.xlu0 %v378
  %v410 = vpop.xlane.xlu0 %409
  %411 = vadd.xlane.f32.xlu0 %v380
  %v412 = vpop.xlane.xlu0 %411
  %v413 = vrcp.pop %v382
  %v414 = vrcp.pop %v384
  %v415 = vrcp.pop %v386
  %v416 = vrcp.pop %v388
  %v417 = vrcp.pop %v390
  %v418 = vrcp.pop %v392
  %v419 = vrcp.pop %v394
  %v420 = vrcp.pop %v396
  %v421 = vrcp.pop %v398
  %v422 = vrcp.pop %v400
  %v423 = vrcp.pop %v402
  %v424 = vrcp.pop %v404
  %v425 = vrcp.pop %v406
  %v426 = vrcp.pop %v408
  %v427 = vrcp.pop %v410
  %v428 = vrcp.pop %v412
  %v429 = vmul.f32 %v350, %v413
  %v430 = vmul.f32 %v352, %v414
  %v431 = vmul.f32 %v354, %v415
  %v432 = vmul.f32 %v356, %v416
  %v433 = vmul.f32 %v358, %v417
  %v434 = vmul.f32 %v360, %v418
  %v435 = vmul.f32 %v362, %v419
  %v436 = vmul.f32 %v364, %v420
  %v437 = vmul.f32 %v366, %v421
  %v438 = vmul.f32 %v368, %v422
  %v439 = vmul.f32 %v370, %v423
  %v440 = vmul.f32 %v372, %v424
  %v441 = vmul.f32 %v374, %v425
  %v442 = vmul.f32 %v376, %v426
  %v443 = vmul.f32 %v378, %v427
  %v444 = vmul.f32 %v380, %v428
  %445 = vmatprep.subr.mxu0 0.0
  %446 = vmatpush1.msra.mxu0 %v102
  %447 = vmatprep.subr.mxu0 0.0
  %448 = vmatpush1.msra.mxu0 %v101
  %449 = vmatprep.subr.mxu0 0.0
  %450 = vmatpush1.msra.mxu0 %v100
  %451 = vmatprep.subr.mxu0 0.0
  %452 = vmatpush1.msra.mxu0 %v99
  %453 = vmatprep.subr.mxu0 0.0
  %454 = vmatpush1.msra.mxu0 %v98
  %455 = vmatprep.subr.mxu0 0.0
  %456 = vmatpush1.msra.mxu0 %v97
  %457 = vmatprep.subr.mxu0 0.0
  %458 = vmatpush1.msra.mxu0 %v96
  %459 = vmatprep.subr.mxu0 0.0
  %460 = vmatpush1.msra.mxu0 %v95
  %461 = vmatprep.subr.mxu0 0.0
  %462 = vmatpush1.msra.mxu0 %v94
  %463 = vmatprep.subr.mxu0 0.0
  %464 = vmatpush1.msra.mxu0 %v93
  %465 = vmatprep.subr.mxu0 0.0
  %466 = vmatpush1.msra.mxu0 %v92
  %467 = vmatprep.subr.mxu0 0.0
  %468 = vmatpush1.msra.mxu0 %v91
  %469 = vmatprep.subr.mxu0 0.0
  %470 = vmatpush1.msra.mxu0 %v90
  %471 = vmatprep.subr.mxu0 0.0
  %472 = vmatpush1.msra.mxu0 %v89
  %473 = vmatprep.subr.mxu0 0.0
  %474 = vmatpush1.msra.mxu0 %v88
  %475 = vmatprep.subr.mxu0 0.0
  %476 = vmatpush1.msra.mxu0 %v87
  %477 = vmatprep.subr.mxu0 0.0
  %478 = vmatpush2.msra.mxu0 0.0
  %479 = vmatprep.subr.mxu0 0.0
  %480 = vmatpush2.msra.mxu0 0.0
  %481 = vmatprep.subr.mxu0 0.0
  %482 = vmatpush2.msra.mxu0 0.0
  %483 = vmatprep.subr.mxu0 0.0
  %484 = vmatpush2.msra.mxu0 0.0
  %485 = vmatprep.subr.mxu0 0.0
  %486 = vmatpush2.msra.mxu0 0.0
  %487 = vmatprep.subr.mxu0 0.0
  %488 = vmatpush2.msra.mxu0 0.0
  %489 = vmatprep.subr.mxu0 0.0
  %490 = vmatpush2.msra.mxu0 0.0
  %491 = vmatprep.subr.mxu0 0.0
  %492 = vmatpush2.msra.mxu0 0.0
  %493 = vmatprep.subr.mxu0 0.0
  %494 = vmatpush2.msra.mxu0 0.0
  %495 = vmatprep.subr.mxu0 0.0
  %496 = vmatpush2.msra.mxu0 0.0
  %497 = vmatprep.subr.mxu0 0.0
  %498 = vmatpush2.msra.mxu0 0.0
  %499 = vmatprep.subr.mxu0 0.0
  %500 = vmatpush2.msra.mxu0 0.0
  %501 = vmatprep.subr.mxu0 0.0
  %502 = vmatpush2.msra.mxu0 0.0
  %503 = vmatprep.subr.mxu0 0.0
  %504 = vmatpush2.msra.mxu0 0.0
  %505 = vmatprep.subr.mxu0 0.0
  %506 = vmatpush2.msra.mxu0 0.0
  %507 = vmatprep.subr.mxu0 0.0
  %508 = vmatpush2.msra.mxu0 0.0
  %509 = vmatprep.mubr.f32.mxu0 0.0
  %510 = vmatmul.mubr.f32.gmra.mxu0 %v429
  %v511 = vpop.f32.mrf.mxu0
  %v512 = vadd.f32 0.0, %v511
  %v513 = vpop.f32.mrf.mxu0
  %514 = vmatprep.mubr.f32.mxu0 0.0
  %515 = vmatmul.mubr.f32.gmra.mxu0 %v430
  %v516 = vpop.f32.mrf.mxu0
  %v517 = vadd.f32 0.0, %v516
  %v518 = vpop.f32.mrf.mxu0
  %519 = vmatprep.mubr.f32.mxu0 0.0
  %520 = vmatmul.mubr.f32.gmra.mxu0 %v431
  %v521 = vpop.f32.mrf.mxu0
  %v522 = vadd.f32 0.0, %v521
  %v523 = vpop.f32.mrf.mxu0
  %524 = vmatprep.mubr.f32.mxu0 0.0
  %525 = vmatmul.mubr.f32.gmra.mxu0 %v432
  %v526 = vpop.f32.mrf.mxu0
  %v527 = vadd.f32 0.0, %v526
  %v528 = vpop.f32.mrf.mxu0
  %529 = vmatprep.mubr.f32.mxu0 0.0
  %530 = vmatmul.mubr.f32.gmra.mxu0 %v433
  %v531 = vpop.f32.mrf.mxu0
  %v532 = vadd.f32 0.0, %v531
  %v533 = vpop.f32.mrf.mxu0
  %534 = vmatprep.mubr.f32.mxu0 0.0
  %535 = vmatmul.mubr.f32.gmra.mxu0 %v434
  %v536 = vpop.f32.mrf.mxu0
  %v537 = vadd.f32 0.0, %v536
  %v538 = vpop.f32.mrf.mxu0
  %539 = vmatprep.mubr.f32.mxu0 0.0
  %540 = vmatmul.mubr.f32.gmra.mxu0 %v435
  %v541 = vpop.f32.mrf.mxu0
  %v542 = vadd.f32 0.0, %v541
  %v543 = vpop.f32.mrf.mxu0
  %544 = vmatprep.mubr.f32.mxu0 0.0
  %545 = vmatmul.mubr.f32.gmra.mxu0 %v436
  %v546 = vpop.f32.mrf.mxu0
  %v547 = vadd.f32 0.0, %v546
  %v548 = vpop.f32.mrf.mxu0
  %549 = vmatprep.mubr.f32.mxu0 0.0
  %550 = vmatmul.mubr.f32.gmra.mxu0 %v437
  %v551 = vpop.f32.mrf.mxu0
  %v552 = vadd.f32 0.0, %v551
  %v553 = vpop.f32.mrf.mxu0
  %554 = vmatprep.mubr.f32.mxu0 0.0
  %555 = vmatmul.mubr.f32.gmra.mxu0 %v438
  %v556 = vpop.f32.mrf.mxu0
  %v557 = vadd.f32 0.0, %v556
  %v558 = vpop.f32.mrf.mxu0
  %559 = vmatprep.mubr.f32.mxu0 0.0
  %560 = vmatmul.mubr.f32.gmra.mxu0 %v439
  %v561 = vpop.f32.mrf.mxu0
  %v562 = vadd.f32 0.0, %v561
  %v563 = vpop.f32.mrf.mxu0
  %564 = vmatprep.mubr.f32.mxu0 0.0
  %565 = vmatmul.mubr.f32.gmra.mxu0 %v440
  %v566 = vpop.f32.mrf.mxu0
  %v567 = vadd.f32 0.0, %v566
  %v568 = vpop.f32.mrf.mxu0
  %569 = vmatprep.mubr.f32.mxu0 0.0
  %570 = vmatmul.mubr.f32.gmra.mxu0 %v441
  %v571 = vpop.f32.mrf.mxu0
  %v572 = vadd.f32 0.0, %v571
  %v573 = vpop.f32.mrf.mxu0
  %574 = vmatprep.mubr.f32.mxu0 0.0
  %575 = vmatmul.mubr.f32.gmra.mxu0 %v442
  %v576 = vpop.f32.mrf.mxu0
  %v577 = vadd.f32 0.0, %v576
  %v578 = vpop.f32.mrf.mxu0
  %579 = vmatprep.mubr.f32.mxu0 0.0
  %580 = vmatmul.mubr.f32.gmra.mxu0 %v443
  %v581 = vpop.f32.mrf.mxu0
  %v582 = vadd.f32 0.0, %v581
  %v583 = vpop.f32.mrf.mxu0
  %584 = vmatprep.mubr.f32.mxu0 0.0
  %585 = vmatmul.mubr.f32.gmra.mxu0 %v444
  %v586 = vpop.f32.mrf.mxu0
  %v587 = vadd.f32 0.0, %v586
  %v588 = vpop.f32.mrf.mxu0
  %589 = vdwg.mxu0
  %vm590 = vcmp.ge.s32.totalorder %v104, 0
  %vm591 = vcmp.lt.s32.totalorder %v104, 8
  %vm592 = vmand %vm590, %vm591
  %v593 = vsel %vm592, %v512, 0.0
  %v594 = vsel %vm592, %v517, 0.0
  %v595 = vsel %vm592, %v522, 0.0
  %v596 = vsel %vm592, %v527, 0.0
  %v597 = vsel %vm592, %v532, 0.0
  %v598 = vsel %vm592, %v537, 0.0
  %v599 = vsel %vm592, %v542, 0.0
  %v600 = vsel %vm592, %v547, 0.0
  %v601 = vsel %vm592, %v552, 0.0
  %v602 = vsel %vm592, %v557, 0.0
  %v603 = vsel %vm592, %v562, 0.0
  %v604 = vsel %vm592, %v567, 0.0
  %v605 = vsel %vm592, %v572, 0.0
  %v606 = vsel %vm592, %v577, 0.0
  %v607 = vsel %vm592, %v582, 0.0
  %v608 = vsel %vm592, %v587, 0.0
  %609 = vset.pattern.permute.xlu0 1
  %610 = vperm.xlu0 %609, %v54
  %v611 = vpop.permute.xlu0 %610
  %613 = vset.pattern.permute.xlu0 1
  %614 = vperm.xlu0 %613, %v55
  %v615 = vpop.permute.xlu0 %614
  %617 = vset.pattern.permute.xlu0 1
  %618 = vperm.xlu0 %617, %v56
  %v619 = vpop.permute.xlu0 %618
  %621 = vset.pattern.permute.xlu0 1
  %622 = vperm.xlu0 %621, %v57
  %v623 = vpop.permute.xlu0 %622
  %625 = vset.pattern.permute.xlu0 1
  %626 = vperm.xlu0 %625, %v58
  %v627 = vpop.permute.xlu0 %626
  %629 = vset.pattern.permute.xlu0 1
  %630 = vperm.xlu0 %629, %v59
  %v631 = vpop.permute.xlu0 %630
  %633 = vset.pattern.permute.xlu0 1
  %634 = vperm.xlu0 %633, %v60
  %v635 = vpop.permute.xlu0 %634
  %637 = vset.pattern.permute.xlu0 1
  %638 = vperm.xlu0 %637, %v61
  %v639 = vpop.permute.xlu0 %638
  %641 = vset.pattern.permute.xlu0 1
  %642 = vperm.xlu0 %641, %v62
  %v643 = vpop.permute.xlu0 %642
  %645 = vset.pattern.permute.xlu0 1
  %646 = vperm.xlu0 %645, %v63
  %v647 = vpop.permute.xlu0 %646
  %649 = vset.pattern.permute.xlu0 1
  %650 = vperm.xlu0 %649, %v64
  %v651 = vpop.permute.xlu0 %650
  %653 = vset.pattern.permute.xlu0 1
  %654 = vperm.xlu0 %653, %v65
  %v655 = vpop.permute.xlu0 %654
  %657 = vset.pattern.permute.xlu0 1
  %658 = vperm.xlu0 %657, %v66
  %v659 = vpop.permute.xlu0 %658
  %661 = vset.pattern.permute.xlu0 1
  %662 = vperm.xlu0 %661, %v67
  %v663 = vpop.permute.xlu0 %662
  %665 = vset.pattern.permute.xlu0 1
  %666 = vperm.xlu0 %665, %v68
  %v667 = vpop.permute.xlu0 %666
  %669 = vset.pattern.permute.xlu0 1
  %670 = vperm.xlu0 %669, %v69
  %v671 = vpop.permute.xlu0 %670
  %v673 = vlaneseq
  %v674 = vshrl.u32 %v673, 7
  %v675 = vsub.s32 1, %v674
  %v676 = vrot.slane %v70, %v675
  %v677 = vadd.f32 %v611, %v676
  %v678 = vadd.f32 %v615, %v676
  %v679 = vadd.f32 %v619, %v676
  %v680 = vadd.f32 %v623, %v676
  %v681 = vadd.f32 %v627, %v676
  %v682 = vadd.f32 %v631, %v676
  %v683 = vadd.f32 %v635, %v676
  %v684 = vadd.f32 %v639, %v676
  %v685 = vadd.f32 %v643, %v676
  %v686 = vadd.f32 %v647, %v676
  %v687 = vadd.f32 %v651, %v676
  %v688 = vadd.f32 %v655, %v676
  %v689 = vadd.f32 %v659, %v676
  %v690 = vadd.f32 %v663, %v676
  %v691 = vadd.f32 %v667, %v676
  %v692 = vadd.f32 %v671, %v676
  %v693 = vmul.f32 %v677, 0.2
  %v694 = vmul.f32 %v678, 0.2
  %v695 = vmul.f32 %v679, 0.2
  %v696 = vmul.f32 %v680, 0.2
  %v697 = vmul.f32 %v681, 0.2
  %v698 = vmul.f32 %v682, 0.2
  %v699 = vmul.f32 %v683, 0.2
  %v700 = vmul.f32 %v684, 0.2
  %v701 = vmul.f32 %v685, 0.2
  %v702 = vmul.f32 %v686, 0.2
  %v703 = vmul.f32 %v687, 0.2
  %v704 = vmul.f32 %v688, 0.2
  %v705 = vmul.f32 %v689, 0.2
  %v706 = vmul.f32 %v690, 0.2
  %v707 = vmul.f32 %v691, 0.2
  %v708 = vmul.f32 %v692, 0.2
  %v709 = vmax.f32 %v677, %v693
  %v710 = vmax.f32 %v678, %v694
  %v711 = vmax.f32 %v679, %v695
  %v712 = vmax.f32 %v680, %v696
  %v713 = vmax.f32 %v681, %v697
  %v714 = vmax.f32 %v682, %v698
  %v715 = vmax.f32 %v683, %v699
  %v716 = vmax.f32 %v684, %v700
  %v717 = vmax.f32 %v685, %v701
  %v718 = vmax.f32 %v686, %v702
  %v719 = vmax.f32 %v687, %v703
  %v720 = vmax.f32 %v688, %v704
  %v721 = vmax.f32 %v689, %v705
  %v722 = vmax.f32 %v690, %v706
  %v723 = vmax.f32 %v691, %v707
  %v724 = vmax.f32 %v692, %v708
  %v725 = vsel %vm269, %v709, -1e+30
  %v726 = vsel %vm270, %v710, -1e+30
  %v727 = vsel %vm271, %v711, -1e+30
  %v728 = vsel %vm272, %v712, -1e+30
  %v729 = vsel %vm273, %v713, -1e+30
  %v730 = vsel %vm274, %v714, -1e+30
  %v731 = vsel %vm275, %v715, -1e+30
  %v732 = vsel %vm276, %v716, -1e+30
  %v733 = vsel %vm277, %v717, -1e+30
  %v734 = vsel %vm278, %v718, -1e+30
  %v735 = vsel %vm279, %v719, -1e+30
  %v736 = vsel %vm280, %v720, -1e+30
  %v737 = vsel %vm281, %v721, -1e+30
  %v738 = vsel %vm282, %v722, -1e+30
  %v739 = vsel %vm283, %v723, -1e+30
  %v740 = vsel %vm284, %v724, -1e+30
  %741 = vmax.xlane.f32.xlu0 %v725
  %v742 = vpop.xlane.xlu0 %741
  %743 = vmax.xlane.f32.xlu0 %v726
  %v744 = vpop.xlane.xlu0 %743
  %745 = vmax.xlane.f32.xlu0 %v727
  %v746 = vpop.xlane.xlu0 %745
  %747 = vmax.xlane.f32.xlu0 %v728
  %v748 = vpop.xlane.xlu0 %747
  %749 = vmax.xlane.f32.xlu0 %v729
  %v750 = vpop.xlane.xlu0 %749
  %751 = vmax.xlane.f32.xlu0 %v730
  %v752 = vpop.xlane.xlu0 %751
  %753 = vmax.xlane.f32.xlu0 %v731
  %v754 = vpop.xlane.xlu0 %753
  %755 = vmax.xlane.f32.xlu0 %v732
  %v756 = vpop.xlane.xlu0 %755
  %757 = vmax.xlane.f32.xlu0 %v733
  %v758 = vpop.xlane.xlu0 %757
  %759 = vmax.xlane.f32.xlu0 %v734
  %v760 = vpop.xlane.xlu0 %759
  %761 = vmax.xlane.f32.xlu0 %v735
  %v762 = vpop.xlane.xlu0 %761
  %763 = vmax.xlane.f32.xlu0 %v736
  %v764 = vpop.xlane.xlu0 %763
  %765 = vmax.xlane.f32.xlu0 %v737
  %v766 = vpop.xlane.xlu0 %765
  %767 = vmax.xlane.f32.xlu0 %v738
  %v768 = vpop.xlane.xlu0 %767
  %769 = vmax.xlane.f32.xlu0 %v739
  %v770 = vpop.xlane.xlu0 %769
  %771 = vmax.xlane.f32.xlu0 %v740
  %v772 = vpop.xlane.xlu0 %771
  %v773 = vsub.f32 %v725, %v742
  %v774 = vsub.f32 %v726, %v744
  %v775 = vsub.f32 %v727, %v746
  %v776 = vsub.f32 %v728, %v748
  %v777 = vsub.f32 %v729, %v750
  %v778 = vsub.f32 %v730, %v752
  %v779 = vsub.f32 %v731, %v754
  %v780 = vsub.f32 %v732, %v756
  %v781 = vsub.f32 %v733, %v758
  %v782 = vsub.f32 %v734, %v760
  %v783 = vsub.f32 %v735, %v762
  %v784 = vsub.f32 %v736, %v764
  %v785 = vsub.f32 %v737, %v766
  %v786 = vsub.f32 %v738, %v768
  %v787 = vsub.f32 %v739, %v770
  %v788 = vsub.f32 %v740, %v772
  %v789 = vmul.f32 %v773, 1.442695
  %v790 = vpow.pop %v789
  %v791 = vmul.f32 %v774, 1.442695
  %v792 = vpow.pop %v791
  %v793 = vmul.f32 %v775, 1.442695
  %v794 = vpow.pop %v793
  %v795 = vmul.f32 %v776, 1.442695
  %v796 = vpow.pop %v795
  %v797 = vmul.f32 %v777, 1.442695
  %v798 = vpow.pop %v797
  %v799 = vmul.f32 %v778, 1.442695
  %v800 = vpow.pop %v799
  %v801 = vmul.f32 %v779, 1.442695
  %v802 = vpow.pop %v801
  %v803 = vmul.f32 %v780, 1.442695
  %v804 = vpow.pop %v803
  %v805 = vmul.f32 %v781, 1.442695
  %v806 = vpow.pop %v805
  %v807 = vmul.f32 %v782, 1.442695
  %v808 = vpow.pop %v807
  %v809 = vmul.f32 %v783, 1.442695
  %v810 = vpow.pop %v809
  %v811 = vmul.f32 %v784, 1.442695
  %v812 = vpow.pop %v811
  %v813 = vmul.f32 %v785, 1.442695
  %v814 = vpow.pop %v813
  %v815 = vmul.f32 %v786, 1.442695
  %v816 = vpow.pop %v815
  %v817 = vmul.f32 %v787, 1.442695
  %v818 = vpow.pop %v817
  %v819 = vmul.f32 %v788, 1.442695
  %v820 = vpow.pop %v819
  %821 = vadd.xlane.f32.xlu0 %v790
  %v822 = vpop.xlane.xlu0 %821
  %823 = vadd.xlane.f32.xlu0 %v792
  %v824 = vpop.xlane.xlu0 %823
  %825 = vadd.xlane.f32.xlu0 %v794
  %v826 = vpop.xlane.xlu0 %825
  %827 = vadd.xlane.f32.xlu0 %v796
  %v828 = vpop.xlane.xlu0 %827
  %829 = vadd.xlane.f32.xlu0 %v798
  %v830 = vpop.xlane.xlu0 %829
  %831 = vadd.xlane.f32.xlu0 %v800
  %v832 = vpop.xlane.xlu0 %831
  %833 = vadd.xlane.f32.xlu0 %v802
  %v834 = vpop.xlane.xlu0 %833
  %835 = vadd.xlane.f32.xlu0 %v804
  %v836 = vpop.xlane.xlu0 %835
  %837 = vadd.xlane.f32.xlu0 %v806
  %v838 = vpop.xlane.xlu0 %837
  %839 = vadd.xlane.f32.xlu0 %v808
  %v840 = vpop.xlane.xlu0 %839
  %841 = vadd.xlane.f32.xlu0 %v810
  %v842 = vpop.xlane.xlu0 %841
  %843 = vadd.xlane.f32.xlu0 %v812
  %v844 = vpop.xlane.xlu0 %843
  %845 = vadd.xlane.f32.xlu0 %v814
  %v846 = vpop.xlane.xlu0 %845
  %847 = vadd.xlane.f32.xlu0 %v816
  %v848 = vpop.xlane.xlu0 %847
  %849 = vadd.xlane.f32.xlu0 %v818
  %v850 = vpop.xlane.xlu0 %849
  %851 = vadd.xlane.f32.xlu0 %v820
  %v852 = vpop.xlane.xlu0 %851
  %v853 = vrcp.pop %v822
  %v854 = vrcp.pop %v824
  %v855 = vrcp.pop %v826
  %v856 = vrcp.pop %v828
  %v857 = vrcp.pop %v830
  %v858 = vrcp.pop %v832
  %v859 = vrcp.pop %v834
  %v860 = vrcp.pop %v836
  %v861 = vrcp.pop %v838
  %v862 = vrcp.pop %v840
  %v863 = vrcp.pop %v842
  %v864 = vrcp.pop %v844
  %v865 = vrcp.pop %v846
  %v866 = vrcp.pop %v848
  %v867 = vrcp.pop %v850
  %v868 = vrcp.pop %v852
  %v869 = vmul.f32 %v790, %v853
  %v870 = vmul.f32 %v792, %v854
  %v871 = vmul.f32 %v794, %v855
  %v872 = vmul.f32 %v796, %v856
  %v873 = vmul.f32 %v798, %v857
  %v874 = vmul.f32 %v800, %v858
  %v875 = vmul.f32 %v802, %v859
  %v876 = vmul.f32 %v804, %v860
  %v877 = vmul.f32 %v806, %v861
  %v878 = vmul.f32 %v808, %v862
  %v879 = vmul.f32 %v810, %v863
  %v880 = vmul.f32 %v812, %v864
  %v881 = vmul.f32 %v814, %v865
  %v882 = vmul.f32 %v816, %v866
  %v883 = vmul.f32 %v818, %v867
  %v884 = vmul.f32 %v820, %v868
  %885 = vmatprep.subr.mxu0 0.0
  %886 = vmatpush1.msra.mxu0 %v102
  %887 = vmatprep.subr.mxu0 0.0
  %888 = vmatpush1.msra.mxu0 %v101
  %889 = vmatprep.subr.mxu0 0.0
  %890 = vmatpush1.msra.mxu0 %v100
  %891 = vmatprep.subr.mxu0 0.0
  %892 = vmatpush1.msra.mxu0 %v99
  %893 = vmatprep.subr.mxu0 0.0
  %894 = vmatpush1.msra.mxu0 %v98
  %895 = vmatprep.subr.mxu0 0.0
  %896 = vmatpush1.msra.mxu0 %v97
  %897 = vmatprep.subr.mxu0 0.0
  %898 = vmatpush1.msra.mxu0 %v96
  %899 = vmatprep.subr.mxu0 0.0
  %900 = vmatpush1.msra.mxu0 %v95
  %901 = vmatprep.subr.mxu0 0.0
  %902 = vmatpush1.msra.mxu0 %v94
  %903 = vmatprep.subr.mxu0 0.0
  %904 = vmatpush1.msra.mxu0 %v93
  %905 = vmatprep.subr.mxu0 0.0
  %906 = vmatpush1.msra.mxu0 %v92
  %907 = vmatprep.subr.mxu0 0.0
  %908 = vmatpush1.msra.mxu0 %v91
  %909 = vmatprep.subr.mxu0 0.0
  %910 = vmatpush1.msra.mxu0 %v90
  %911 = vmatprep.subr.mxu0 0.0
  %912 = vmatpush1.msra.mxu0 %v89
  %913 = vmatprep.subr.mxu0 0.0
  %914 = vmatpush1.msra.mxu0 %v88
  %915 = vmatprep.subr.mxu0 0.0
  %916 = vmatpush1.msra.mxu0 %v87
  %917 = vmatprep.subr.mxu0 0.0
  %918 = vmatpush2.msra.mxu0 0.0
  %919 = vmatprep.subr.mxu0 0.0
  %920 = vmatpush2.msra.mxu0 0.0
  %921 = vmatprep.subr.mxu0 0.0
  %922 = vmatpush2.msra.mxu0 0.0
  %923 = vmatprep.subr.mxu0 0.0
  %924 = vmatpush2.msra.mxu0 0.0
  %925 = vmatprep.subr.mxu0 0.0
  %926 = vmatpush2.msra.mxu0 0.0
  %927 = vmatprep.subr.mxu0 0.0
  %928 = vmatpush2.msra.mxu0 0.0
  %929 = vmatprep.subr.mxu0 0.0
  %930 = vmatpush2.msra.mxu0 0.0
  %931 = vmatprep.subr.mxu0 0.0
  %932 = vmatpush2.msra.mxu0 0.0
  %933 = vmatprep.subr.mxu0 0.0
  %934 = vmatpush2.msra.mxu0 0.0
  %935 = vmatprep.subr.mxu0 0.0
  %936 = vmatpush2.msra.mxu0 0.0
  %937 = vmatprep.subr.mxu0 0.0
  %938 = vmatpush2.msra.mxu0 0.0
  %939 = vmatprep.subr.mxu0 0.0
  %940 = vmatpush2.msra.mxu0 0.0
  %941 = vmatprep.subr.mxu0 0.0
  %942 = vmatpush2.msra.mxu0 0.0
  %943 = vmatprep.subr.mxu0 0.0
  %944 = vmatpush2.msra.mxu0 0.0
  %945 = vmatprep.subr.mxu0 0.0
  %946 = vmatpush2.msra.mxu0 0.0
  %947 = vmatprep.subr.mxu0 0.0
  %948 = vmatpush2.msra.mxu0 0.0
  %949 = vmatprep.mubr.f32.mxu0 0.0
  %950 = vmatmul.mubr.f32.gmra.mxu0 %v869
  %v951 = vpop.f32.mrf.mxu0
  %v952 = vadd.f32 0.0, %v951
  %v953 = vpop.f32.mrf.mxu0
  %954 = vmatprep.mubr.f32.mxu0 0.0
  %955 = vmatmul.mubr.f32.gmra.mxu0 %v870
  %v956 = vpop.f32.mrf.mxu0
  %v957 = vadd.f32 0.0, %v956
  %v958 = vpop.f32.mrf.mxu0
  %959 = vmatprep.mubr.f32.mxu0 0.0
  %960 = vmatmul.mubr.f32.gmra.mxu0 %v871
  %v961 = vpop.f32.mrf.mxu0
  %v962 = vadd.f32 0.0, %v961
  %v963 = vpop.f32.mrf.mxu0
  %964 = vmatprep.mubr.f32.mxu0 0.0
  %965 = vmatmul.mubr.f32.gmra.mxu0 %v872
  %v966 = vpop.f32.mrf.mxu0
  %v967 = vadd.f32 0.0, %v966
  %v968 = vpop.f32.mrf.mxu0
  %969 = vmatprep.mubr.f32.mxu0 0.0
  %970 = vmatmul.mubr.f32.gmra.mxu0 %v873
  %v971 = vpop.f32.mrf.mxu0
  %v972 = vadd.f32 0.0, %v971
  %v973 = vpop.f32.mrf.mxu0
  %974 = vmatprep.mubr.f32.mxu0 0.0
  %975 = vmatmul.mubr.f32.gmra.mxu0 %v874
  %v976 = vpop.f32.mrf.mxu0
  %v977 = vadd.f32 0.0, %v976
  %v978 = vpop.f32.mrf.mxu0
  %979 = vmatprep.mubr.f32.mxu0 0.0
  %980 = vmatmul.mubr.f32.gmra.mxu0 %v875
  %v981 = vpop.f32.mrf.mxu0
  %v982 = vadd.f32 0.0, %v981
  %v983 = vpop.f32.mrf.mxu0
  %984 = vmatprep.mubr.f32.mxu0 0.0
  %985 = vmatmul.mubr.f32.gmra.mxu0 %v876
  %v986 = vpop.f32.mrf.mxu0
  %v987 = vadd.f32 0.0, %v986
  %v988 = vpop.f32.mrf.mxu0
  %989 = vmatprep.mubr.f32.mxu0 0.0
  %990 = vmatmul.mubr.f32.gmra.mxu0 %v877
  %v991 = vpop.f32.mrf.mxu0
  %v992 = vadd.f32 0.0, %v991
  %v993 = vpop.f32.mrf.mxu0
  %994 = vmatprep.mubr.f32.mxu0 0.0
  %995 = vmatmul.mubr.f32.gmra.mxu0 %v878
  %v996 = vpop.f32.mrf.mxu0
  %v997 = vadd.f32 0.0, %v996
  %v998 = vpop.f32.mrf.mxu0
  %999 = vmatprep.mubr.f32.mxu0 0.0
  %1000 = vmatmul.mubr.f32.gmra.mxu0 %v879
  %v1001 = vpop.f32.mrf.mxu0
  %v1002 = vadd.f32 0.0, %v1001
  %v1003 = vpop.f32.mrf.mxu0
  %1004 = vmatprep.mubr.f32.mxu0 0.0
  %1005 = vmatmul.mubr.f32.gmra.mxu0 %v880
  %v1006 = vpop.f32.mrf.mxu0
  %v1007 = vadd.f32 0.0, %v1006
  %v1008 = vpop.f32.mrf.mxu0
  %1009 = vmatprep.mubr.f32.mxu0 0.0
  %1010 = vmatmul.mubr.f32.gmra.mxu0 %v881
  %v1011 = vpop.f32.mrf.mxu0
  %v1012 = vadd.f32 0.0, %v1011
  %v1013 = vpop.f32.mrf.mxu0
  %1014 = vmatprep.mubr.f32.mxu0 0.0
  %1015 = vmatmul.mubr.f32.gmra.mxu0 %v882
  %v1016 = vpop.f32.mrf.mxu0
  %v1017 = vadd.f32 0.0, %v1016
  %v1018 = vpop.f32.mrf.mxu0
  %1019 = vmatprep.mubr.f32.mxu0 0.0
  %1020 = vmatmul.mubr.f32.gmra.mxu0 %v883
  %v1021 = vpop.f32.mrf.mxu0
  %v1022 = vadd.f32 0.0, %v1021
  %v1023 = vpop.f32.mrf.mxu0
  %1024 = vmatprep.mubr.f32.mxu0 0.0
  %1025 = vmatmul.mubr.f32.gmra.mxu0 %v884
  %v1026 = vpop.f32.mrf.mxu0
  %v1027 = vadd.f32 0.0, %v1026
  %v1028 = vpop.f32.mrf.mxu0
  %1029 = vdwg.mxu0
  %vm1030 = vcmp.ge.s32.totalorder %v104, 8
  %vm1031 = vcmp.lt.s32.totalorder %v104, 16
  %vm1032 = vmand %vm1030, %vm1031
  %v1033 = vsel %vm1032, %v952, %v593
  %v1034 = vsel %vm1032, %v957, %v594
  %v1035 = vsel %vm1032, %v962, %v595
  %v1036 = vsel %vm1032, %v967, %v596
  %v1037 = vsel %vm1032, %v972, %v597
  %v1038 = vsel %vm1032, %v977, %v598
  %v1039 = vsel %vm1032, %v982, %v599
  %v1040 = vsel %vm1032, %v987, %v600
  %v1041 = vsel %vm1032, %v992, %v601
  %v1042 = vsel %vm1032, %v997, %v602
  %v1043 = vsel %vm1032, %v1002, %v603
  %v1044 = vsel %vm1032, %v1007, %v604
  %v1045 = vsel %vm1032, %v1012, %v605
  %v1046 = vsel %vm1032, %v1017, %v606
  %v1047 = vsel %vm1032, %v1022, %v607
  %v1048 = vsel %vm1032, %v1027, %v608
  %1049 = vset.pattern.permute.xlu0 2
  %1050 = vperm.xlu0 %1049, %v54
  %v1051 = vpop.permute.xlu0 %1050
  %1053 = vset.pattern.permute.xlu0 2
  %1054 = vperm.xlu0 %1053, %v55
  %v1055 = vpop.permute.xlu0 %1054
  %1057 = vset.pattern.permute.xlu0 2
  %1058 = vperm.xlu0 %1057, %v56
  %v1059 = vpop.permute.xlu0 %1058
  %1061 = vset.pattern.permute.xlu0 2
  %1062 = vperm.xlu0 %1061, %v57
  %v1063 = vpop.permute.xlu0 %1062
  %1065 = vset.pattern.permute.xlu0 2
  %1066 = vperm.xlu0 %1065, %v58
  %v1067 = vpop.permute.xlu0 %1066
  %1069 = vset.pattern.permute.xlu0 2
  %1070 = vperm.xlu0 %1069, %v59
  %v1071 = vpop.permute.xlu0 %1070
  %1073 = vset.pattern.permute.xlu0 2
  %1074 = vperm.xlu0 %1073, %v60
  %v1075 = vpop.permute.xlu0 %1074
  %1077 = vset.pattern.permute.xlu0 2
  %1078 = vperm.xlu0 %1077, %v61
  %v1079 = vpop.permute.xlu0 %1078
  %1081 = vset.pattern.permute.xlu0 2
  %1082 = vperm.xlu0 %1081, %v62
  %v1083 = vpop.permute.xlu0 %1082
  %1085 = vset.pattern.permute.xlu0 2
  %1086 = vperm.xlu0 %1085, %v63
  %v1087 = vpop.permute.xlu0 %1086
  %1089 = vset.pattern.permute.xlu0 2
  %1090 = vperm.xlu0 %1089, %v64
  %v1091 = vpop.permute.xlu0 %1090
  %1093 = vset.pattern.permute.xlu0 2
  %1094 = vperm.xlu0 %1093, %v65
  %v1095 = vpop.permute.xlu0 %1094
  %1097 = vset.pattern.permute.xlu0 2
  %1098 = vperm.xlu0 %1097, %v66
  %v1099 = vpop.permute.xlu0 %1098
  %1101 = vset.pattern.permute.xlu0 2
  %1102 = vperm.xlu0 %1101, %v67
  %v1103 = vpop.permute.xlu0 %1102
  %1105 = vset.pattern.permute.xlu0 2
  %1106 = vperm.xlu0 %1105, %v68
  %v1107 = vpop.permute.xlu0 %1106
  %1109 = vset.pattern.permute.xlu0 2
  %1110 = vperm.xlu0 %1109, %v69
  %v1111 = vpop.permute.xlu0 %1110
  %v1113 = vlaneseq
  %v1114 = vshrl.u32 %v1113, 7
  %v1115 = vsub.s32 2, %v1114
  %v1116 = vrot.slane %v70, %v1115
  %v1117 = vadd.f32 %v1051, %v1116
  %v1118 = vadd.f32 %v1055, %v1116
  %v1119 = vadd.f32 %v1059, %v1116
  %v1120 = vadd.f32 %v1063, %v1116
  %v1121 = vadd.f32 %v1067, %v1116
  %v1122 = vadd.f32 %v1071, %v1116
  %v1123 = vadd.f32 %v1075, %v1116
  %v1124 = vadd.f32 %v1079, %v1116
  %v1125 = vadd.f32 %v1083, %v1116
  %v1126 = vadd.f32 %v1087, %v1116
  %v1127 = vadd.f32 %v1091, %v1116
  %v1128 = vadd.f32 %v1095, %v1116
  %v1129 = vadd.f32 %v1099, %v1116
  %v1130 = vadd.f32 %v1103, %v1116
  %v1131 = vadd.f32 %v1107, %v1116
  %v1132 = vadd.f32 %v1111, %v1116
  %v1133 = vmul.f32 %v1117, 0.2
  %v1134 = vmul.f32 %v1118, 0.2
  %v1135 = vmul.f32 %v1119, 0.2
  %v1136 = vmul.f32 %v1120, 0.2
  %v1137 = vmul.f32 %v1121, 0.2
  %v1138 = vmul.f32 %v1122, 0.2
  %v1139 = vmul.f32 %v1123, 0.2
  %v1140 = vmul.f32 %v1124, 0.2
  %v1141 = vmul.f32 %v1125, 0.2
  %v1142 = vmul.f32 %v1126, 0.2
  %v1143 = vmul.f32 %v1127, 0.2
  %v1144 = vmul.f32 %v1128, 0.2
  %v1145 = vmul.f32 %v1129, 0.2
  %v1146 = vmul.f32 %v1130, 0.2
  %v1147 = vmul.f32 %v1131, 0.2
  %v1148 = vmul.f32 %v1132, 0.2
  %v1149 = vmax.f32 %v1117, %v1133
  %v1150 = vmax.f32 %v1118, %v1134
  %v1151 = vmax.f32 %v1119, %v1135
  %v1152 = vmax.f32 %v1120, %v1136
  %v1153 = vmax.f32 %v1121, %v1137
  %v1154 = vmax.f32 %v1122, %v1138
  %v1155 = vmax.f32 %v1123, %v1139
  %v1156 = vmax.f32 %v1124, %v1140
  %v1157 = vmax.f32 %v1125, %v1141
  %v1158 = vmax.f32 %v1126, %v1142
  %v1159 = vmax.f32 %v1127, %v1143
  %v1160 = vmax.f32 %v1128, %v1144
  %v1161 = vmax.f32 %v1129, %v1145
  %v1162 = vmax.f32 %v1130, %v1146
  %v1163 = vmax.f32 %v1131, %v1147
  %v1164 = vmax.f32 %v1132, %v1148
  %v1165 = vsel %vm269, %v1149, -1e+30
  %v1166 = vsel %vm270, %v1150, -1e+30
  %v1167 = vsel %vm271, %v1151, -1e+30
  %v1168 = vsel %vm272, %v1152, -1e+30
  %v1169 = vsel %vm273, %v1153, -1e+30
  %v1170 = vsel %vm274, %v1154, -1e+30
  %v1171 = vsel %vm275, %v1155, -1e+30
  %v1172 = vsel %vm276, %v1156, -1e+30
  %v1173 = vsel %vm277, %v1157, -1e+30
  %v1174 = vsel %vm278, %v1158, -1e+30
  %v1175 = vsel %vm279, %v1159, -1e+30
  %v1176 = vsel %vm280, %v1160, -1e+30
  %v1177 = vsel %vm281, %v1161, -1e+30
  %v1178 = vsel %vm282, %v1162, -1e+30
  %v1179 = vsel %vm283, %v1163, -1e+30
  %v1180 = vsel %vm284, %v1164, -1e+30
  %1181 = vmax.xlane.f32.xlu0 %v1165
  %v1182 = vpop.xlane.xlu0 %1181
  %1183 = vmax.xlane.f32.xlu0 %v1166
  %v1184 = vpop.xlane.xlu0 %1183
  %1185 = vmax.xlane.f32.xlu0 %v1167
  %v1186 = vpop.xlane.xlu0 %1185
  %1187 = vmax.xlane.f32.xlu0 %v1168
  %v1188 = vpop.xlane.xlu0 %1187
  %1189 = vmax.xlane.f32.xlu0 %v1169
  %v1190 = vpop.xlane.xlu0 %1189
  %1191 = vmax.xlane.f32.xlu0 %v1170
  %v1192 = vpop.xlane.xlu0 %1191
  %1193 = vmax.xlane.f32.xlu0 %v1171
  %v1194 = vpop.xlane.xlu0 %1193
  %1195 = vmax.xlane.f32.xlu0 %v1172
  %v1196 = vpop.xlane.xlu0 %1195
  %1197 = vmax.xlane.f32.xlu0 %v1173
  %v1198 = vpop.xlane.xlu0 %1197
  %1199 = vmax.xlane.f32.xlu0 %v1174
  %v1200 = vpop.xlane.xlu0 %1199
  %1201 = vmax.xlane.f32.xlu0 %v1175
  %v1202 = vpop.xlane.xlu0 %1201
  %1203 = vmax.xlane.f32.xlu0 %v1176
  %v1204 = vpop.xlane.xlu0 %1203
  %1205 = vmax.xlane.f32.xlu0 %v1177
  %v1206 = vpop.xlane.xlu0 %1205
  %1207 = vmax.xlane.f32.xlu0 %v1178
  %v1208 = vpop.xlane.xlu0 %1207
  %1209 = vmax.xlane.f32.xlu0 %v1179
  %v1210 = vpop.xlane.xlu0 %1209
  %1211 = vmax.xlane.f32.xlu0 %v1180
  %v1212 = vpop.xlane.xlu0 %1211
  %v1213 = vsub.f32 %v1165, %v1182
  %v1214 = vsub.f32 %v1166, %v1184
  %v1215 = vsub.f32 %v1167, %v1186
  %v1216 = vsub.f32 %v1168, %v1188
  %v1217 = vsub.f32 %v1169, %v1190
  %v1218 = vsub.f32 %v1170, %v1192
  %v1219 = vsub.f32 %v1171, %v1194
  %v1220 = vsub.f32 %v1172, %v1196
  %v1221 = vsub.f32 %v1173, %v1198
  %v1222 = vsub.f32 %v1174, %v1200
  %v1223 = vsub.f32 %v1175, %v1202
  %v1224 = vsub.f32 %v1176, %v1204
  %v1225 = vsub.f32 %v1177, %v1206
  %v1226 = vsub.f32 %v1178, %v1208
  %v1227 = vsub.f32 %v1179, %v1210
  %v1228 = vsub.f32 %v1180, %v1212
  %v1229 = vmul.f32 %v1213, 1.442695
  %v1230 = vpow.pop %v1229
  %v1231 = vmul.f32 %v1214, 1.442695
  %v1232 = vpow.pop %v1231
  %v1233 = vmul.f32 %v1215, 1.442695
  %v1234 = vpow.pop %v1233
  %v1235 = vmul.f32 %v1216, 1.442695
  %v1236 = vpow.pop %v1235
  %v1237 = vmul.f32 %v1217, 1.442695
  %v1238 = vpow.pop %v1237
  %v1239 = vmul.f32 %v1218, 1.442695
  %v1240 = vpow.pop %v1239
  %v1241 = vmul.f32 %v1219, 1.442695
  %v1242 = vpow.pop %v1241
  %v1243 = vmul.f32 %v1220, 1.442695
  %v1244 = vpow.pop %v1243
  %v1245 = vmul.f32 %v1221, 1.442695
  %v1246 = vpow.pop %v1245
  %v1247 = vmul.f32 %v1222, 1.442695
  %v1248 = vpow.pop %v1247
  %v1249 = vmul.f32 %v1223, 1.442695
  %v1250 = vpow.pop %v1249
  %v1251 = vmul.f32 %v1224, 1.442695
  %v1252 = vpow.pop %v1251
  %v1253 = vmul.f32 %v1225, 1.442695
  %v1254 = vpow.pop %v1253
  %v1255 = vmul.f32 %v1226, 1.442695
  %v1256 = vpow.pop %v1255
  %v1257 = vmul.f32 %v1227, 1.442695
  %v1258 = vpow.pop %v1257
  %v1259 = vmul.f32 %v1228, 1.442695
  %v1260 = vpow.pop %v1259
  %1261 = vadd.xlane.f32.xlu0 %v1230
  %v1262 = vpop.xlane.xlu0 %1261
  %1263 = vadd.xlane.f32.xlu0 %v1232
  %v1264 = vpop.xlane.xlu0 %1263
  %1265 = vadd.xlane.f32.xlu0 %v1234
  %v1266 = vpop.xlane.xlu0 %1265
  %1267 = vadd.xlane.f32.xlu0 %v1236
  %v1268 = vpop.xlane.xlu0 %1267
  %1269 = vadd.xlane.f32.xlu0 %v1238
  %v1270 = vpop.xlane.xlu0 %1269
  %1271 = vadd.xlane.f32.xlu0 %v1240
  %v1272 = vpop.xlane.xlu0 %1271
  %1273 = vadd.xlane.f32.xlu0 %v1242
  %v1274 = vpop.xlane.xlu0 %1273
  %1275 = vadd.xlane.f32.xlu0 %v1244
  %v1276 = vpop.xlane.xlu0 %1275
  %1277 = vadd.xlane.f32.xlu0 %v1246
  %v1278 = vpop.xlane.xlu0 %1277
  %1279 = vadd.xlane.f32.xlu0 %v1248
  %v1280 = vpop.xlane.xlu0 %1279
  %1281 = vadd.xlane.f32.xlu0 %v1250
  %v1282 = vpop.xlane.xlu0 %1281
  %1283 = vadd.xlane.f32.xlu0 %v1252
  %v1284 = vpop.xlane.xlu0 %1283
  %1285 = vadd.xlane.f32.xlu0 %v1254
  %v1286 = vpop.xlane.xlu0 %1285
  %1287 = vadd.xlane.f32.xlu0 %v1256
  %v1288 = vpop.xlane.xlu0 %1287
  %1289 = vadd.xlane.f32.xlu0 %v1258
  %v1290 = vpop.xlane.xlu0 %1289
  %1291 = vadd.xlane.f32.xlu0 %v1260
  %v1292 = vpop.xlane.xlu0 %1291
  %v1293 = vrcp.pop %v1262
  %v1294 = vrcp.pop %v1264
  %v1295 = vrcp.pop %v1266
  %v1296 = vrcp.pop %v1268
  %v1297 = vrcp.pop %v1270
  %v1298 = vrcp.pop %v1272
  %v1299 = vrcp.pop %v1274
  %v1300 = vrcp.pop %v1276
  %v1301 = vrcp.pop %v1278
  %v1302 = vrcp.pop %v1280
  %v1303 = vrcp.pop %v1282
  %v1304 = vrcp.pop %v1284
  %v1305 = vrcp.pop %v1286
  %v1306 = vrcp.pop %v1288
  %v1307 = vrcp.pop %v1290
  %v1308 = vrcp.pop %v1292
  %v1309 = vmul.f32 %v1230, %v1293
  %v1310 = vmul.f32 %v1232, %v1294
  %v1311 = vmul.f32 %v1234, %v1295
  %v1312 = vmul.f32 %v1236, %v1296
  %v1313 = vmul.f32 %v1238, %v1297
  %v1314 = vmul.f32 %v1240, %v1298
  %v1315 = vmul.f32 %v1242, %v1299
  %v1316 = vmul.f32 %v1244, %v1300
  %v1317 = vmul.f32 %v1246, %v1301
  %v1318 = vmul.f32 %v1248, %v1302
  %v1319 = vmul.f32 %v1250, %v1303
  %v1320 = vmul.f32 %v1252, %v1304
  %v1321 = vmul.f32 %v1254, %v1305
  %v1322 = vmul.f32 %v1256, %v1306
  %v1323 = vmul.f32 %v1258, %v1307
  %v1324 = vmul.f32 %v1260, %v1308
  %1325 = vmatprep.subr.mxu0 0.0
  %1326 = vmatpush1.msra.mxu0 %v102
  %1327 = vmatprep.subr.mxu0 0.0
  %1328 = vmatpush1.msra.mxu0 %v101
  %1329 = vmatprep.subr.mxu0 0.0
  %1330 = vmatpush1.msra.mxu0 %v100
  %1331 = vmatprep.subr.mxu0 0.0
  %1332 = vmatpush1.msra.mxu0 %v99
  %1333 = vmatprep.subr.mxu0 0.0
  %1334 = vmatpush1.msra.mxu0 %v98
  %1335 = vmatprep.subr.mxu0 0.0
  %1336 = vmatpush1.msra.mxu0 %v97
  %1337 = vmatprep.subr.mxu0 0.0
  %1338 = vmatpush1.msra.mxu0 %v96
  %1339 = vmatprep.subr.mxu0 0.0
  %1340 = vmatpush1.msra.mxu0 %v95
  %1341 = vmatprep.subr.mxu0 0.0
  %1342 = vmatpush1.msra.mxu0 %v94
  %1343 = vmatprep.subr.mxu0 0.0
  %1344 = vmatpush1.msra.mxu0 %v93
  %1345 = vmatprep.subr.mxu0 0.0
  %1346 = vmatpush1.msra.mxu0 %v92
  %1347 = vmatprep.subr.mxu0 0.0
  %1348 = vmatpush1.msra.mxu0 %v91
  %1349 = vmatprep.subr.mxu0 0.0
  %1350 = vmatpush1.msra.mxu0 %v90
  %1351 = vmatprep.subr.mxu0 0.0
  %1352 = vmatpush1.msra.mxu0 %v89
  %1353 = vmatprep.subr.mxu0 0.0
  %1354 = vmatpush1.msra.mxu0 %v88
  %1355 = vmatprep.subr.mxu0 0.0
  %1356 = vmatpush1.msra.mxu0 %v87
  %1357 = vmatprep.subr.mxu0 0.0
  %1358 = vmatpush2.msra.mxu0 0.0
  %1359 = vmatprep.subr.mxu0 0.0
  %1360 = vmatpush2.msra.mxu0 0.0
  %1361 = vmatprep.subr.mxu0 0.0
  %1362 = vmatpush2.msra.mxu0 0.0
  %1363 = vmatprep.subr.mxu0 0.0
  %1364 = vmatpush2.msra.mxu0 0.0
  %1365 = vmatprep.subr.mxu0 0.0
  %1366 = vmatpush2.msra.mxu0 0.0
  %1367 = vmatprep.subr.mxu0 0.0
  %1368 = vmatpush2.msra.mxu0 0.0
  %1369 = vmatprep.subr.mxu0 0.0
  %1370 = vmatpush2.msra.mxu0 0.0
  %1371 = vmatprep.subr.mxu0 0.0
  %1372 = vmatpush2.msra.mxu0 0.0
  %1373 = vmatprep.subr.mxu0 0.0
  %1374 = vmatpush2.msra.mxu0 0.0
  %1375 = vmatprep.subr.mxu0 0.0
  %1376 = vmatpush2.msra.mxu0 0.0
  %1377 = vmatprep.subr.mxu0 0.0
  %1378 = vmatpush2.msra.mxu0 0.0
  %1379 = vmatprep.subr.mxu0 0.0
  %1380 = vmatpush2.msra.mxu0 0.0
  %1381 = vmatprep.subr.mxu0 0.0
  %1382 = vmatpush2.msra.mxu0 0.0
  %1383 = vmatprep.subr.mxu0 0.0
  %1384 = vmatpush2.msra.mxu0 0.0
  %1385 = vmatprep.subr.mxu0 0.0
  %1386 = vmatpush2.msra.mxu0 0.0
  %1387 = vmatprep.subr.mxu0 0.0
  %1388 = vmatpush2.msra.mxu0 0.0
  %1389 = vmatprep.mubr.f32.mxu0 0.0
  %1390 = vmatmul.mubr.f32.gmra.mxu0 %v1309
  %v1391 = vpop.f32.mrf.mxu0
  %v1392 = vadd.f32 0.0, %v1391
  %v1393 = vpop.f32.mrf.mxu0
  %1394 = vmatprep.mubr.f32.mxu0 0.0
  %1395 = vmatmul.mubr.f32.gmra.mxu0 %v1310
  %v1396 = vpop.f32.mrf.mxu0
  %v1397 = vadd.f32 0.0, %v1396
  %v1398 = vpop.f32.mrf.mxu0
  %1399 = vmatprep.mubr.f32.mxu0 0.0
  %1400 = vmatmul.mubr.f32.gmra.mxu0 %v1311
  %v1401 = vpop.f32.mrf.mxu0
  %v1402 = vadd.f32 0.0, %v1401
  %v1403 = vpop.f32.mrf.mxu0
  %1404 = vmatprep.mubr.f32.mxu0 0.0
  %1405 = vmatmul.mubr.f32.gmra.mxu0 %v1312
  %v1406 = vpop.f32.mrf.mxu0
  %v1407 = vadd.f32 0.0, %v1406
  %v1408 = vpop.f32.mrf.mxu0
  %1409 = vmatprep.mubr.f32.mxu0 0.0
  %1410 = vmatmul.mubr.f32.gmra.mxu0 %v1313
  %v1411 = vpop.f32.mrf.mxu0
  %v1412 = vadd.f32 0.0, %v1411
  %v1413 = vpop.f32.mrf.mxu0
  %1414 = vmatprep.mubr.f32.mxu0 0.0
  %1415 = vmatmul.mubr.f32.gmra.mxu0 %v1314
  %v1416 = vpop.f32.mrf.mxu0
  %v1417 = vadd.f32 0.0, %v1416
  %v1418 = vpop.f32.mrf.mxu0
  %1419 = vmatprep.mubr.f32.mxu0 0.0
  %1420 = vmatmul.mubr.f32.gmra.mxu0 %v1315
  %v1421 = vpop.f32.mrf.mxu0
  %v1422 = vadd.f32 0.0, %v1421
  %v1423 = vpop.f32.mrf.mxu0
  %1424 = vmatprep.mubr.f32.mxu0 0.0
  %1425 = vmatmul.mubr.f32.gmra.mxu0 %v1316
  %v1426 = vpop.f32.mrf.mxu0
  %v1427 = vadd.f32 0.0, %v1426
  %v1428 = vpop.f32.mrf.mxu0
  %1429 = vmatprep.mubr.f32.mxu0 0.0
  %1430 = vmatmul.mubr.f32.gmra.mxu0 %v1317
  %v1431 = vpop.f32.mrf.mxu0
  %v1432 = vadd.f32 0.0, %v1431
  %v1433 = vpop.f32.mrf.mxu0
  %1434 = vmatprep.mubr.f32.mxu0 0.0
  %1435 = vmatmul.mubr.f32.gmra.mxu0 %v1318
  %v1436 = vpop.f32.mrf.mxu0
  %v1437 = vadd.f32 0.0, %v1436
  %v1438 = vpop.f32.mrf.mxu0
  %1439 = vmatprep.mubr.f32.mxu0 0.0
  %1440 = vmatmul.mubr.f32.gmra.mxu0 %v1319
  %v1441 = vpop.f32.mrf.mxu0
  %v1442 = vadd.f32 0.0, %v1441
  %v1443 = vpop.f32.mrf.mxu0
  %1444 = vmatprep.mubr.f32.mxu0 0.0
  %1445 = vmatmul.mubr.f32.gmra.mxu0 %v1320
  %v1446 = vpop.f32.mrf.mxu0
  %v1447 = vadd.f32 0.0, %v1446
  %v1448 = vpop.f32.mrf.mxu0
  %1449 = vmatprep.mubr.f32.mxu0 0.0
  %1450 = vmatmul.mubr.f32.gmra.mxu0 %v1321
  %v1451 = vpop.f32.mrf.mxu0
  %v1452 = vadd.f32 0.0, %v1451
  %v1453 = vpop.f32.mrf.mxu0
  %1454 = vmatprep.mubr.f32.mxu0 0.0
  %1455 = vmatmul.mubr.f32.gmra.mxu0 %v1322
  %v1456 = vpop.f32.mrf.mxu0
  %v1457 = vadd.f32 0.0, %v1456
  %v1458 = vpop.f32.mrf.mxu0
  %1459 = vmatprep.mubr.f32.mxu0 0.0
  %1460 = vmatmul.mubr.f32.gmra.mxu0 %v1323
  %v1461 = vpop.f32.mrf.mxu0
  %v1462 = vadd.f32 0.0, %v1461
  %v1463 = vpop.f32.mrf.mxu0
  %1464 = vmatprep.mubr.f32.mxu0 0.0
  %1465 = vmatmul.mubr.f32.gmra.mxu0 %v1324
  %v1466 = vpop.f32.mrf.mxu0
  %v1467 = vadd.f32 0.0, %v1466
  %v1468 = vpop.f32.mrf.mxu0
  %1469 = vdwg.mxu0
  %vm1470 = vcmp.ge.s32.totalorder %v104, 16
  %vm1471 = vcmp.lt.s32.totalorder %v104, 24
  %vm1472 = vmand %vm1470, %vm1471
  %v1473 = vsel %vm1472, %v1392, %v1033
  %v1474 = vsel %vm1472, %v1397, %v1034
  %v1475 = vsel %vm1472, %v1402, %v1035
  %v1476 = vsel %vm1472, %v1407, %v1036
  %v1477 = vsel %vm1472, %v1412, %v1037
  %v1478 = vsel %vm1472, %v1417, %v1038
  %v1479 = vsel %vm1472, %v1422, %v1039
  %v1480 = vsel %vm1472, %v1427, %v1040
  %v1481 = vsel %vm1472, %v1432, %v1041
  %v1482 = vsel %vm1472, %v1437, %v1042
  %v1483 = vsel %vm1472, %v1442, %v1043
  %v1484 = vsel %vm1472, %v1447, %v1044
  %v1485 = vsel %vm1472, %v1452, %v1045
  %v1486 = vsel %vm1472, %v1457, %v1046
  %v1487 = vsel %vm1472, %v1462, %v1047
  %v1488 = vsel %vm1472, %v1467, %v1048
  %1489 = vset.pattern.permute.xlu0 3
  %1490 = vperm.xlu0 %1489, %v54
  %v1491 = vpop.permute.xlu0 %1490
  %1493 = vset.pattern.permute.xlu0 3
  %1494 = vperm.xlu0 %1493, %v55
  %v1495 = vpop.permute.xlu0 %1494
  %1497 = vset.pattern.permute.xlu0 3
  %1498 = vperm.xlu0 %1497, %v56
  %v1499 = vpop.permute.xlu0 %1498
  %1501 = vset.pattern.permute.xlu0 3
  %1502 = vperm.xlu0 %1501, %v57
  %v1503 = vpop.permute.xlu0 %1502
  %1505 = vset.pattern.permute.xlu0 3
  %1506 = vperm.xlu0 %1505, %v58
  %v1507 = vpop.permute.xlu0 %1506
  %1509 = vset.pattern.permute.xlu0 3
  %1510 = vperm.xlu0 %1509, %v59
  %v1511 = vpop.permute.xlu0 %1510
  %1513 = vset.pattern.permute.xlu0 3
  %1514 = vperm.xlu0 %1513, %v60
  %v1515 = vpop.permute.xlu0 %1514
  %1517 = vset.pattern.permute.xlu0 3
  %1518 = vperm.xlu0 %1517, %v61
  %v1519 = vpop.permute.xlu0 %1518
  %1521 = vset.pattern.permute.xlu0 3
  %1522 = vperm.xlu0 %1521, %v62
  %v1523 = vpop.permute.xlu0 %1522
  %1525 = vset.pattern.permute.xlu0 3
  %1526 = vperm.xlu0 %1525, %v63
  %v1527 = vpop.permute.xlu0 %1526
  %1529 = vset.pattern.permute.xlu0 3
  %1530 = vperm.xlu0 %1529, %v64
  %v1531 = vpop.permute.xlu0 %1530
  %1533 = vset.pattern.permute.xlu0 3
  %1534 = vperm.xlu0 %1533, %v65
  %v1535 = vpop.permute.xlu0 %1534
  %1537 = vset.pattern.permute.xlu0 3
  %1538 = vperm.xlu0 %1537, %v66
  %v1539 = vpop.permute.xlu0 %1538
  %1541 = vset.pattern.permute.xlu0 3
  %1542 = vperm.xlu0 %1541, %v67
  %v1543 = vpop.permute.xlu0 %1542
  %1545 = vset.pattern.permute.xlu0 3
  %1546 = vperm.xlu0 %1545, %v68
  %v1547 = vpop.permute.xlu0 %1546
  %1549 = vset.pattern.permute.xlu0 3
  %1550 = vperm.xlu0 %1549, %v69
  %v1551 = vpop.permute.xlu0 %1550
  %v1553 = vlaneseq
  %v1554 = vshrl.u32 %v1553, 7
  %v1555 = vsub.s32 3, %v1554
  %v1556 = vrot.slane %v70, %v1555
  %v1557 = vadd.f32 %v1491, %v1556
  %v1558 = vadd.f32 %v1495, %v1556
  %v1559 = vadd.f32 %v1499, %v1556
  %v1560 = vadd.f32 %v1503, %v1556
  %v1561 = vadd.f32 %v1507, %v1556
  %v1562 = vadd.f32 %v1511, %v1556
  %v1563 = vadd.f32 %v1515, %v1556
  %v1564 = vadd.f32 %v1519, %v1556
  %v1565 = vadd.f32 %v1523, %v1556
  %v1566 = vadd.f32 %v1527, %v1556
  %v1567 = vadd.f32 %v1531, %v1556
  %v1568 = vadd.f32 %v1535, %v1556
  %v1569 = vadd.f32 %v1539, %v1556
  %v1570 = vadd.f32 %v1543, %v1556
  %v1571 = vadd.f32 %v1547, %v1556
  %v1572 = vadd.f32 %v1551, %v1556
  %v1573 = vmul.f32 %v1557, 0.2
  %v1574 = vmul.f32 %v1558, 0.2
  %v1575 = vmul.f32 %v1559, 0.2
  %v1576 = vmul.f32 %v1560, 0.2
  %v1577 = vmul.f32 %v1561, 0.2
  %v1578 = vmul.f32 %v1562, 0.2
  %v1579 = vmul.f32 %v1563, 0.2
  %v1580 = vmul.f32 %v1564, 0.2
  %v1581 = vmul.f32 %v1565, 0.2
  %v1582 = vmul.f32 %v1566, 0.2
  %v1583 = vmul.f32 %v1567, 0.2
  %v1584 = vmul.f32 %v1568, 0.2
  %v1585 = vmul.f32 %v1569, 0.2
  %v1586 = vmul.f32 %v1570, 0.2
  %v1587 = vmul.f32 %v1571, 0.2
  %v1588 = vmul.f32 %v1572, 0.2
  %v1589 = vmax.f32 %v1557, %v1573
  %v1590 = vmax.f32 %v1558, %v1574
  %v1591 = vmax.f32 %v1559, %v1575
  %v1592 = vmax.f32 %v1560, %v1576
  %v1593 = vmax.f32 %v1561, %v1577
  %v1594 = vmax.f32 %v1562, %v1578
  %v1595 = vmax.f32 %v1563, %v1579
  %v1596 = vmax.f32 %v1564, %v1580
  %v1597 = vmax.f32 %v1565, %v1581
  %v1598 = vmax.f32 %v1566, %v1582
  %v1599 = vmax.f32 %v1567, %v1583
  %v1600 = vmax.f32 %v1568, %v1584
  %v1601 = vmax.f32 %v1569, %v1585
  %v1602 = vmax.f32 %v1570, %v1586
  %v1603 = vmax.f32 %v1571, %v1587
  %v1604 = vmax.f32 %v1572, %v1588
  %v1605 = vsel %vm269, %v1589, -1e+30
  %v1606 = vsel %vm270, %v1590, -1e+30
  %v1607 = vsel %vm271, %v1591, -1e+30
  %v1608 = vsel %vm272, %v1592, -1e+30
  %v1609 = vsel %vm273, %v1593, -1e+30
  %v1610 = vsel %vm274, %v1594, -1e+30
  %v1611 = vsel %vm275, %v1595, -1e+30
  %v1612 = vsel %vm276, %v1596, -1e+30
  %v1613 = vsel %vm277, %v1597, -1e+30
  %v1614 = vsel %vm278, %v1598, -1e+30
  %v1615 = vsel %vm279, %v1599, -1e+30
  %v1616 = vsel %vm280, %v1600, -1e+30
  %v1617 = vsel %vm281, %v1601, -1e+30
  %v1618 = vsel %vm282, %v1602, -1e+30
  %v1619 = vsel %vm283, %v1603, -1e+30
  %v1620 = vsel %vm284, %v1604, -1e+30
  %1621 = vmax.xlane.f32.xlu0 %v1605
  %v1622 = vpop.xlane.xlu0 %1621
  %1623 = vmax.xlane.f32.xlu0 %v1606
  %v1624 = vpop.xlane.xlu0 %1623
  %1625 = vmax.xlane.f32.xlu0 %v1607
  %v1626 = vpop.xlane.xlu0 %1625
  %1627 = vmax.xlane.f32.xlu0 %v1608
  %v1628 = vpop.xlane.xlu0 %1627
  %1629 = vmax.xlane.f32.xlu0 %v1609
  %v1630 = vpop.xlane.xlu0 %1629
  %1631 = vmax.xlane.f32.xlu0 %v1610
  %v1632 = vpop.xlane.xlu0 %1631
  %1633 = vmax.xlane.f32.xlu0 %v1611
  %v1634 = vpop.xlane.xlu0 %1633
  %1635 = vmax.xlane.f32.xlu0 %v1612
  %v1636 = vpop.xlane.xlu0 %1635
  %1637 = vmax.xlane.f32.xlu0 %v1613
  %v1638 = vpop.xlane.xlu0 %1637
  %1639 = vmax.xlane.f32.xlu0 %v1614
  %v1640 = vpop.xlane.xlu0 %1639
  %1641 = vmax.xlane.f32.xlu0 %v1615
  %v1642 = vpop.xlane.xlu0 %1641
  %1643 = vmax.xlane.f32.xlu0 %v1616
  %v1644 = vpop.xlane.xlu0 %1643
  %1645 = vmax.xlane.f32.xlu0 %v1617
  %v1646 = vpop.xlane.xlu0 %1645
  %1647 = vmax.xlane.f32.xlu0 %v1618
  %v1648 = vpop.xlane.xlu0 %1647
  %1649 = vmax.xlane.f32.xlu0 %v1619
  %v1650 = vpop.xlane.xlu0 %1649
  %1651 = vmax.xlane.f32.xlu0 %v1620
  %v1652 = vpop.xlane.xlu0 %1651
  %v1653 = vsub.f32 %v1605, %v1622
  %v1654 = vsub.f32 %v1606, %v1624
  %v1655 = vsub.f32 %v1607, %v1626
  %v1656 = vsub.f32 %v1608, %v1628
  %v1657 = vsub.f32 %v1609, %v1630
  %v1658 = vsub.f32 %v1610, %v1632
  %v1659 = vsub.f32 %v1611, %v1634
  %v1660 = vsub.f32 %v1612, %v1636
  %v1661 = vsub.f32 %v1613, %v1638
  %v1662 = vsub.f32 %v1614, %v1640
  %v1663 = vsub.f32 %v1615, %v1642
  %v1664 = vsub.f32 %v1616, %v1644
  %v1665 = vsub.f32 %v1617, %v1646
  %v1666 = vsub.f32 %v1618, %v1648
  %v1667 = vsub.f32 %v1619, %v1650
  %v1668 = vsub.f32 %v1620, %v1652
  %v1669 = vmul.f32 %v1653, 1.442695
  %v1670 = vpow.pop %v1669
  %v1671 = vmul.f32 %v1654, 1.442695
  %v1672 = vpow.pop %v1671
  %v1673 = vmul.f32 %v1655, 1.442695
  %v1674 = vpow.pop %v1673
  %v1675 = vmul.f32 %v1656, 1.442695
  %v1676 = vpow.pop %v1675
  %v1677 = vmul.f32 %v1657, 1.442695
  %v1678 = vpow.pop %v1677
  %v1679 = vmul.f32 %v1658, 1.442695
  %v1680 = vpow.pop %v1679
  %v1681 = vmul.f32 %v1659, 1.442695
  %v1682 = vpow.pop %v1681
  %v1683 = vmul.f32 %v1660, 1.442695
  %v1684 = vpow.pop %v1683
  %v1685 = vmul.f32 %v1661, 1.442695
  %v1686 = vpow.pop %v1685
  %v1687 = vmul.f32 %v1662, 1.442695
  %v1688 = vpow.pop %v1687
  %v1689 = vmul.f32 %v1663, 1.442695
  %v1690 = vpow.pop %v1689
  %v1691 = vmul.f32 %v1664, 1.442695
  %v1692 = vpow.pop %v1691
  %v1693 = vmul.f32 %v1665, 1.442695
  %v1694 = vpow.pop %v1693
  %v1695 = vmul.f32 %v1666, 1.442695
  %v1696 = vpow.pop %v1695
  %v1697 = vmul.f32 %v1667, 1.442695
  %v1698 = vpow.pop %v1697
  %v1699 = vmul.f32 %v1668, 1.442695
  %v1700 = vpow.pop %v1699
  %1701 = vadd.xlane.f32.xlu0 %v1670
  %v1702 = vpop.xlane.xlu0 %1701
  %1703 = vadd.xlane.f32.xlu0 %v1672
  %v1704 = vpop.xlane.xlu0 %1703
  %1705 = vadd.xlane.f32.xlu0 %v1674
  %v1706 = vpop.xlane.xlu0 %1705
  %1707 = vadd.xlane.f32.xlu0 %v1676
  %v1708 = vpop.xlane.xlu0 %1707
  %1709 = vadd.xlane.f32.xlu0 %v1678
  %v1710 = vpop.xlane.xlu0 %1709
  %1711 = vadd.xlane.f32.xlu0 %v1680
  %v1712 = vpop.xlane.xlu0 %1711
  %1713 = vadd.xlane.f32.xlu0 %v1682
  %v1714 = vpop.xlane.xlu0 %1713
  %1715 = vadd.xlane.f32.xlu0 %v1684
  %v1716 = vpop.xlane.xlu0 %1715
  %1717 = vadd.xlane.f32.xlu0 %v1686
  %v1718 = vpop.xlane.xlu0 %1717
  %1719 = vadd.xlane.f32.xlu0 %v1688
  %v1720 = vpop.xlane.xlu0 %1719
  %1721 = vadd.xlane.f32.xlu0 %v1690
  %v1722 = vpop.xlane.xlu0 %1721
  %1723 = vadd.xlane.f32.xlu0 %v1692
  %v1724 = vpop.xlane.xlu0 %1723
  %1725 = vadd.xlane.f32.xlu0 %v1694
  %v1726 = vpop.xlane.xlu0 %1725
  %1727 = vadd.xlane.f32.xlu0 %v1696
  %v1728 = vpop.xlane.xlu0 %1727
  %1729 = vadd.xlane.f32.xlu0 %v1698
  %v1730 = vpop.xlane.xlu0 %1729
  %1731 = vadd.xlane.f32.xlu0 %v1700
  %v1732 = vpop.xlane.xlu0 %1731
  %v1733 = vrcp.pop %v1702
  %v1734 = vrcp.pop %v1704
  %v1735 = vrcp.pop %v1706
  %v1736 = vrcp.pop %v1708
  %v1737 = vrcp.pop %v1710
  %v1738 = vrcp.pop %v1712
  %v1739 = vrcp.pop %v1714
  %v1740 = vrcp.pop %v1716
  %v1741 = vrcp.pop %v1718
  %v1742 = vrcp.pop %v1720
  %v1743 = vrcp.pop %v1722
  %v1744 = vrcp.pop %v1724
  %v1745 = vrcp.pop %v1726
  %v1746 = vrcp.pop %v1728
  %v1747 = vrcp.pop %v1730
  %v1748 = vrcp.pop %v1732
  %v1749 = vmul.f32 %v1670, %v1733
  %v1750 = vmul.f32 %v1672, %v1734
  %v1751 = vmul.f32 %v1674, %v1735
  %v1752 = vmul.f32 %v1676, %v1736
  %v1753 = vmul.f32 %v1678, %v1737
  %v1754 = vmul.f32 %v1680, %v1738
  %v1755 = vmul.f32 %v1682, %v1739
  %v1756 = vmul.f32 %v1684, %v1740
  %v1757 = vmul.f32 %v1686, %v1741
  %v1758 = vmul.f32 %v1688, %v1742
  %v1759 = vmul.f32 %v1690, %v1743
  %v1760 = vmul.f32 %v1692, %v1744
  %v1761 = vmul.f32 %v1694, %v1745
  %v1762 = vmul.f32 %v1696, %v1746
  %v1763 = vmul.f32 %v1698, %v1747
  %v1764 = vmul.f32 %v1700, %v1748
  %1765 = vmatprep.subr.mxu0 0.0
  %1766 = vmatpush1.msra.mxu0 %v102
  %1767 = vmatprep.subr.mxu0 0.0
  %1768 = vmatpush1.msra.mxu0 %v101
  %1769 = vmatprep.subr.mxu0 0.0
  %1770 = vmatpush1.msra.mxu0 %v100
  %1771 = vmatprep.subr.mxu0 0.0
  %1772 = vmatpush1.msra.mxu0 %v99
  %1773 = vmatprep.subr.mxu0 0.0
  %1774 = vmatpush1.msra.mxu0 %v98
  %1775 = vmatprep.subr.mxu0 0.0
  %1776 = vmatpush1.msra.mxu0 %v97
  %1777 = vmatprep.subr.mxu0 0.0
  %1778 = vmatpush1.msra.mxu0 %v96
  %1779 = vmatprep.subr.mxu0 0.0
  %1780 = vmatpush1.msra.mxu0 %v95
  %1781 = vmatprep.subr.mxu0 0.0
  %1782 = vmatpush1.msra.mxu0 %v94
  %1783 = vmatprep.subr.mxu0 0.0
  %1784 = vmatpush1.msra.mxu0 %v93
  %1785 = vmatprep.subr.mxu0 0.0
  %1786 = vmatpush1.msra.mxu0 %v92
  %1787 = vmatprep.subr.mxu0 0.0
  %1788 = vmatpush1.msra.mxu0 %v91
  %1789 = vmatprep.subr.mxu0 0.0
  %1790 = vmatpush1.msra.mxu0 %v90
  %1791 = vmatprep.subr.mxu0 0.0
  %1792 = vmatpush1.msra.mxu0 %v89
  %1793 = vmatprep.subr.mxu0 0.0
  %1794 = vmatpush1.msra.mxu0 %v88
  %1795 = vmatprep.subr.mxu0 0.0
  %1796 = vmatpush1.msra.mxu0 %v87
  %1797 = vmatprep.subr.mxu0 0.0
  %1798 = vmatpush2.msra.mxu0 0.0
  %1799 = vmatprep.subr.mxu0 0.0
  %1800 = vmatpush2.msra.mxu0 0.0
  %1801 = vmatprep.subr.mxu0 0.0
  %1802 = vmatpush2.msra.mxu0 0.0
  %1803 = vmatprep.subr.mxu0 0.0
  %1804 = vmatpush2.msra.mxu0 0.0
  %1805 = vmatprep.subr.mxu0 0.0
  %1806 = vmatpush2.msra.mxu0 0.0
  %1807 = vmatprep.subr.mxu0 0.0
  %1808 = vmatpush2.msra.mxu0 0.0
  %1809 = vmatprep.subr.mxu0 0.0
  %1810 = vmatpush2.msra.mxu0 0.0
  %1811 = vmatprep.subr.mxu0 0.0
  %1812 = vmatpush2.msra.mxu0 0.0
  %1813 = vmatprep.subr.mxu0 0.0
  %1814 = vmatpush2.msra.mxu0 0.0
  %1815 = vmatprep.subr.mxu0 0.0
  %1816 = vmatpush2.msra.mxu0 0.0
  %1817 = vmatprep.subr.mxu0 0.0
  %1818 = vmatpush2.msra.mxu0 0.0
  %1819 = vmatprep.subr.mxu0 0.0
  %1820 = vmatpush2.msra.mxu0 0.0
  %1821 = vmatprep.subr.mxu0 0.0
  %1822 = vmatpush2.msra.mxu0 0.0
  %1823 = vmatprep.subr.mxu0 0.0
  %1824 = vmatpush2.msra.mxu0 0.0
  %1825 = vmatprep.subr.mxu0 0.0
  %1826 = vmatpush2.msra.mxu0 0.0
  %1827 = vmatprep.subr.mxu0 0.0
  %1828 = vmatpush2.msra.mxu0 0.0
  %1829 = vmatprep.mubr.f32.mxu0 0.0
  %1830 = vmatmul.mubr.f32.gmra.mxu0 %v1749
  %v1831 = vpop.f32.mrf.mxu0
  %v1832 = vadd.f32 0.0, %v1831
  %v1833 = vpop.f32.mrf.mxu0
  %1834 = vmatprep.mubr.f32.mxu0 0.0
  %1835 = vmatmul.mubr.f32.gmra.mxu0 %v1750
  %v1836 = vpop.f32.mrf.mxu0
  %v1837 = vadd.f32 0.0, %v1836
  %v1838 = vpop.f32.mrf.mxu0
  %1839 = vmatprep.mubr.f32.mxu0 0.0
  %1840 = vmatmul.mubr.f32.gmra.mxu0 %v1751
  %v1841 = vpop.f32.mrf.mxu0
  %v1842 = vadd.f32 0.0, %v1841
  %v1843 = vpop.f32.mrf.mxu0
  %1844 = vmatprep.mubr.f32.mxu0 0.0
  %1845 = vmatmul.mubr.f32.gmra.mxu0 %v1752
  %v1846 = vpop.f32.mrf.mxu0
  %v1847 = vadd.f32 0.0, %v1846
  %v1848 = vpop.f32.mrf.mxu0
  %1849 = vmatprep.mubr.f32.mxu0 0.0
  %1850 = vmatmul.mubr.f32.gmra.mxu0 %v1753
  %v1851 = vpop.f32.mrf.mxu0
  %v1852 = vadd.f32 0.0, %v1851
  %v1853 = vpop.f32.mrf.mxu0
  %1854 = vmatprep.mubr.f32.mxu0 0.0
  %1855 = vmatmul.mubr.f32.gmra.mxu0 %v1754
  %v1856 = vpop.f32.mrf.mxu0
  %v1857 = vadd.f32 0.0, %v1856
  %v1858 = vpop.f32.mrf.mxu0
  %1859 = vmatprep.mubr.f32.mxu0 0.0
  %1860 = vmatmul.mubr.f32.gmra.mxu0 %v1755
  %v1861 = vpop.f32.mrf.mxu0
  %v1862 = vadd.f32 0.0, %v1861
  %v1863 = vpop.f32.mrf.mxu0
  %1864 = vmatprep.mubr.f32.mxu0 0.0
  %1865 = vmatmul.mubr.f32.gmra.mxu0 %v1756
  %v1866 = vpop.f32.mrf.mxu0
  %v1867 = vadd.f32 0.0, %v1866
  %v1868 = vpop.f32.mrf.mxu0
  %1869 = vmatprep.mubr.f32.mxu0 0.0
  %1870 = vmatmul.mubr.f32.gmra.mxu0 %v1757
  %v1871 = vpop.f32.mrf.mxu0
  %v1872 = vadd.f32 0.0, %v1871
  %v1873 = vpop.f32.mrf.mxu0
  %1874 = vmatprep.mubr.f32.mxu0 0.0
  %1875 = vmatmul.mubr.f32.gmra.mxu0 %v1758
  %v1876 = vpop.f32.mrf.mxu0
  %v1877 = vadd.f32 0.0, %v1876
  %v1878 = vpop.f32.mrf.mxu0
  %1879 = vmatprep.mubr.f32.mxu0 0.0
  %1880 = vmatmul.mubr.f32.gmra.mxu0 %v1759
  %v1881 = vpop.f32.mrf.mxu0
  %v1882 = vadd.f32 0.0, %v1881
  %v1883 = vpop.f32.mrf.mxu0
  %1884 = vmatprep.mubr.f32.mxu0 0.0
  %1885 = vmatmul.mubr.f32.gmra.mxu0 %v1760
  %v1886 = vpop.f32.mrf.mxu0
  %v1887 = vadd.f32 0.0, %v1886
  %v1888 = vpop.f32.mrf.mxu0
  %1889 = vmatprep.mubr.f32.mxu0 0.0
  %1890 = vmatmul.mubr.f32.gmra.mxu0 %v1761
  %v1891 = vpop.f32.mrf.mxu0
  %v1892 = vadd.f32 0.0, %v1891
  %v1893 = vpop.f32.mrf.mxu0
  %1894 = vmatprep.mubr.f32.mxu0 0.0
  %1895 = vmatmul.mubr.f32.gmra.mxu0 %v1762
  %v1896 = vpop.f32.mrf.mxu0
  %v1897 = vadd.f32 0.0, %v1896
  %v1898 = vpop.f32.mrf.mxu0
  %1899 = vmatprep.mubr.f32.mxu0 0.0
  %1900 = vmatmul.mubr.f32.gmra.mxu0 %v1763
  %v1901 = vpop.f32.mrf.mxu0
  %v1902 = vadd.f32 0.0, %v1901
  %v1903 = vpop.f32.mrf.mxu0
  %1904 = vmatprep.mubr.f32.mxu0 0.0
  %1905 = vmatmul.mubr.f32.gmra.mxu0 %v1764
  %v1906 = vpop.f32.mrf.mxu0
  %v1907 = vadd.f32 0.0, %v1906
  %v1908 = vpop.f32.mrf.mxu0
  %1909 = vdwg.mxu0
  %vm1910 = vcmp.ge.s32.totalorder %v104, 24
  %vm1911 = vcmp.lt.s32.totalorder %v104, 32
  %vm1912 = vmand %vm1910, %vm1911
  %v1913 = vsel %vm1912, %v1832, %v1473
  %v1914 = vsel %vm1912, %v1837, %v1474
  %v1915 = vsel %vm1912, %v1842, %v1475
  %v1916 = vsel %vm1912, %v1847, %v1476
  %v1917 = vsel %vm1912, %v1852, %v1477
  %v1918 = vsel %vm1912, %v1857, %v1478
  %v1919 = vsel %vm1912, %v1862, %v1479
  %v1920 = vsel %vm1912, %v1867, %v1480
  %v1921 = vsel %vm1912, %v1872, %v1481
  %v1922 = vsel %vm1912, %v1877, %v1482
  %v1923 = vsel %vm1912, %v1882, %v1483
  %v1924 = vsel %vm1912, %v1887, %v1484
  %v1925 = vsel %vm1912, %v1892, %v1485
  %v1926 = vsel %vm1912, %v1897, %v1486
  %v1927 = vsel %vm1912, %v1902, %v1487
  %v1928 = vsel %vm1912, %v1907, %v1488
  %1929 = vset.pattern.permute.xlu0 4
  %1930 = vperm.xlu0 %1929, %v54
  %v1931 = vpop.permute.xlu0 %1930
  %1933 = vset.pattern.permute.xlu0 4
  %1934 = vperm.xlu0 %1933, %v55
  %v1935 = vpop.permute.xlu0 %1934
  %1937 = vset.pattern.permute.xlu0 4
  %1938 = vperm.xlu0 %1937, %v56
  %v1939 = vpop.permute.xlu0 %1938
  %1941 = vset.pattern.permute.xlu0 4
  %1942 = vperm.xlu0 %1941, %v57
  %v1943 = vpop.permute.xlu0 %1942
  %1945 = vset.pattern.permute.xlu0 4
  %1946 = vperm.xlu0 %1945, %v58
  %v1947 = vpop.permute.xlu0 %1946
  %1949 = vset.pattern.permute.xlu0 4
  %1950 = vperm.xlu0 %1949, %v59
  %v1951 = vpop.permute.xlu0 %1950
  %1953 = vset.pattern.permute.xlu0 4
  %1954 = vperm.xlu0 %1953, %v60
  %v1955 = vpop.permute.xlu0 %1954
  %1957 = vset.pattern.permute.xlu0 4
  %1958 = vperm.xlu0 %1957, %v61
  %v1959 = vpop.permute.xlu0 %1958
  %1961 = vset.pattern.permute.xlu0 4
  %1962 = vperm.xlu0 %1961, %v62
  %v1963 = vpop.permute.xlu0 %1962
  %1965 = vset.pattern.permute.xlu0 4
  %1966 = vperm.xlu0 %1965, %v63
  %v1967 = vpop.permute.xlu0 %1966
  %1969 = vset.pattern.permute.xlu0 4
  %1970 = vperm.xlu0 %1969, %v64
  %v1971 = vpop.permute.xlu0 %1970
  %1973 = vset.pattern.permute.xlu0 4
  %1974 = vperm.xlu0 %1973, %v65
  %v1975 = vpop.permute.xlu0 %1974
  %1977 = vset.pattern.permute.xlu0 4
  %1978 = vperm.xlu0 %1977, %v66
  %v1979 = vpop.permute.xlu0 %1978
  %1981 = vset.pattern.permute.xlu0 4
  %1982 = vperm.xlu0 %1981, %v67
  %v1983 = vpop.permute.xlu0 %1982
  %1985 = vset.pattern.permute.xlu0 4
  %1986 = vperm.xlu0 %1985, %v68
  %v1987 = vpop.permute.xlu0 %1986
  %1989 = vset.pattern.permute.xlu0 4
  %1990 = vperm.xlu0 %1989, %v69
  %v1991 = vpop.permute.xlu0 %1990
  %v1993 = vlaneseq
  %v1994 = vshrl.u32 %v1993, 7
  %v1995 = vsub.s32 4, %v1994
  %v1996 = vrot.slane %v70, %v1995
  %v1997 = vadd.f32 %v1931, %v1996
  %v1998 = vadd.f32 %v1935, %v1996
  %v1999 = vadd.f32 %v1939, %v1996
  %v2000 = vadd.f32 %v1943, %v1996
  %v2001 = vadd.f32 %v1947, %v1996
  %v2002 = vadd.f32 %v1951, %v1996
  %v2003 = vadd.f32 %v1955, %v1996
  %v2004 = vadd.f32 %v1959, %v1996
  %v2005 = vadd.f32 %v1963, %v1996
  %v2006 = vadd.f32 %v1967, %v1996
  %v2007 = vadd.f32 %v1971, %v1996
  %v2008 = vadd.f32 %v1975, %v1996
  %v2009 = vadd.f32 %v1979, %v1996
  %v2010 = vadd.f32 %v1983, %v1996
  %v2011 = vadd.f32 %v1987, %v1996
  %v2012 = vadd.f32 %v1991, %v1996
  %v2013 = vmul.f32 %v1997, 0.2
  %v2014 = vmul.f32 %v1998, 0.2
  %v2015 = vmul.f32 %v1999, 0.2
  %v2016 = vmul.f32 %v2000, 0.2
  %v2017 = vmul.f32 %v2001, 0.2
  %v2018 = vmul.f32 %v2002, 0.2
  %v2019 = vmul.f32 %v2003, 0.2
  %v2020 = vmul.f32 %v2004, 0.2
  %v2021 = vmul.f32 %v2005, 0.2
  %v2022 = vmul.f32 %v2006, 0.2
  %v2023 = vmul.f32 %v2007, 0.2
  %v2024 = vmul.f32 %v2008, 0.2
  %v2025 = vmul.f32 %v2009, 0.2
  %v2026 = vmul.f32 %v2010, 0.2
  %v2027 = vmul.f32 %v2011, 0.2
  %v2028 = vmul.f32 %v2012, 0.2
  %v2029 = vmax.f32 %v1997, %v2013
  %v2030 = vmax.f32 %v1998, %v2014
  %v2031 = vmax.f32 %v1999, %v2015
  %v2032 = vmax.f32 %v2000, %v2016
  %v2033 = vmax.f32 %v2001, %v2017
  %v2034 = vmax.f32 %v2002, %v2018
  %v2035 = vmax.f32 %v2003, %v2019
  %v2036 = vmax.f32 %v2004, %v2020
  %v2037 = vmax.f32 %v2005, %v2021
  %v2038 = vmax.f32 %v2006, %v2022
  %v2039 = vmax.f32 %v2007, %v2023
  %v2040 = vmax.f32 %v2008, %v2024
  %v2041 = vmax.f32 %v2009, %v2025
  %v2042 = vmax.f32 %v2010, %v2026
  %v2043 = vmax.f32 %v2011, %v2027
  %v2044 = vmax.f32 %v2012, %v2028
  %v2045 = vsel %vm269, %v2029, -1e+30
  %v2046 = vsel %vm270, %v2030, -1e+30
  %v2047 = vsel %vm271, %v2031, -1e+30
  %v2048 = vsel %vm272, %v2032, -1e+30
  %v2049 = vsel %vm273, %v2033, -1e+30
  %v2050 = vsel %vm274, %v2034, -1e+30
  %v2051 = vsel %vm275, %v2035, -1e+30
  %v2052 = vsel %vm276, %v2036, -1e+30
  %v2053 = vsel %vm277, %v2037, -1e+30
  %v2054 = vsel %vm278, %v2038, -1e+30
  %v2055 = vsel %vm279, %v2039, -1e+30
  %v2056 = vsel %vm280, %v2040, -1e+30
  %v2057 = vsel %vm281, %v2041, -1e+30
  %v2058 = vsel %vm282, %v2042, -1e+30
  %v2059 = vsel %vm283, %v2043, -1e+30
  %v2060 = vsel %vm284, %v2044, -1e+30
  %2061 = vmax.xlane.f32.xlu0 %v2045
  %v2062 = vpop.xlane.xlu0 %2061
  %2063 = vmax.xlane.f32.xlu0 %v2046
  %v2064 = vpop.xlane.xlu0 %2063
  %2065 = vmax.xlane.f32.xlu0 %v2047
  %v2066 = vpop.xlane.xlu0 %2065
  %2067 = vmax.xlane.f32.xlu0 %v2048
  %v2068 = vpop.xlane.xlu0 %2067
  %2069 = vmax.xlane.f32.xlu0 %v2049
  %v2070 = vpop.xlane.xlu0 %2069
  %2071 = vmax.xlane.f32.xlu0 %v2050
  %v2072 = vpop.xlane.xlu0 %2071
  %2073 = vmax.xlane.f32.xlu0 %v2051
  %v2074 = vpop.xlane.xlu0 %2073
  %2075 = vmax.xlane.f32.xlu0 %v2052
  %v2076 = vpop.xlane.xlu0 %2075
  %2077 = vmax.xlane.f32.xlu0 %v2053
  %v2078 = vpop.xlane.xlu0 %2077
  %2079 = vmax.xlane.f32.xlu0 %v2054
  %v2080 = vpop.xlane.xlu0 %2079
  %2081 = vmax.xlane.f32.xlu0 %v2055
  %v2082 = vpop.xlane.xlu0 %2081
  %2083 = vmax.xlane.f32.xlu0 %v2056
  %v2084 = vpop.xlane.xlu0 %2083
  %2085 = vmax.xlane.f32.xlu0 %v2057
  %v2086 = vpop.xlane.xlu0 %2085
  %2087 = vmax.xlane.f32.xlu0 %v2058
  %v2088 = vpop.xlane.xlu0 %2087
  %2089 = vmax.xlane.f32.xlu0 %v2059
  %v2090 = vpop.xlane.xlu0 %2089
  %2091 = vmax.xlane.f32.xlu0 %v2060
  %v2092 = vpop.xlane.xlu0 %2091
  %v2093 = vsub.f32 %v2045, %v2062
  %v2094 = vsub.f32 %v2046, %v2064
  %v2095 = vsub.f32 %v2047, %v2066
  %v2096 = vsub.f32 %v2048, %v2068
  %v2097 = vsub.f32 %v2049, %v2070
  %v2098 = vsub.f32 %v2050, %v2072
  %v2099 = vsub.f32 %v2051, %v2074
  %v2100 = vsub.f32 %v2052, %v2076
  %v2101 = vsub.f32 %v2053, %v2078
  %v2102 = vsub.f32 %v2054, %v2080
  %v2103 = vsub.f32 %v2055, %v2082
  %v2104 = vsub.f32 %v2056, %v2084
  %v2105 = vsub.f32 %v2057, %v2086
  %v2106 = vsub.f32 %v2058, %v2088
  %v2107 = vsub.f32 %v2059, %v2090
  %v2108 = vsub.f32 %v2060, %v2092
  %v2109 = vmul.f32 %v2093, 1.442695
  %v2110 = vpow.pop %v2109
  %v2111 = vmul.f32 %v2094, 1.442695
  %v2112 = vpow.pop %v2111
  %v2113 = vmul.f32 %v2095, 1.442695
  %v2114 = vpow.pop %v2113
  %v2115 = vmul.f32 %v2096, 1.442695
  %v2116 = vpow.pop %v2115
  %v2117 = vmul.f32 %v2097, 1.442695
  %v2118 = vpow.pop %v2117
  %v2119 = vmul.f32 %v2098, 1.442695
  %v2120 = vpow.pop %v2119
  %v2121 = vmul.f32 %v2099, 1.442695
  %v2122 = vpow.pop %v2121
  %v2123 = vmul.f32 %v2100, 1.442695
  %v2124 = vpow.pop %v2123
  %v2125 = vmul.f32 %v2101, 1.442695
  %v2126 = vpow.pop %v2125
  %v2127 = vmul.f32 %v2102, 1.442695
  %v2128 = vpow.pop %v2127
  %v2129 = vmul.f32 %v2103, 1.442695
  %v2130 = vpow.pop %v2129
  %v2131 = vmul.f32 %v2104, 1.442695
  %v2132 = vpow.pop %v2131
  %v2133 = vmul.f32 %v2105, 1.442695
  %v2134 = vpow.pop %v2133
  %v2135 = vmul.f32 %v2106, 1.442695
  %v2136 = vpow.pop %v2135
  %v2137 = vmul.f32 %v2107, 1.442695
  %v2138 = vpow.pop %v2137
  %v2139 = vmul.f32 %v2108, 1.442695
  %v2140 = vpow.pop %v2139
  %2141 = vadd.xlane.f32.xlu0 %v2110
  %v2142 = vpop.xlane.xlu0 %2141
  %2143 = vadd.xlane.f32.xlu0 %v2112
  %v2144 = vpop.xlane.xlu0 %2143
  %2145 = vadd.xlane.f32.xlu0 %v2114
  %v2146 = vpop.xlane.xlu0 %2145
  %2147 = vadd.xlane.f32.xlu0 %v2116
  %v2148 = vpop.xlane.xlu0 %2147
  %2149 = vadd.xlane.f32.xlu0 %v2118
  %v2150 = vpop.xlane.xlu0 %2149
  %2151 = vadd.xlane.f32.xlu0 %v2120
  %v2152 = vpop.xlane.xlu0 %2151
  %2153 = vadd.xlane.f32.xlu0 %v2122
  %v2154 = vpop.xlane.xlu0 %2153
  %2155 = vadd.xlane.f32.xlu0 %v2124
  %v2156 = vpop.xlane.xlu0 %2155
  %2157 = vadd.xlane.f32.xlu0 %v2126
  %v2158 = vpop.xlane.xlu0 %2157
  %2159 = vadd.xlane.f32.xlu0 %v2128
  %v2160 = vpop.xlane.xlu0 %2159
  %2161 = vadd.xlane.f32.xlu0 %v2130
  %v2162 = vpop.xlane.xlu0 %2161
  %2163 = vadd.xlane.f32.xlu0 %v2132
  %v2164 = vpop.xlane.xlu0 %2163
  %2165 = vadd.xlane.f32.xlu0 %v2134
  %v2166 = vpop.xlane.xlu0 %2165
  %2167 = vadd.xlane.f32.xlu0 %v2136
  %v2168 = vpop.xlane.xlu0 %2167
  %2169 = vadd.xlane.f32.xlu0 %v2138
  %v2170 = vpop.xlane.xlu0 %2169
  %2171 = vadd.xlane.f32.xlu0 %v2140
  %v2172 = vpop.xlane.xlu0 %2171
  %v2173 = vrcp.pop %v2142
  %v2174 = vrcp.pop %v2144
  %v2175 = vrcp.pop %v2146
  %v2176 = vrcp.pop %v2148
  %v2177 = vrcp.pop %v2150
  %v2178 = vrcp.pop %v2152
  %v2179 = vrcp.pop %v2154
  %v2180 = vrcp.pop %v2156
  %v2181 = vrcp.pop %v2158
  %v2182 = vrcp.pop %v2160
  %v2183 = vrcp.pop %v2162
  %v2184 = vrcp.pop %v2164
  %v2185 = vrcp.pop %v2166
  %v2186 = vrcp.pop %v2168
  %v2187 = vrcp.pop %v2170
  %v2188 = vrcp.pop %v2172
  %v2189 = vmul.f32 %v2110, %v2173
  %v2190 = vmul.f32 %v2112, %v2174
  %v2191 = vmul.f32 %v2114, %v2175
  %v2192 = vmul.f32 %v2116, %v2176
  %v2193 = vmul.f32 %v2118, %v2177
  %v2194 = vmul.f32 %v2120, %v2178
  %v2195 = vmul.f32 %v2122, %v2179
  %v2196 = vmul.f32 %v2124, %v2180
  %v2197 = vmul.f32 %v2126, %v2181
  %v2198 = vmul.f32 %v2128, %v2182
  %v2199 = vmul.f32 %v2130, %v2183
  %v2200 = vmul.f32 %v2132, %v2184
  %v2201 = vmul.f32 %v2134, %v2185
  %v2202 = vmul.f32 %v2136, %v2186
  %v2203 = vmul.f32 %v2138, %v2187
  %v2204 = vmul.f32 %v2140, %v2188
  %2205 = vmatprep.subr.mxu0 0.0
  %2206 = vmatpush1.msra.mxu0 %v102
  %2207 = vmatprep.subr.mxu0 0.0
  %2208 = vmatpush1.msra.mxu0 %v101
  %2209 = vmatprep.subr.mxu0 0.0
  %2210 = vmatpush1.msra.mxu0 %v100
  %2211 = vmatprep.subr.mxu0 0.0
  %2212 = vmatpush1.msra.mxu0 %v99
  %2213 = vmatprep.subr.mxu0 0.0
  %2214 = vmatpush1.msra.mxu0 %v98
  %2215 = vmatprep.subr.mxu0 0.0
  %2216 = vmatpush1.msra.mxu0 %v97
  %2217 = vmatprep.subr.mxu0 0.0
  %2218 = vmatpush1.msra.mxu0 %v96
  %2219 = vmatprep.subr.mxu0 0.0
  %2220 = vmatpush1.msra.mxu0 %v95
  %2221 = vmatprep.subr.mxu0 0.0
  %2222 = vmatpush1.msra.mxu0 %v94
  %2223 = vmatprep.subr.mxu0 0.0
  %2224 = vmatpush1.msra.mxu0 %v93
  %2225 = vmatprep.subr.mxu0 0.0
  %2226 = vmatpush1.msra.mxu0 %v92
  %2227 = vmatprep.subr.mxu0 0.0
  %2228 = vmatpush1.msra.mxu0 %v91
  %2229 = vmatprep.subr.mxu0 0.0
  %2230 = vmatpush1.msra.mxu0 %v90
  %2231 = vmatprep.subr.mxu0 0.0
  %2232 = vmatpush1.msra.mxu0 %v89
  %2233 = vmatprep.subr.mxu0 0.0
  %2234 = vmatpush1.msra.mxu0 %v88
  %2235 = vmatprep.subr.mxu0 0.0
  %2236 = vmatpush1.msra.mxu0 %v87
  %2237 = vmatprep.subr.mxu0 0.0
  %2238 = vmatpush2.msra.mxu0 0.0
  %2239 = vmatprep.subr.mxu0 0.0
  %2240 = vmatpush2.msra.mxu0 0.0
  %2241 = vmatprep.subr.mxu0 0.0
  %2242 = vmatpush2.msra.mxu0 0.0
  %2243 = vmatprep.subr.mxu0 0.0
  %2244 = vmatpush2.msra.mxu0 0.0
  %2245 = vmatprep.subr.mxu0 0.0
  %2246 = vmatpush2.msra.mxu0 0.0
  %2247 = vmatprep.subr.mxu0 0.0
  %2248 = vmatpush2.msra.mxu0 0.0
  %2249 = vmatprep.subr.mxu0 0.0
  %2250 = vmatpush2.msra.mxu0 0.0
  %2251 = vmatprep.subr.mxu0 0.0
  %2252 = vmatpush2.msra.mxu0 0.0
  %2253 = vmatprep.subr.mxu0 0.0
  %2254 = vmatpush2.msra.mxu0 0.0
  %2255 = vmatprep.subr.mxu0 0.0
  %2256 = vmatpush2.msra.mxu0 0.0
  %2257 = vmatprep.subr.mxu0 0.0
  %2258 = vmatpush2.msra.mxu0 0.0
  %2259 = vmatprep.subr.mxu0 0.0
  %2260 = vmatpush2.msra.mxu0 0.0
  %2261 = vmatprep.subr.mxu0 0.0
  %2262 = vmatpush2.msra.mxu0 0.0
  %2263 = vmatprep.subr.mxu0 0.0
  %2264 = vmatpush2.msra.mxu0 0.0
  %2265 = vmatprep.subr.mxu0 0.0
  %2266 = vmatpush2.msra.mxu0 0.0
  %2267 = vmatprep.subr.mxu0 0.0
  %2268 = vmatpush2.msra.mxu0 0.0
  %2269 = vmatprep.mubr.f32.mxu0 0.0
  %2270 = vmatmul.mubr.f32.gmra.mxu0 %v2189
  %v2271 = vpop.f32.mrf.mxu0
  %v2272 = vadd.f32 0.0, %v2271
  %v2273 = vpop.f32.mrf.mxu0
  %2274 = vmatprep.mubr.f32.mxu0 0.0
  %2275 = vmatmul.mubr.f32.gmra.mxu0 %v2190
  %v2276 = vpop.f32.mrf.mxu0
  %v2277 = vadd.f32 0.0, %v2276
  %v2278 = vpop.f32.mrf.mxu0
  %2279 = vmatprep.mubr.f32.mxu0 0.0
  %2280 = vmatmul.mubr.f32.gmra.mxu0 %v2191
  %v2281 = vpop.f32.mrf.mxu0
  %v2282 = vadd.f32 0.0, %v2281
  %v2283 = vpop.f32.mrf.mxu0
  %2284 = vmatprep.mubr.f32.mxu0 0.0
  %2285 = vmatmul.mubr.f32.gmra.mxu0 %v2192
  %v2286 = vpop.f32.mrf.mxu0
  %v2287 = vadd.f32 0.0, %v2286
  %v2288 = vpop.f32.mrf.mxu0
  %2289 = vmatprep.mubr.f32.mxu0 0.0
  %2290 = vmatmul.mubr.f32.gmra.mxu0 %v2193
  %v2291 = vpop.f32.mrf.mxu0
  %v2292 = vadd.f32 0.0, %v2291
  %v2293 = vpop.f32.mrf.mxu0
  %2294 = vmatprep.mubr.f32.mxu0 0.0
  %2295 = vmatmul.mubr.f32.gmra.mxu0 %v2194
  %v2296 = vpop.f32.mrf.mxu0
  %v2297 = vadd.f32 0.0, %v2296
  %v2298 = vpop.f32.mrf.mxu0
  %2299 = vmatprep.mubr.f32.mxu0 0.0
  %2300 = vmatmul.mubr.f32.gmra.mxu0 %v2195
  %v2301 = vpop.f32.mrf.mxu0
  %v2302 = vadd.f32 0.0, %v2301
  %v2303 = vpop.f32.mrf.mxu0
  %2304 = vmatprep.mubr.f32.mxu0 0.0
  %2305 = vmatmul.mubr.f32.gmra.mxu0 %v2196
  %v2306 = vpop.f32.mrf.mxu0
  %v2307 = vadd.f32 0.0, %v2306
  %v2308 = vpop.f32.mrf.mxu0
  %2309 = vmatprep.mubr.f32.mxu0 0.0
  %2310 = vmatmul.mubr.f32.gmra.mxu0 %v2197
  %v2311 = vpop.f32.mrf.mxu0
  %v2312 = vadd.f32 0.0, %v2311
  %v2313 = vpop.f32.mrf.mxu0
  %2314 = vmatprep.mubr.f32.mxu0 0.0
  %2315 = vmatmul.mubr.f32.gmra.mxu0 %v2198
  %v2316 = vpop.f32.mrf.mxu0
  %v2317 = vadd.f32 0.0, %v2316
  %v2318 = vpop.f32.mrf.mxu0
  %2319 = vmatprep.mubr.f32.mxu0 0.0
  %2320 = vmatmul.mubr.f32.gmra.mxu0 %v2199
  %v2321 = vpop.f32.mrf.mxu0
  %v2322 = vadd.f32 0.0, %v2321
  %v2323 = vpop.f32.mrf.mxu0
  %2324 = vmatprep.mubr.f32.mxu0 0.0
  %2325 = vmatmul.mubr.f32.gmra.mxu0 %v2200
  %v2326 = vpop.f32.mrf.mxu0
  %v2327 = vadd.f32 0.0, %v2326
  %v2328 = vpop.f32.mrf.mxu0
  %2329 = vmatprep.mubr.f32.mxu0 0.0
  %2330 = vmatmul.mubr.f32.gmra.mxu0 %v2201
  %v2331 = vpop.f32.mrf.mxu0
  %v2332 = vadd.f32 0.0, %v2331
  %v2333 = vpop.f32.mrf.mxu0
  %2334 = vmatprep.mubr.f32.mxu0 0.0
  %2335 = vmatmul.mubr.f32.gmra.mxu0 %v2202
  %v2336 = vpop.f32.mrf.mxu0
  %v2337 = vadd.f32 0.0, %v2336
  %v2338 = vpop.f32.mrf.mxu0
  %2339 = vmatprep.mubr.f32.mxu0 0.0
  %2340 = vmatmul.mubr.f32.gmra.mxu0 %v2203
  %v2341 = vpop.f32.mrf.mxu0
  %v2342 = vadd.f32 0.0, %v2341
  %v2343 = vpop.f32.mrf.mxu0
  %2344 = vmatprep.mubr.f32.mxu0 0.0
  %2345 = vmatmul.mubr.f32.gmra.mxu0 %v2204
  %v2346 = vpop.f32.mrf.mxu0
  %v2347 = vadd.f32 0.0, %v2346
  %v2348 = vpop.f32.mrf.mxu0
  %2349 = vdwg.mxu0
  %vm2350 = vcmp.ge.s32.totalorder %v104, 32
  %vm2351 = vcmp.lt.s32.totalorder %v104, 40
  %vm2352 = vmand %vm2350, %vm2351
  %v2353 = vsel %vm2352, %v2272, %v1913
  %v2354 = vsel %vm2352, %v2277, %v1914
  %v2355 = vsel %vm2352, %v2282, %v1915
  %v2356 = vsel %vm2352, %v2287, %v1916
  %v2357 = vsel %vm2352, %v2292, %v1917
  %v2358 = vsel %vm2352, %v2297, %v1918
  %v2359 = vsel %vm2352, %v2302, %v1919
  %v2360 = vsel %vm2352, %v2307, %v1920
  %v2361 = vsel %vm2352, %v2312, %v1921
  %v2362 = vsel %vm2352, %v2317, %v1922
  %v2363 = vsel %vm2352, %v2322, %v1923
  %v2364 = vsel %vm2352, %v2327, %v1924
  %v2365 = vsel %vm2352, %v2332, %v1925
  %v2366 = vsel %vm2352, %v2337, %v1926
  %v2367 = vsel %vm2352, %v2342, %v1927
  %v2368 = vsel %vm2352, %v2347, %v1928
  %2369 = vset.pattern.permute.xlu0 5
  %2370 = vperm.xlu0 %2369, %v54
  %v2371 = vpop.permute.xlu0 %2370
  %2373 = vset.pattern.permute.xlu0 5
  %2374 = vperm.xlu0 %2373, %v55
  %v2375 = vpop.permute.xlu0 %2374
  %2377 = vset.pattern.permute.xlu0 5
  %2378 = vperm.xlu0 %2377, %v56
  %v2379 = vpop.permute.xlu0 %2378
  %2381 = vset.pattern.permute.xlu0 5
  %2382 = vperm.xlu0 %2381, %v57
  %v2383 = vpop.permute.xlu0 %2382
  %2385 = vset.pattern.permute.xlu0 5
  %2386 = vperm.xlu0 %2385, %v58
  %v2387 = vpop.permute.xlu0 %2386
  %2389 = vset.pattern.permute.xlu0 5
  %2390 = vperm.xlu0 %2389, %v59
  %v2391 = vpop.permute.xlu0 %2390
  %2393 = vset.pattern.permute.xlu0 5
  %2394 = vperm.xlu0 %2393, %v60
  %v2395 = vpop.permute.xlu0 %2394
  %2397 = vset.pattern.permute.xlu0 5
  %2398 = vperm.xlu0 %2397, %v61
  %v2399 = vpop.permute.xlu0 %2398
  %2401 = vset.pattern.permute.xlu0 5
  %2402 = vperm.xlu0 %2401, %v62
  %v2403 = vpop.permute.xlu0 %2402
  %2405 = vset.pattern.permute.xlu0 5
  %2406 = vperm.xlu0 %2405, %v63
  %v2407 = vpop.permute.xlu0 %2406
  %2409 = vset.pattern.permute.xlu0 5
  %2410 = vperm.xlu0 %2409, %v64
  %v2411 = vpop.permute.xlu0 %2410
  %2413 = vset.pattern.permute.xlu0 5
  %2414 = vperm.xlu0 %2413, %v65
  %v2415 = vpop.permute.xlu0 %2414
  %2417 = vset.pattern.permute.xlu0 5
  %2418 = vperm.xlu0 %2417, %v66
  %v2419 = vpop.permute.xlu0 %2418
  %2421 = vset.pattern.permute.xlu0 5
  %2422 = vperm.xlu0 %2421, %v67
  %v2423 = vpop.permute.xlu0 %2422
  %2425 = vset.pattern.permute.xlu0 5
  %2426 = vperm.xlu0 %2425, %v68
  %v2427 = vpop.permute.xlu0 %2426
  %2429 = vset.pattern.permute.xlu0 5
  %2430 = vperm.xlu0 %2429, %v69
  %v2431 = vpop.permute.xlu0 %2430
  %v2433 = vlaneseq
  %v2434 = vshrl.u32 %v2433, 7
  %v2435 = vsub.s32 5, %v2434
  %v2436 = vrot.slane %v70, %v2435
  %v2437 = vadd.f32 %v2371, %v2436
  %v2438 = vadd.f32 %v2375, %v2436
  %v2439 = vadd.f32 %v2379, %v2436
  %v2440 = vadd.f32 %v2383, %v2436
  %v2441 = vadd.f32 %v2387, %v2436
  %v2442 = vadd.f32 %v2391, %v2436
  %v2443 = vadd.f32 %v2395, %v2436
  %v2444 = vadd.f32 %v2399, %v2436
  %v2445 = vadd.f32 %v2403, %v2436
  %v2446 = vadd.f32 %v2407, %v2436
  %v2447 = vadd.f32 %v2411, %v2436
  %v2448 = vadd.f32 %v2415, %v2436
  %v2449 = vadd.f32 %v2419, %v2436
  %v2450 = vadd.f32 %v2423, %v2436
  %v2451 = vadd.f32 %v2427, %v2436
  %v2452 = vadd.f32 %v2431, %v2436
  %v2453 = vmul.f32 %v2437, 0.2
  %v2454 = vmul.f32 %v2438, 0.2
  %v2455 = vmul.f32 %v2439, 0.2
  %v2456 = vmul.f32 %v2440, 0.2
  %v2457 = vmul.f32 %v2441, 0.2
  %v2458 = vmul.f32 %v2442, 0.2
  %v2459 = vmul.f32 %v2443, 0.2
  %v2460 = vmul.f32 %v2444, 0.2
  %v2461 = vmul.f32 %v2445, 0.2
  %v2462 = vmul.f32 %v2446, 0.2
  %v2463 = vmul.f32 %v2447, 0.2
  %v2464 = vmul.f32 %v2448, 0.2
  %v2465 = vmul.f32 %v2449, 0.2
  %v2466 = vmul.f32 %v2450, 0.2
  %v2467 = vmul.f32 %v2451, 0.2
  %v2468 = vmul.f32 %v2452, 0.2
  %v2469 = vmax.f32 %v2437, %v2453
  %v2470 = vmax.f32 %v2438, %v2454
  %v2471 = vmax.f32 %v2439, %v2455
  %v2472 = vmax.f32 %v2440, %v2456
  %v2473 = vmax.f32 %v2441, %v2457
  %v2474 = vmax.f32 %v2442, %v2458
  %v2475 = vmax.f32 %v2443, %v2459
  %v2476 = vmax.f32 %v2444, %v2460
  %v2477 = vmax.f32 %v2445, %v2461
  %v2478 = vmax.f32 %v2446, %v2462
  %v2479 = vmax.f32 %v2447, %v2463
  %v2480 = vmax.f32 %v2448, %v2464
  %v2481 = vmax.f32 %v2449, %v2465
  %v2482 = vmax.f32 %v2450, %v2466
  %v2483 = vmax.f32 %v2451, %v2467
  %v2484 = vmax.f32 %v2452, %v2468
  %v2485 = vsel %vm269, %v2469, -1e+30
  %v2486 = vsel %vm270, %v2470, -1e+30
  %v2487 = vsel %vm271, %v2471, -1e+30
  %v2488 = vsel %vm272, %v2472, -1e+30
  %v2489 = vsel %vm273, %v2473, -1e+30
  %v2490 = vsel %vm274, %v2474, -1e+30
  %v2491 = vsel %vm275, %v2475, -1e+30
  %v2492 = vsel %vm276, %v2476, -1e+30
  %v2493 = vsel %vm277, %v2477, -1e+30
  %v2494 = vsel %vm278, %v2478, -1e+30
  %v2495 = vsel %vm279, %v2479, -1e+30
  %v2496 = vsel %vm280, %v2480, -1e+30
  %v2497 = vsel %vm281, %v2481, -1e+30
  %v2498 = vsel %vm282, %v2482, -1e+30
  %v2499 = vsel %vm283, %v2483, -1e+30
  %v2500 = vsel %vm284, %v2484, -1e+30
  %2501 = vmax.xlane.f32.xlu0 %v2485
  %v2502 = vpop.xlane.xlu0 %2501
  %2503 = vmax.xlane.f32.xlu0 %v2486
  %v2504 = vpop.xlane.xlu0 %2503
  %2505 = vmax.xlane.f32.xlu0 %v2487
  %v2506 = vpop.xlane.xlu0 %2505
  %2507 = vmax.xlane.f32.xlu0 %v2488
  %v2508 = vpop.xlane.xlu0 %2507
  %2509 = vmax.xlane.f32.xlu0 %v2489
  %v2510 = vpop.xlane.xlu0 %2509
  %2511 = vmax.xlane.f32.xlu0 %v2490
  %v2512 = vpop.xlane.xlu0 %2511
  %2513 = vmax.xlane.f32.xlu0 %v2491
  %v2514 = vpop.xlane.xlu0 %2513
  %2515 = vmax.xlane.f32.xlu0 %v2492
  %v2516 = vpop.xlane.xlu0 %2515
  %2517 = vmax.xlane.f32.xlu0 %v2493
  %v2518 = vpop.xlane.xlu0 %2517
  %2519 = vmax.xlane.f32.xlu0 %v2494
  %v2520 = vpop.xlane.xlu0 %2519
  %2521 = vmax.xlane.f32.xlu0 %v2495
  %v2522 = vpop.xlane.xlu0 %2521
  %2523 = vmax.xlane.f32.xlu0 %v2496
  %v2524 = vpop.xlane.xlu0 %2523
  %2525 = vmax.xlane.f32.xlu0 %v2497
  %v2526 = vpop.xlane.xlu0 %2525
  %2527 = vmax.xlane.f32.xlu0 %v2498
  %v2528 = vpop.xlane.xlu0 %2527
  %2529 = vmax.xlane.f32.xlu0 %v2499
  %v2530 = vpop.xlane.xlu0 %2529
  %2531 = vmax.xlane.f32.xlu0 %v2500
  %v2532 = vpop.xlane.xlu0 %2531
  %v2533 = vsub.f32 %v2485, %v2502
  %v2534 = vsub.f32 %v2486, %v2504
  %v2535 = vsub.f32 %v2487, %v2506
  %v2536 = vsub.f32 %v2488, %v2508
  %v2537 = vsub.f32 %v2489, %v2510
  %v2538 = vsub.f32 %v2490, %v2512
  %v2539 = vsub.f32 %v2491, %v2514
  %v2540 = vsub.f32 %v2492, %v2516
  %v2541 = vsub.f32 %v2493, %v2518
  %v2542 = vsub.f32 %v2494, %v2520
  %v2543 = vsub.f32 %v2495, %v2522
  %v2544 = vsub.f32 %v2496, %v2524
  %v2545 = vsub.f32 %v2497, %v2526
  %v2546 = vsub.f32 %v2498, %v2528
  %v2547 = vsub.f32 %v2499, %v2530
  %v2548 = vsub.f32 %v2500, %v2532
  %v2549 = vmul.f32 %v2533, 1.442695
  %v2550 = vpow.pop %v2549
  %v2551 = vmul.f32 %v2534, 1.442695
  %v2552 = vpow.pop %v2551
  %v2553 = vmul.f32 %v2535, 1.442695
  %v2554 = vpow.pop %v2553
  %v2555 = vmul.f32 %v2536, 1.442695
  %v2556 = vpow.pop %v2555
  %v2557 = vmul.f32 %v2537, 1.442695
  %v2558 = vpow.pop %v2557
  %v2559 = vmul.f32 %v2538, 1.442695
  %v2560 = vpow.pop %v2559
  %v2561 = vmul.f32 %v2539, 1.442695
  %v2562 = vpow.pop %v2561
  %v2563 = vmul.f32 %v2540, 1.442695
  %v2564 = vpow.pop %v2563
  %v2565 = vmul.f32 %v2541, 1.442695
  %v2566 = vpow.pop %v2565
  %v2567 = vmul.f32 %v2542, 1.442695
  %v2568 = vpow.pop %v2567
  %v2569 = vmul.f32 %v2543, 1.442695
  %v2570 = vpow.pop %v2569
  %v2571 = vmul.f32 %v2544, 1.442695
  %v2572 = vpow.pop %v2571
  %v2573 = vmul.f32 %v2545, 1.442695
  %v2574 = vpow.pop %v2573
  %v2575 = vmul.f32 %v2546, 1.442695
  %v2576 = vpow.pop %v2575
  %v2577 = vmul.f32 %v2547, 1.442695
  %v2578 = vpow.pop %v2577
  %v2579 = vmul.f32 %v2548, 1.442695
  %v2580 = vpow.pop %v2579
  %2581 = vadd.xlane.f32.xlu0 %v2550
  %v2582 = vpop.xlane.xlu0 %2581
  %2583 = vadd.xlane.f32.xlu0 %v2552
  %v2584 = vpop.xlane.xlu0 %2583
  %2585 = vadd.xlane.f32.xlu0 %v2554
  %v2586 = vpop.xlane.xlu0 %2585
  %2587 = vadd.xlane.f32.xlu0 %v2556
  %v2588 = vpop.xlane.xlu0 %2587
  %2589 = vadd.xlane.f32.xlu0 %v2558
  %v2590 = vpop.xlane.xlu0 %2589
  %2591 = vadd.xlane.f32.xlu0 %v2560
  %v2592 = vpop.xlane.xlu0 %2591
  %2593 = vadd.xlane.f32.xlu0 %v2562
  %v2594 = vpop.xlane.xlu0 %2593
  %2595 = vadd.xlane.f32.xlu0 %v2564
  %v2596 = vpop.xlane.xlu0 %2595
  %2597 = vadd.xlane.f32.xlu0 %v2566
  %v2598 = vpop.xlane.xlu0 %2597
  %2599 = vadd.xlane.f32.xlu0 %v2568
  %v2600 = vpop.xlane.xlu0 %2599
  %2601 = vadd.xlane.f32.xlu0 %v2570
  %v2602 = vpop.xlane.xlu0 %2601
  %2603 = vadd.xlane.f32.xlu0 %v2572
  %v2604 = vpop.xlane.xlu0 %2603
  %2605 = vadd.xlane.f32.xlu0 %v2574
  %v2606 = vpop.xlane.xlu0 %2605
  %2607 = vadd.xlane.f32.xlu0 %v2576
  %v2608 = vpop.xlane.xlu0 %2607
  %2609 = vadd.xlane.f32.xlu0 %v2578
  %v2610 = vpop.xlane.xlu0 %2609
  %2611 = vadd.xlane.f32.xlu0 %v2580
  %v2612 = vpop.xlane.xlu0 %2611
  %v2613 = vrcp.pop %v2582
  %v2614 = vrcp.pop %v2584
  %v2615 = vrcp.pop %v2586
  %v2616 = vrcp.pop %v2588
  %v2617 = vrcp.pop %v2590
  %v2618 = vrcp.pop %v2592
  %v2619 = vrcp.pop %v2594
  %v2620 = vrcp.pop %v2596
  %v2621 = vrcp.pop %v2598
  %v2622 = vrcp.pop %v2600
  %v2623 = vrcp.pop %v2602
  %v2624 = vrcp.pop %v2604
  %v2625 = vrcp.pop %v2606
  %v2626 = vrcp.pop %v2608
  %v2627 = vrcp.pop %v2610
  %v2628 = vrcp.pop %v2612
  %v2629 = vmul.f32 %v2550, %v2613
  %v2630 = vmul.f32 %v2552, %v2614
  %v2631 = vmul.f32 %v2554, %v2615
  %v2632 = vmul.f32 %v2556, %v2616
  %v2633 = vmul.f32 %v2558, %v2617
  %v2634 = vmul.f32 %v2560, %v2618
  %v2635 = vmul.f32 %v2562, %v2619
  %v2636 = vmul.f32 %v2564, %v2620
  %v2637 = vmul.f32 %v2566, %v2621
  %v2638 = vmul.f32 %v2568, %v2622
  %v2639 = vmul.f32 %v2570, %v2623
  %v2640 = vmul.f32 %v2572, %v2624
  %v2641 = vmul.f32 %v2574, %v2625
  %v2642 = vmul.f32 %v2576, %v2626
  %v2643 = vmul.f32 %v2578, %v2627
  %v2644 = vmul.f32 %v2580, %v2628
  %2645 = vmatprep.subr.mxu0 0.0
  %2646 = vmatpush1.msra.mxu0 %v102
  %2647 = vmatprep.subr.mxu0 0.0
  %2648 = vmatpush1.msra.mxu0 %v101
  %2649 = vmatprep.subr.mxu0 0.0
  %2650 = vmatpush1.msra.mxu0 %v100
  %2651 = vmatprep.subr.mxu0 0.0
  %2652 = vmatpush1.msra.mxu0 %v99
  %2653 = vmatprep.subr.mxu0 0.0
  %2654 = vmatpush1.msra.mxu0 %v98
  %2655 = vmatprep.subr.mxu0 0.0
  %2656 = vmatpush1.msra.mxu0 %v97
  %2657 = vmatprep.subr.mxu0 0.0
  %2658 = vmatpush1.msra.mxu0 %v96
  %2659 = vmatprep.subr.mxu0 0.0
  %2660 = vmatpush1.msra.mxu0 %v95
  %2661 = vmatprep.subr.mxu0 0.0
  %2662 = vmatpush1.msra.mxu0 %v94
  %2663 = vmatprep.subr.mxu0 0.0
  %2664 = vmatpush1.msra.mxu0 %v93
  %2665 = vmatprep.subr.mxu0 0.0
  %2666 = vmatpush1.msra.mxu0 %v92
  %2667 = vmatprep.subr.mxu0 0.0
  %2668 = vmatpush1.msra.mxu0 %v91
  %2669 = vmatprep.subr.mxu0 0.0
  %2670 = vmatpush1.msra.mxu0 %v90
  %2671 = vmatprep.subr.mxu0 0.0
  %2672 = vmatpush1.msra.mxu0 %v89
  %2673 = vmatprep.subr.mxu0 0.0
  %2674 = vmatpush1.msra.mxu0 %v88
  %2675 = vmatprep.subr.mxu0 0.0
  %2676 = vmatpush1.msra.mxu0 %v87
  %2677 = vmatprep.subr.mxu0 0.0
  %2678 = vmatpush2.msra.mxu0 0.0
  %2679 = vmatprep.subr.mxu0 0.0
  %2680 = vmatpush2.msra.mxu0 0.0
  %2681 = vmatprep.subr.mxu0 0.0
  %2682 = vmatpush2.msra.mxu0 0.0
  %2683 = vmatprep.subr.mxu0 0.0
  %2684 = vmatpush2.msra.mxu0 0.0
  %2685 = vmatprep.subr.mxu0 0.0
  %2686 = vmatpush2.msra.mxu0 0.0
  %2687 = vmatprep.subr.mxu0 0.0
  %2688 = vmatpush2.msra.mxu0 0.0
  %2689 = vmatprep.subr.mxu0 0.0
  %2690 = vmatpush2.msra.mxu0 0.0
  %2691 = vmatprep.subr.mxu0 0.0
  %2692 = vmatpush2.msra.mxu0 0.0
  %2693 = vmatprep.subr.mxu0 0.0
  %2694 = vmatpush2.msra.mxu0 0.0
  %2695 = vmatprep.subr.mxu0 0.0
  %2696 = vmatpush2.msra.mxu0 0.0
  %2697 = vmatprep.subr.mxu0 0.0
  %2698 = vmatpush2.msra.mxu0 0.0
  %2699 = vmatprep.subr.mxu0 0.0
  %2700 = vmatpush2.msra.mxu0 0.0
  %2701 = vmatprep.subr.mxu0 0.0
  %2702 = vmatpush2.msra.mxu0 0.0
  %2703 = vmatprep.subr.mxu0 0.0
  %2704 = vmatpush2.msra.mxu0 0.0
  %2705 = vmatprep.subr.mxu0 0.0
  %2706 = vmatpush2.msra.mxu0 0.0
  %2707 = vmatprep.subr.mxu0 0.0
  %2708 = vmatpush2.msra.mxu0 0.0
  %2709 = vmatprep.mubr.f32.mxu0 0.0
  %2710 = vmatmul.mubr.f32.gmra.mxu0 %v2629
  %v2711 = vpop.f32.mrf.mxu0
  %v2712 = vadd.f32 0.0, %v2711
  %v2713 = vpop.f32.mrf.mxu0
  %2714 = vmatprep.mubr.f32.mxu0 0.0
  %2715 = vmatmul.mubr.f32.gmra.mxu0 %v2630
  %v2716 = vpop.f32.mrf.mxu0
  %v2717 = vadd.f32 0.0, %v2716
  %v2718 = vpop.f32.mrf.mxu0
  %2719 = vmatprep.mubr.f32.mxu0 0.0
  %2720 = vmatmul.mubr.f32.gmra.mxu0 %v2631
  %v2721 = vpop.f32.mrf.mxu0
  %v2722 = vadd.f32 0.0, %v2721
  %v2723 = vpop.f32.mrf.mxu0
  %2724 = vmatprep.mubr.f32.mxu0 0.0
  %2725 = vmatmul.mubr.f32.gmra.mxu0 %v2632
  %v2726 = vpop.f32.mrf.mxu0
  %v2727 = vadd.f32 0.0, %v2726
  %v2728 = vpop.f32.mrf.mxu0
  %2729 = vmatprep.mubr.f32.mxu0 0.0
  %2730 = vmatmul.mubr.f32.gmra.mxu0 %v2633
  %v2731 = vpop.f32.mrf.mxu0
  %v2732 = vadd.f32 0.0, %v2731
  %v2733 = vpop.f32.mrf.mxu0
  %2734 = vmatprep.mubr.f32.mxu0 0.0
  %2735 = vmatmul.mubr.f32.gmra.mxu0 %v2634
  %v2736 = vpop.f32.mrf.mxu0
  %v2737 = vadd.f32 0.0, %v2736
  %v2738 = vpop.f32.mrf.mxu0
  %2739 = vmatprep.mubr.f32.mxu0 0.0
  %2740 = vmatmul.mubr.f32.gmra.mxu0 %v2635
  %v2741 = vpop.f32.mrf.mxu0
  %v2742 = vadd.f32 0.0, %v2741
  %v2743 = vpop.f32.mrf.mxu0
  %2744 = vmatprep.mubr.f32.mxu0 0.0
  %2745 = vmatmul.mubr.f32.gmra.mxu0 %v2636
  %v2746 = vpop.f32.mrf.mxu0
  %v2747 = vadd.f32 0.0, %v2746
  %v2748 = vpop.f32.mrf.mxu0
  %2749 = vmatprep.mubr.f32.mxu0 0.0
  %2750 = vmatmul.mubr.f32.gmra.mxu0 %v2637
  %v2751 = vpop.f32.mrf.mxu0
  %v2752 = vadd.f32 0.0, %v2751
  %v2753 = vpop.f32.mrf.mxu0
  %2754 = vmatprep.mubr.f32.mxu0 0.0
  %2755 = vmatmul.mubr.f32.gmra.mxu0 %v2638
  %v2756 = vpop.f32.mrf.mxu0
  %v2757 = vadd.f32 0.0, %v2756
  %v2758 = vpop.f32.mrf.mxu0
  %2759 = vmatprep.mubr.f32.mxu0 0.0
  %2760 = vmatmul.mubr.f32.gmra.mxu0 %v2639
  %v2761 = vpop.f32.mrf.mxu0
  %v2762 = vadd.f32 0.0, %v2761
  %v2763 = vpop.f32.mrf.mxu0
  %2764 = vmatprep.mubr.f32.mxu0 0.0
  %2765 = vmatmul.mubr.f32.gmra.mxu0 %v2640
  %v2766 = vpop.f32.mrf.mxu0
  %v2767 = vadd.f32 0.0, %v2766
  %v2768 = vpop.f32.mrf.mxu0
  %2769 = vmatprep.mubr.f32.mxu0 0.0
  %2770 = vmatmul.mubr.f32.gmra.mxu0 %v2641
  %v2771 = vpop.f32.mrf.mxu0
  %v2772 = vadd.f32 0.0, %v2771
  %v2773 = vpop.f32.mrf.mxu0
  %2774 = vmatprep.mubr.f32.mxu0 0.0
  %2775 = vmatmul.mubr.f32.gmra.mxu0 %v2642
  %v2776 = vpop.f32.mrf.mxu0
  %v2777 = vadd.f32 0.0, %v2776
  %v2778 = vpop.f32.mrf.mxu0
  %2779 = vmatprep.mubr.f32.mxu0 0.0
  %2780 = vmatmul.mubr.f32.gmra.mxu0 %v2643
  %v2781 = vpop.f32.mrf.mxu0
  %v2782 = vadd.f32 0.0, %v2781
  %v2783 = vpop.f32.mrf.mxu0
  %2784 = vmatprep.mubr.f32.mxu0 0.0
  %2785 = vmatmul.mubr.f32.gmra.mxu0 %v2644
  %v2786 = vpop.f32.mrf.mxu0
  %v2787 = vadd.f32 0.0, %v2786
  %v2788 = vpop.f32.mrf.mxu0
  %2789 = vdwg.mxu0
  %vm2790 = vcmp.ge.s32.totalorder %v104, 40
  %vm2791 = vcmp.lt.s32.totalorder %v104, 48
  %vm2792 = vmand %vm2790, %vm2791
  %v2793 = vsel %vm2792, %v2712, %v2353
  %v2794 = vsel %vm2792, %v2717, %v2354
  %v2795 = vsel %vm2792, %v2722, %v2355
  %v2796 = vsel %vm2792, %v2727, %v2356
  %v2797 = vsel %vm2792, %v2732, %v2357
  %v2798 = vsel %vm2792, %v2737, %v2358
  %v2799 = vsel %vm2792, %v2742, %v2359
  %v2800 = vsel %vm2792, %v2747, %v2360
  %v2801 = vsel %vm2792, %v2752, %v2361
  %v2802 = vsel %vm2792, %v2757, %v2362
  %v2803 = vsel %vm2792, %v2762, %v2363
  %v2804 = vsel %vm2792, %v2767, %v2364
  %v2805 = vsel %vm2792, %v2772, %v2365
  %v2806 = vsel %vm2792, %v2777, %v2366
  %v2807 = vsel %vm2792, %v2782, %v2367
  %v2808 = vsel %vm2792, %v2787, %v2368
  %2809 = vset.pattern.permute.xlu0 6
  %2810 = vperm.xlu0 %2809, %v54
  %v2811 = vpop.permute.xlu0 %2810
  %2813 = vset.pattern.permute.xlu0 6
  %2814 = vperm.xlu0 %2813, %v55
  %v2815 = vpop.permute.xlu0 %2814
  %2817 = vset.pattern.permute.xlu0 6
  %2818 = vperm.xlu0 %2817, %v56
  %v2819 = vpop.permute.xlu0 %2818
  %2821 = vset.pattern.permute.xlu0 6
  %2822 = vperm.xlu0 %2821, %v57
  %v2823 = vpop.permute.xlu0 %2822
  %2825 = vset.pattern.permute.xlu0 6
  %2826 = vperm.xlu0 %2825, %v58
  %v2827 = vpop.permute.xlu0 %2826
  %2829 = vset.pattern.permute.xlu0 6
  %2830 = vperm.xlu0 %2829, %v59
  %v2831 = vpop.permute.xlu0 %2830
  %2833 = vset.pattern.permute.xlu0 6
  %2834 = vperm.xlu0 %2833, %v60
  %v2835 = vpop.permute.xlu0 %2834
  %2837 = vset.pattern.permute.xlu0 6
  %2838 = vperm.xlu0 %2837, %v61
  %v2839 = vpop.permute.xlu0 %2838
  %2841 = vset.pattern.permute.xlu0 6
  %2842 = vperm.xlu0 %2841, %v62
  %v2843 = vpop.permute.xlu0 %2842
  %2845 = vset.pattern.permute.xlu0 6
  %2846 = vperm.xlu0 %2845, %v63
  %v2847 = vpop.permute.xlu0 %2846
  %2849 = vset.pattern.permute.xlu0 6
  %2850 = vperm.xlu0 %2849, %v64
  %v2851 = vpop.permute.xlu0 %2850
  %2853 = vset.pattern.permute.xlu0 6
  %2854 = vperm.xlu0 %2853, %v65
  %v2855 = vpop.permute.xlu0 %2854
  %2857 = vset.pattern.permute.xlu0 6
  %2858 = vperm.xlu0 %2857, %v66
  %v2859 = vpop.permute.xlu0 %2858
  %2861 = vset.pattern.permute.xlu0 6
  %2862 = vperm.xlu0 %2861, %v67
  %v2863 = vpop.permute.xlu0 %2862
  %2865 = vset.pattern.permute.xlu0 6
  %2866 = vperm.xlu0 %2865, %v68
  %v2867 = vpop.permute.xlu0 %2866
  %2869 = vset.pattern.permute.xlu0 6
  %2870 = vperm.xlu0 %2869, %v69
  %v2871 = vpop.permute.xlu0 %2870
  %v2873 = vlaneseq
  %v2874 = vshrl.u32 %v2873, 7
  %v2875 = vsub.s32 6, %v2874
  %v2876 = vrot.slane %v70, %v2875
  %v2877 = vadd.f32 %v2811, %v2876
  %v2878 = vadd.f32 %v2815, %v2876
  %v2879 = vadd.f32 %v2819, %v2876
  %v2880 = vadd.f32 %v2823, %v2876
  %v2881 = vadd.f32 %v2827, %v2876
  %v2882 = vadd.f32 %v2831, %v2876
  %v2883 = vadd.f32 %v2835, %v2876
  %v2884 = vadd.f32 %v2839, %v2876
  %v2885 = vadd.f32 %v2843, %v2876
  %v2886 = vadd.f32 %v2847, %v2876
  %v2887 = vadd.f32 %v2851, %v2876
  %v2888 = vadd.f32 %v2855, %v2876
  %v2889 = vadd.f32 %v2859, %v2876
  %v2890 = vadd.f32 %v2863, %v2876
  %v2891 = vadd.f32 %v2867, %v2876
  %v2892 = vadd.f32 %v2871, %v2876
  %v2893 = vmul.f32 %v2877, 0.2
  %v2894 = vmul.f32 %v2878, 0.2
  %v2895 = vmul.f32 %v2879, 0.2
  %v2896 = vmul.f32 %v2880, 0.2
  %v2897 = vmul.f32 %v2881, 0.2
  %v2898 = vmul.f32 %v2882, 0.2
  %v2899 = vmul.f32 %v2883, 0.2
  %v2900 = vmul.f32 %v2884, 0.2
  %v2901 = vmul.f32 %v2885, 0.2
  %v2902 = vmul.f32 %v2886, 0.2
  %v2903 = vmul.f32 %v2887, 0.2
  %v2904 = vmul.f32 %v2888, 0.2
  %v2905 = vmul.f32 %v2889, 0.2
  %v2906 = vmul.f32 %v2890, 0.2
  %v2907 = vmul.f32 %v2891, 0.2
  %v2908 = vmul.f32 %v2892, 0.2
  %v2909 = vmax.f32 %v2877, %v2893
  %v2910 = vmax.f32 %v2878, %v2894
  %v2911 = vmax.f32 %v2879, %v2895
  %v2912 = vmax.f32 %v2880, %v2896
  %v2913 = vmax.f32 %v2881, %v2897
  %v2914 = vmax.f32 %v2882, %v2898
  %v2915 = vmax.f32 %v2883, %v2899
  %v2916 = vmax.f32 %v2884, %v2900
  %v2917 = vmax.f32 %v2885, %v2901
  %v2918 = vmax.f32 %v2886, %v2902
  %v2919 = vmax.f32 %v2887, %v2903
  %v2920 = vmax.f32 %v2888, %v2904
  %v2921 = vmax.f32 %v2889, %v2905
  %v2922 = vmax.f32 %v2890, %v2906
  %v2923 = vmax.f32 %v2891, %v2907
  %v2924 = vmax.f32 %v2892, %v2908
  %v2925 = vsel %vm269, %v2909, -1e+30
  %v2926 = vsel %vm270, %v2910, -1e+30
  %v2927 = vsel %vm271, %v2911, -1e+30
  %v2928 = vsel %vm272, %v2912, -1e+30
  %v2929 = vsel %vm273, %v2913, -1e+30
  %v2930 = vsel %vm274, %v2914, -1e+30
  %v2931 = vsel %vm275, %v2915, -1e+30
  %v2932 = vsel %vm276, %v2916, -1e+30
  %v2933 = vsel %vm277, %v2917, -1e+30
  %v2934 = vsel %vm278, %v2918, -1e+30
  %v2935 = vsel %vm279, %v2919, -1e+30
  %v2936 = vsel %vm280, %v2920, -1e+30
  %v2937 = vsel %vm281, %v2921, -1e+30
  %v2938 = vsel %vm282, %v2922, -1e+30
  %v2939 = vsel %vm283, %v2923, -1e+30
  %v2940 = vsel %vm284, %v2924, -1e+30
  %2941 = vmax.xlane.f32.xlu0 %v2925
  %v2942 = vpop.xlane.xlu0 %2941
  %2943 = vmax.xlane.f32.xlu0 %v2926
  %v2944 = vpop.xlane.xlu0 %2943
  %2945 = vmax.xlane.f32.xlu0 %v2927
  %v2946 = vpop.xlane.xlu0 %2945
  %2947 = vmax.xlane.f32.xlu0 %v2928
  %v2948 = vpop.xlane.xlu0 %2947
  %2949 = vmax.xlane.f32.xlu0 %v2929
  %v2950 = vpop.xlane.xlu0 %2949
  %2951 = vmax.xlane.f32.xlu0 %v2930
  %v2952 = vpop.xlane.xlu0 %2951
  %2953 = vmax.xlane.f32.xlu0 %v2931
  %v2954 = vpop.xlane.xlu0 %2953
  %2955 = vmax.xlane.f32.xlu0 %v2932
  %v2956 = vpop.xlane.xlu0 %2955
  %2957 = vmax.xlane.f32.xlu0 %v2933
  %v2958 = vpop.xlane.xlu0 %2957
  %2959 = vmax.xlane.f32.xlu0 %v2934
  %v2960 = vpop.xlane.xlu0 %2959
  %2961 = vmax.xlane.f32.xlu0 %v2935
  %v2962 = vpop.xlane.xlu0 %2961
  %2963 = vmax.xlane.f32.xlu0 %v2936
  %v2964 = vpop.xlane.xlu0 %2963
  %2965 = vmax.xlane.f32.xlu0 %v2937
  %v2966 = vpop.xlane.xlu0 %2965
  %2967 = vmax.xlane.f32.xlu0 %v2938
  %v2968 = vpop.xlane.xlu0 %2967
  %2969 = vmax.xlane.f32.xlu0 %v2939
  %v2970 = vpop.xlane.xlu0 %2969
  %2971 = vmax.xlane.f32.xlu0 %v2940
  %v2972 = vpop.xlane.xlu0 %2971
  %v2973 = vsub.f32 %v2925, %v2942
  %v2974 = vsub.f32 %v2926, %v2944
  %v2975 = vsub.f32 %v2927, %v2946
  %v2976 = vsub.f32 %v2928, %v2948
  %v2977 = vsub.f32 %v2929, %v2950
  %v2978 = vsub.f32 %v2930, %v2952
  %v2979 = vsub.f32 %v2931, %v2954
  %v2980 = vsub.f32 %v2932, %v2956
  %v2981 = vsub.f32 %v2933, %v2958
  %v2982 = vsub.f32 %v2934, %v2960
  %v2983 = vsub.f32 %v2935, %v2962
  %v2984 = vsub.f32 %v2936, %v2964
  %v2985 = vsub.f32 %v2937, %v2966
  %v2986 = vsub.f32 %v2938, %v2968
  %v2987 = vsub.f32 %v2939, %v2970
  %v2988 = vsub.f32 %v2940, %v2972
  %v2989 = vmul.f32 %v2973, 1.442695
  %v2990 = vpow.pop %v2989
  %v2991 = vmul.f32 %v2974, 1.442695
  %v2992 = vpow.pop %v2991
  %v2993 = vmul.f32 %v2975, 1.442695
  %v2994 = vpow.pop %v2993
  %v2995 = vmul.f32 %v2976, 1.442695
  %v2996 = vpow.pop %v2995
  %v2997 = vmul.f32 %v2977, 1.442695
  %v2998 = vpow.pop %v2997
  %v2999 = vmul.f32 %v2978, 1.442695
  %v3000 = vpow.pop %v2999
  %v3001 = vmul.f32 %v2979, 1.442695
  %v3002 = vpow.pop %v3001
  %v3003 = vmul.f32 %v2980, 1.442695
  %v3004 = vpow.pop %v3003
  %v3005 = vmul.f32 %v2981, 1.442695
  %v3006 = vpow.pop %v3005
  %v3007 = vmul.f32 %v2982, 1.442695
  %v3008 = vpow.pop %v3007
  %v3009 = vmul.f32 %v2983, 1.442695
  %v3010 = vpow.pop %v3009
  %v3011 = vmul.f32 %v2984, 1.442695
  %v3012 = vpow.pop %v3011
  %v3013 = vmul.f32 %v2985, 1.442695
  %v3014 = vpow.pop %v3013
  %v3015 = vmul.f32 %v2986, 1.442695
  %v3016 = vpow.pop %v3015
  %v3017 = vmul.f32 %v2987, 1.442695
  %v3018 = vpow.pop %v3017
  %v3019 = vmul.f32 %v2988, 1.442695
  %v3020 = vpow.pop %v3019
  %3021 = vadd.xlane.f32.xlu0 %v2990
  %v3022 = vpop.xlane.xlu0 %3021
  %3023 = vadd.xlane.f32.xlu0 %v2992
  %v3024 = vpop.xlane.xlu0 %3023
  %3025 = vadd.xlane.f32.xlu0 %v2994
  %v3026 = vpop.xlane.xlu0 %3025
  %3027 = vadd.xlane.f32.xlu0 %v2996
  %v3028 = vpop.xlane.xlu0 %3027
  %3029 = vadd.xlane.f32.xlu0 %v2998
  %v3030 = vpop.xlane.xlu0 %3029
  %3031 = vadd.xlane.f32.xlu0 %v3000
  %v3032 = vpop.xlane.xlu0 %3031
  %3033 = vadd.xlane.f32.xlu0 %v3002
  %v3034 = vpop.xlane.xlu0 %3033
  %3035 = vadd.xlane.f32.xlu0 %v3004
  %v3036 = vpop.xlane.xlu0 %3035
  %3037 = vadd.xlane.f32.xlu0 %v3006
  %v3038 = vpop.xlane.xlu0 %3037
  %3039 = vadd.xlane.f32.xlu0 %v3008
  %v3040 = vpop.xlane.xlu0 %3039
  %3041 = vadd.xlane.f32.xlu0 %v3010
  %v3042 = vpop.xlane.xlu0 %3041
  %3043 = vadd.xlane.f32.xlu0 %v3012
  %v3044 = vpop.xlane.xlu0 %3043
  %3045 = vadd.xlane.f32.xlu0 %v3014
  %v3046 = vpop.xlane.xlu0 %3045
  %3047 = vadd.xlane.f32.xlu0 %v3016
  %v3048 = vpop.xlane.xlu0 %3047
  %3049 = vadd.xlane.f32.xlu0 %v3018
  %v3050 = vpop.xlane.xlu0 %3049
  %3051 = vadd.xlane.f32.xlu0 %v3020
  %v3052 = vpop.xlane.xlu0 %3051
  %v3053 = vrcp.pop %v3022
  %v3054 = vrcp.pop %v3024
  %v3055 = vrcp.pop %v3026
  %v3056 = vrcp.pop %v3028
  %v3057 = vrcp.pop %v3030
  %v3058 = vrcp.pop %v3032
  %v3059 = vrcp.pop %v3034
  %v3060 = vrcp.pop %v3036
  %v3061 = vrcp.pop %v3038
  %v3062 = vrcp.pop %v3040
  %v3063 = vrcp.pop %v3042
  %v3064 = vrcp.pop %v3044
  %v3065 = vrcp.pop %v3046
  %v3066 = vrcp.pop %v3048
  %v3067 = vrcp.pop %v3050
  %v3068 = vrcp.pop %v3052
  %v3069 = vmul.f32 %v2990, %v3053
  %v3070 = vmul.f32 %v2992, %v3054
  %v3071 = vmul.f32 %v2994, %v3055
  %v3072 = vmul.f32 %v2996, %v3056
  %v3073 = vmul.f32 %v2998, %v3057
  %v3074 = vmul.f32 %v3000, %v3058
  %v3075 = vmul.f32 %v3002, %v3059
  %v3076 = vmul.f32 %v3004, %v3060
  %v3077 = vmul.f32 %v3006, %v3061
  %v3078 = vmul.f32 %v3008, %v3062
  %v3079 = vmul.f32 %v3010, %v3063
  %v3080 = vmul.f32 %v3012, %v3064
  %v3081 = vmul.f32 %v3014, %v3065
  %v3082 = vmul.f32 %v3016, %v3066
  %v3083 = vmul.f32 %v3018, %v3067
  %v3084 = vmul.f32 %v3020, %v3068
  %3085 = vmatprep.subr.mxu0 0.0
  %3086 = vmatpush1.msra.mxu0 %v102
  %3087 = vmatprep.subr.mxu0 0.0
  %3088 = vmatpush1.msra.mxu0 %v101
  %3089 = vmatprep.subr.mxu0 0.0
  %3090 = vmatpush1.msra.mxu0 %v100
  %3091 = vmatprep.subr.mxu0 0.0
  %3092 = vmatpush1.msra.mxu0 %v99
  %3093 = vmatprep.subr.mxu0 0.0
  %3094 = vmatpush1.msra.mxu0 %v98
  %3095 = vmatprep.subr.mxu0 0.0
  %3096 = vmatpush1.msra.mxu0 %v97
  %3097 = vmatprep.subr.mxu0 0.0
  %3098 = vmatpush1.msra.mxu0 %v96
  %3099 = vmatprep.subr.mxu0 0.0
  %3100 = vmatpush1.msra.mxu0 %v95
  %3101 = vmatprep.subr.mxu0 0.0
  %3102 = vmatpush1.msra.mxu0 %v94
  %3103 = vmatprep.subr.mxu0 0.0
  %3104 = vmatpush1.msra.mxu0 %v93
  %3105 = vmatprep.subr.mxu0 0.0
  %3106 = vmatpush1.msra.mxu0 %v92
  %3107 = vmatprep.subr.mxu0 0.0
  %3108 = vmatpush1.msra.mxu0 %v91
  %3109 = vmatprep.subr.mxu0 0.0
  %3110 = vmatpush1.msra.mxu0 %v90
  %3111 = vmatprep.subr.mxu0 0.0
  %3112 = vmatpush1.msra.mxu0 %v89
  %3113 = vmatprep.subr.mxu0 0.0
  %3114 = vmatpush1.msra.mxu0 %v88
  %3115 = vmatprep.subr.mxu0 0.0
  %3116 = vmatpush1.msra.mxu0 %v87
  %3117 = vmatprep.subr.mxu0 0.0
  %3118 = vmatpush2.msra.mxu0 0.0
  %3119 = vmatprep.subr.mxu0 0.0
  %3120 = vmatpush2.msra.mxu0 0.0
  %3121 = vmatprep.subr.mxu0 0.0
  %3122 = vmatpush2.msra.mxu0 0.0
  %3123 = vmatprep.subr.mxu0 0.0
  %3124 = vmatpush2.msra.mxu0 0.0
  %3125 = vmatprep.subr.mxu0 0.0
  %3126 = vmatpush2.msra.mxu0 0.0
  %3127 = vmatprep.subr.mxu0 0.0
  %3128 = vmatpush2.msra.mxu0 0.0
  %3129 = vmatprep.subr.mxu0 0.0
  %3130 = vmatpush2.msra.mxu0 0.0
  %3131 = vmatprep.subr.mxu0 0.0
  %3132 = vmatpush2.msra.mxu0 0.0
  %3133 = vmatprep.subr.mxu0 0.0
  %3134 = vmatpush2.msra.mxu0 0.0
  %3135 = vmatprep.subr.mxu0 0.0
  %3136 = vmatpush2.msra.mxu0 0.0
  %3137 = vmatprep.subr.mxu0 0.0
  %3138 = vmatpush2.msra.mxu0 0.0
  %3139 = vmatprep.subr.mxu0 0.0
  %3140 = vmatpush2.msra.mxu0 0.0
  %3141 = vmatprep.subr.mxu0 0.0
  %3142 = vmatpush2.msra.mxu0 0.0
  %3143 = vmatprep.subr.mxu0 0.0
  %3144 = vmatpush2.msra.mxu0 0.0
  %3145 = vmatprep.subr.mxu0 0.0
  %3146 = vmatpush2.msra.mxu0 0.0
  %3147 = vmatprep.subr.mxu0 0.0
  %3148 = vmatpush2.msra.mxu0 0.0
  %3149 = vmatprep.mubr.f32.mxu0 0.0
  %3150 = vmatmul.mubr.f32.gmra.mxu0 %v3069
  %v3151 = vpop.f32.mrf.mxu0
  %v3152 = vadd.f32 0.0, %v3151
  %v3153 = vpop.f32.mrf.mxu0
  %3154 = vmatprep.mubr.f32.mxu0 0.0
  %3155 = vmatmul.mubr.f32.gmra.mxu0 %v3070
  %v3156 = vpop.f32.mrf.mxu0
  %v3157 = vadd.f32 0.0, %v3156
  %v3158 = vpop.f32.mrf.mxu0
  %3159 = vmatprep.mubr.f32.mxu0 0.0
  %3160 = vmatmul.mubr.f32.gmra.mxu0 %v3071
  %v3161 = vpop.f32.mrf.mxu0
  %v3162 = vadd.f32 0.0, %v3161
  %v3163 = vpop.f32.mrf.mxu0
  %3164 = vmatprep.mubr.f32.mxu0 0.0
  %3165 = vmatmul.mubr.f32.gmra.mxu0 %v3072
  %v3166 = vpop.f32.mrf.mxu0
  %v3167 = vadd.f32 0.0, %v3166
  %v3168 = vpop.f32.mrf.mxu0
  %3169 = vmatprep.mubr.f32.mxu0 0.0
  %3170 = vmatmul.mubr.f32.gmra.mxu0 %v3073
  %v3171 = vpop.f32.mrf.mxu0
  %v3172 = vadd.f32 0.0, %v3171
  %v3173 = vpop.f32.mrf.mxu0
  %3174 = vmatprep.mubr.f32.mxu0 0.0
  %3175 = vmatmul.mubr.f32.gmra.mxu0 %v3074
  %v3176 = vpop.f32.mrf.mxu0
  %v3177 = vadd.f32 0.0, %v3176
  %v3178 = vpop.f32.mrf.mxu0
  %3179 = vmatprep.mubr.f32.mxu0 0.0
  %3180 = vmatmul.mubr.f32.gmra.mxu0 %v3075
  %v3181 = vpop.f32.mrf.mxu0
  %v3182 = vadd.f32 0.0, %v3181
  %v3183 = vpop.f32.mrf.mxu0
  %3184 = vmatprep.mubr.f32.mxu0 0.0
  %3185 = vmatmul.mubr.f32.gmra.mxu0 %v3076
  %v3186 = vpop.f32.mrf.mxu0
  %v3187 = vadd.f32 0.0, %v3186
  %v3188 = vpop.f32.mrf.mxu0
  %3189 = vmatprep.mubr.f32.mxu0 0.0
  %3190 = vmatmul.mubr.f32.gmra.mxu0 %v3077
  %v3191 = vpop.f32.mrf.mxu0
  %v3192 = vadd.f32 0.0, %v3191
  %v3193 = vpop.f32.mrf.mxu0
  %3194 = vmatprep.mubr.f32.mxu0 0.0
  %3195 = vmatmul.mubr.f32.gmra.mxu0 %v3078
  %v3196 = vpop.f32.mrf.mxu0
  %v3197 = vadd.f32 0.0, %v3196
  %v3198 = vpop.f32.mrf.mxu0
  %3199 = vmatprep.mubr.f32.mxu0 0.0
  %3200 = vmatmul.mubr.f32.gmra.mxu0 %v3079
  %v3201 = vpop.f32.mrf.mxu0
  %v3202 = vadd.f32 0.0, %v3201
  %v3203 = vpop.f32.mrf.mxu0
  %3204 = vmatprep.mubr.f32.mxu0 0.0
  %3205 = vmatmul.mubr.f32.gmra.mxu0 %v3080
  %v3206 = vpop.f32.mrf.mxu0
  %v3207 = vadd.f32 0.0, %v3206
  %v3208 = vpop.f32.mrf.mxu0
  %3209 = vmatprep.mubr.f32.mxu0 0.0
  %3210 = vmatmul.mubr.f32.gmra.mxu0 %v3081
  %v3211 = vpop.f32.mrf.mxu0
  %v3212 = vadd.f32 0.0, %v3211
  %v3213 = vpop.f32.mrf.mxu0
  %3214 = vmatprep.mubr.f32.mxu0 0.0
  %3215 = vmatmul.mubr.f32.gmra.mxu0 %v3082
  %v3216 = vpop.f32.mrf.mxu0
  %v3217 = vadd.f32 0.0, %v3216
  %v3218 = vpop.f32.mrf.mxu0
  %3219 = vmatprep.mubr.f32.mxu0 0.0
  %3220 = vmatmul.mubr.f32.gmra.mxu0 %v3083
  %v3221 = vpop.f32.mrf.mxu0
  %v3222 = vadd.f32 0.0, %v3221
  %v3223 = vpop.f32.mrf.mxu0
  %3224 = vmatprep.mubr.f32.mxu0 0.0
  %3225 = vmatmul.mubr.f32.gmra.mxu0 %v3084
  %v3226 = vpop.f32.mrf.mxu0
  %v3227 = vadd.f32 0.0, %v3226
  %v3228 = vpop.f32.mrf.mxu0
  %3229 = vdwg.mxu0
  %vm3230 = vcmp.ge.s32.totalorder %v104, 48
  %vm3231 = vcmp.lt.s32.totalorder %v104, 56
  %vm3232 = vmand %vm3230, %vm3231
  %v3233 = vsel %vm3232, %v3152, %v2793
  %v3234 = vsel %vm3232, %v3157, %v2794
  %v3235 = vsel %vm3232, %v3162, %v2795
  %v3236 = vsel %vm3232, %v3167, %v2796
  %v3237 = vsel %vm3232, %v3172, %v2797
  %v3238 = vsel %vm3232, %v3177, %v2798
  %v3239 = vsel %vm3232, %v3182, %v2799
  %v3240 = vsel %vm3232, %v3187, %v2800
  %v3241 = vsel %vm3232, %v3192, %v2801
  %v3242 = vsel %vm3232, %v3197, %v2802
  %v3243 = vsel %vm3232, %v3202, %v2803
  %v3244 = vsel %vm3232, %v3207, %v2804
  %v3245 = vsel %vm3232, %v3212, %v2805
  %v3246 = vsel %vm3232, %v3217, %v2806
  %v3247 = vsel %vm3232, %v3222, %v2807
  %v3248 = vsel %vm3232, %v3227, %v2808
  %3249 = vset.pattern.permute.xlu0 7
  %3250 = vperm.xlu0 %3249, %v54
  %v3251 = vpop.permute.xlu0 %3250
  %3253 = vset.pattern.permute.xlu0 7
  %3254 = vperm.xlu0 %3253, %v55
  %v3255 = vpop.permute.xlu0 %3254
  %3257 = vset.pattern.permute.xlu0 7
  %3258 = vperm.xlu0 %3257, %v56
  %v3259 = vpop.permute.xlu0 %3258
  %3261 = vset.pattern.permute.xlu0 7
  %3262 = vperm.xlu0 %3261, %v57
  %v3263 = vpop.permute.xlu0 %3262
  %3265 = vset.pattern.permute.xlu0 7
  %3266 = vperm.xlu0 %3265, %v58
  %v3267 = vpop.permute.xlu0 %3266
  %3269 = vset.pattern.permute.xlu0 7
  %3270 = vperm.xlu0 %3269, %v59
  %v3271 = vpop.permute.xlu0 %3270
  %3273 = vset.pattern.permute.xlu0 7
  %3274 = vperm.xlu0 %3273, %v60
  %v3275 = vpop.permute.xlu0 %3274
  %3277 = vset.pattern.permute.xlu0 7
  %3278 = vperm.xlu0 %3277, %v61
  %v3279 = vpop.permute.xlu0 %3278
  %3281 = vset.pattern.permute.xlu0 7
  %3282 = vperm.xlu0 %3281, %v62
  %v3283 = vpop.permute.xlu0 %3282
  %3285 = vset.pattern.permute.xlu0 7
  %3286 = vperm.xlu0 %3285, %v63
  %v3287 = vpop.permute.xlu0 %3286
  %3289 = vset.pattern.permute.xlu0 7
  %3290 = vperm.xlu0 %3289, %v64
  %v3291 = vpop.permute.xlu0 %3290
  %3293 = vset.pattern.permute.xlu0 7
  %3294 = vperm.xlu0 %3293, %v65
  %v3295 = vpop.permute.xlu0 %3294
  %3297 = vset.pattern.permute.xlu0 7
  %3298 = vperm.xlu0 %3297, %v66
  %v3299 = vpop.permute.xlu0 %3298
  %3301 = vset.pattern.permute.xlu0 7
  %3302 = vperm.xlu0 %3301, %v67
  %v3303 = vpop.permute.xlu0 %3302
  %3305 = vset.pattern.permute.xlu0 7
  %3306 = vperm.xlu0 %3305, %v68
  %v3307 = vpop.permute.xlu0 %3306
  %3309 = vset.pattern.permute.xlu0 7
  %3310 = vperm.xlu0 %3309, %v69
  %v3311 = vpop.permute.xlu0 %3310
  %v3313 = vlaneseq
  %v3314 = vshrl.u32 %v3313, 7
  %v3315 = vsub.s32 7, %v3314
  %v3316 = vrot.slane %v70, %v3315
  %v3317 = vadd.f32 %v3251, %v3316
  %v3318 = vadd.f32 %v3255, %v3316
  %v3319 = vadd.f32 %v3259, %v3316
  %v3320 = vadd.f32 %v3263, %v3316
  %v3321 = vadd.f32 %v3267, %v3316
  %v3322 = vadd.f32 %v3271, %v3316
  %v3323 = vadd.f32 %v3275, %v3316
  %v3324 = vadd.f32 %v3279, %v3316
  %v3325 = vadd.f32 %v3283, %v3316
  %v3326 = vadd.f32 %v3287, %v3316
  %v3327 = vadd.f32 %v3291, %v3316
  %v3328 = vadd.f32 %v3295, %v3316
  %v3329 = vadd.f32 %v3299, %v3316
  %v3330 = vadd.f32 %v3303, %v3316
  %v3331 = vadd.f32 %v3307, %v3316
  %v3332 = vadd.f32 %v3311, %v3316
  %v3333 = vmul.f32 %v3317, 0.2
  %v3334 = vmul.f32 %v3318, 0.2
  %v3335 = vmul.f32 %v3319, 0.2
  %v3336 = vmul.f32 %v3320, 0.2
  %v3337 = vmul.f32 %v3321, 0.2
  %v3338 = vmul.f32 %v3322, 0.2
  %v3339 = vmul.f32 %v3323, 0.2
  %v3340 = vmul.f32 %v3324, 0.2
  %v3341 = vmul.f32 %v3325, 0.2
  %v3342 = vmul.f32 %v3326, 0.2
  %v3343 = vmul.f32 %v3327, 0.2
  %v3344 = vmul.f32 %v3328, 0.2
  %v3345 = vmul.f32 %v3329, 0.2
  %v3346 = vmul.f32 %v3330, 0.2
  %v3347 = vmul.f32 %v3331, 0.2
  %v3348 = vmul.f32 %v3332, 0.2
  %v3349 = vmax.f32 %v3317, %v3333
  %v3350 = vmax.f32 %v3318, %v3334
  %v3351 = vmax.f32 %v3319, %v3335
  %v3352 = vmax.f32 %v3320, %v3336
  %v3353 = vmax.f32 %v3321, %v3337
  %v3354 = vmax.f32 %v3322, %v3338
  %v3355 = vmax.f32 %v3323, %v3339
  %v3356 = vmax.f32 %v3324, %v3340
  %v3357 = vmax.f32 %v3325, %v3341
  %v3358 = vmax.f32 %v3326, %v3342
  %v3359 = vmax.f32 %v3327, %v3343
  %v3360 = vmax.f32 %v3328, %v3344
  %v3361 = vmax.f32 %v3329, %v3345
  %v3362 = vmax.f32 %v3330, %v3346
  %v3363 = vmax.f32 %v3331, %v3347
  %v3364 = vmax.f32 %v3332, %v3348
  %v3365 = vsel %vm269, %v3349, -1e+30
  %v3366 = vsel %vm270, %v3350, -1e+30
  %v3367 = vsel %vm271, %v3351, -1e+30
  %v3368 = vsel %vm272, %v3352, -1e+30
  %v3369 = vsel %vm273, %v3353, -1e+30
  %v3370 = vsel %vm274, %v3354, -1e+30
  %v3371 = vsel %vm275, %v3355, -1e+30
  %v3372 = vsel %vm276, %v3356, -1e+30
  %v3373 = vsel %vm277, %v3357, -1e+30
  %v3374 = vsel %vm278, %v3358, -1e+30
  %v3375 = vsel %vm279, %v3359, -1e+30
  %v3376 = vsel %vm280, %v3360, -1e+30
  %v3377 = vsel %vm281, %v3361, -1e+30
  %v3378 = vsel %vm282, %v3362, -1e+30
  %v3379 = vsel %vm283, %v3363, -1e+30
  %v3380 = vsel %vm284, %v3364, -1e+30
  %3381 = vmax.xlane.f32.xlu0 %v3365
  %v3382 = vpop.xlane.xlu0 %3381
  %3383 = vmax.xlane.f32.xlu0 %v3366
  %v3384 = vpop.xlane.xlu0 %3383
  %3385 = vmax.xlane.f32.xlu0 %v3367
  %v3386 = vpop.xlane.xlu0 %3385
  %3387 = vmax.xlane.f32.xlu0 %v3368
  %v3388 = vpop.xlane.xlu0 %3387
  %3389 = vmax.xlane.f32.xlu0 %v3369
  %v3390 = vpop.xlane.xlu0 %3389
  %3391 = vmax.xlane.f32.xlu0 %v3370
  %v3392 = vpop.xlane.xlu0 %3391
  %3393 = vmax.xlane.f32.xlu0 %v3371
  %v3394 = vpop.xlane.xlu0 %3393
  %3395 = vmax.xlane.f32.xlu0 %v3372
  %v3396 = vpop.xlane.xlu0 %3395
  %3397 = vmax.xlane.f32.xlu0 %v3373
  %v3398 = vpop.xlane.xlu0 %3397
  %3399 = vmax.xlane.f32.xlu0 %v3374
  %v3400 = vpop.xlane.xlu0 %3399
  %3401 = vmax.xlane.f32.xlu0 %v3375
  %v3402 = vpop.xlane.xlu0 %3401
  %3403 = vmax.xlane.f32.xlu0 %v3376
  %v3404 = vpop.xlane.xlu0 %3403
  %3405 = vmax.xlane.f32.xlu0 %v3377
  %v3406 = vpop.xlane.xlu0 %3405
  %3407 = vmax.xlane.f32.xlu0 %v3378
  %v3408 = vpop.xlane.xlu0 %3407
  %3409 = vmax.xlane.f32.xlu0 %v3379
  %v3410 = vpop.xlane.xlu0 %3409
  %3411 = vmax.xlane.f32.xlu0 %v3380
  %v3412 = vpop.xlane.xlu0 %3411
  %v3413 = vsub.f32 %v3365, %v3382
  %v3414 = vsub.f32 %v3366, %v3384
  %v3415 = vsub.f32 %v3367, %v3386
  %v3416 = vsub.f32 %v3368, %v3388
  %v3417 = vsub.f32 %v3369, %v3390
  %v3418 = vsub.f32 %v3370, %v3392
  %v3419 = vsub.f32 %v3371, %v3394
  %v3420 = vsub.f32 %v3372, %v3396
  %v3421 = vsub.f32 %v3373, %v3398
  %v3422 = vsub.f32 %v3374, %v3400
  %v3423 = vsub.f32 %v3375, %v3402
  %v3424 = vsub.f32 %v3376, %v3404
  %v3425 = vsub.f32 %v3377, %v3406
  %v3426 = vsub.f32 %v3378, %v3408
  %v3427 = vsub.f32 %v3379, %v3410
  %v3428 = vsub.f32 %v3380, %v3412
  %v3429 = vmul.f32 %v3413, 1.442695
  %v3430 = vpow.pop %v3429
  %v3431 = vmul.f32 %v3414, 1.442695
  %v3432 = vpow.pop %v3431
  %v3433 = vmul.f32 %v3415, 1.442695
  %v3434 = vpow.pop %v3433
  %v3435 = vmul.f32 %v3416, 1.442695
  %v3436 = vpow.pop %v3435
  %v3437 = vmul.f32 %v3417, 1.442695
  %v3438 = vpow.pop %v3437
  %v3439 = vmul.f32 %v3418, 1.442695
  %v3440 = vpow.pop %v3439
  %v3441 = vmul.f32 %v3419, 1.442695
  %v3442 = vpow.pop %v3441
  %v3443 = vmul.f32 %v3420, 1.442695
  %v3444 = vpow.pop %v3443
  %v3445 = vmul.f32 %v3421, 1.442695
  %v3446 = vpow.pop %v3445
  %v3447 = vmul.f32 %v3422, 1.442695
  %v3448 = vpow.pop %v3447
  %v3449 = vmul.f32 %v3423, 1.442695
  %v3450 = vpow.pop %v3449
  %v3451 = vmul.f32 %v3424, 1.442695
  %v3452 = vpow.pop %v3451
  %v3453 = vmul.f32 %v3425, 1.442695
  %v3454 = vpow.pop %v3453
  %v3455 = vmul.f32 %v3426, 1.442695
  %v3456 = vpow.pop %v3455
  %v3457 = vmul.f32 %v3427, 1.442695
  %v3458 = vpow.pop %v3457
  %v3459 = vmul.f32 %v3428, 1.442695
  %v3460 = vpow.pop %v3459
  %3461 = vadd.xlane.f32.xlu0 %v3430
  %v3462 = vpop.xlane.xlu0 %3461
  %3463 = vadd.xlane.f32.xlu0 %v3432
  %v3464 = vpop.xlane.xlu0 %3463
  %3465 = vadd.xlane.f32.xlu0 %v3434
  %v3466 = vpop.xlane.xlu0 %3465
  %3467 = vadd.xlane.f32.xlu0 %v3436
  %v3468 = vpop.xlane.xlu0 %3467
  %3469 = vadd.xlane.f32.xlu0 %v3438
  %v3470 = vpop.xlane.xlu0 %3469
  %3471 = vadd.xlane.f32.xlu0 %v3440
  %v3472 = vpop.xlane.xlu0 %3471
  %3473 = vadd.xlane.f32.xlu0 %v3442
  %v3474 = vpop.xlane.xlu0 %3473
  %3475 = vadd.xlane.f32.xlu0 %v3444
  %v3476 = vpop.xlane.xlu0 %3475
  %3477 = vadd.xlane.f32.xlu0 %v3446
  %v3478 = vpop.xlane.xlu0 %3477
  %3479 = vadd.xlane.f32.xlu0 %v3448
  %v3480 = vpop.xlane.xlu0 %3479
  %3481 = vadd.xlane.f32.xlu0 %v3450
  %v3482 = vpop.xlane.xlu0 %3481
  %3483 = vadd.xlane.f32.xlu0 %v3452
  %v3484 = vpop.xlane.xlu0 %3483
  %3485 = vadd.xlane.f32.xlu0 %v3454
  %v3486 = vpop.xlane.xlu0 %3485
  %3487 = vadd.xlane.f32.xlu0 %v3456
  %v3488 = vpop.xlane.xlu0 %3487
  %3489 = vadd.xlane.f32.xlu0 %v3458
  %v3490 = vpop.xlane.xlu0 %3489
  %3491 = vadd.xlane.f32.xlu0 %v3460
  %v3492 = vpop.xlane.xlu0 %3491
  %v3493 = vrcp.pop %v3462
  %v3494 = vrcp.pop %v3464
  %v3495 = vrcp.pop %v3466
  %v3496 = vrcp.pop %v3468
  %v3497 = vrcp.pop %v3470
  %v3498 = vrcp.pop %v3472
  %v3499 = vrcp.pop %v3474
  %v3500 = vrcp.pop %v3476
  %v3501 = vrcp.pop %v3478
  %v3502 = vrcp.pop %v3480
  %v3503 = vrcp.pop %v3482
  %v3504 = vrcp.pop %v3484
  %v3505 = vrcp.pop %v3486
  %v3506 = vrcp.pop %v3488
  %v3507 = vrcp.pop %v3490
  %v3508 = vrcp.pop %v3492
  %v3509 = vmul.f32 %v3430, %v3493
  %v3510 = vmul.f32 %v3432, %v3494
  %v3511 = vmul.f32 %v3434, %v3495
  %v3512 = vmul.f32 %v3436, %v3496
  %v3513 = vmul.f32 %v3438, %v3497
  %v3514 = vmul.f32 %v3440, %v3498
  %v3515 = vmul.f32 %v3442, %v3499
  %v3516 = vmul.f32 %v3444, %v3500
  %v3517 = vmul.f32 %v3446, %v3501
  %v3518 = vmul.f32 %v3448, %v3502
  %v3519 = vmul.f32 %v3450, %v3503
  %v3520 = vmul.f32 %v3452, %v3504
  %v3521 = vmul.f32 %v3454, %v3505
  %v3522 = vmul.f32 %v3456, %v3506
  %v3523 = vmul.f32 %v3458, %v3507
  %v3524 = vmul.f32 %v3460, %v3508
  %3525 = vmatprep.subr.mxu0 0.0
  %3526 = vmatpush1.msra.mxu0 %v102
  %3527 = vmatprep.subr.mxu0 0.0
  %3528 = vmatpush1.msra.mxu0 %v101
  %3529 = vmatprep.subr.mxu0 0.0
  %3530 = vmatpush1.msra.mxu0 %v100
  %3531 = vmatprep.subr.mxu0 0.0
  %3532 = vmatpush1.msra.mxu0 %v99
  %3533 = vmatprep.subr.mxu0 0.0
  %3534 = vmatpush1.msra.mxu0 %v98
  %3535 = vmatprep.subr.mxu0 0.0
  %3536 = vmatpush1.msra.mxu0 %v97
  %3537 = vmatprep.subr.mxu0 0.0
  %3538 = vmatpush1.msra.mxu0 %v96
  %3539 = vmatprep.subr.mxu0 0.0
  %3540 = vmatpush1.msra.mxu0 %v95
  %3541 = vmatprep.subr.mxu0 0.0
  %3542 = vmatpush1.msra.mxu0 %v94
  %3543 = vmatprep.subr.mxu0 0.0
  %3544 = vmatpush1.msra.mxu0 %v93
  %3545 = vmatprep.subr.mxu0 0.0
  %3546 = vmatpush1.msra.mxu0 %v92
  %3547 = vmatprep.subr.mxu0 0.0
  %3548 = vmatpush1.msra.mxu0 %v91
  %3549 = vmatprep.subr.mxu0 0.0
  %3550 = vmatpush1.msra.mxu0 %v90
  %3551 = vmatprep.subr.mxu0 0.0
  %3552 = vmatpush1.msra.mxu0 %v89
  %3553 = vmatprep.subr.mxu0 0.0
  %3554 = vmatpush1.msra.mxu0 %v88
  %3555 = vmatprep.subr.mxu0 0.0
  %3556 = vmatpush1.msra.mxu0 %v87
  %3557 = vmatprep.subr.mxu0 0.0
  %3558 = vmatpush2.msra.mxu0 0.0
  %3559 = vmatprep.subr.mxu0 0.0
  %3560 = vmatpush2.msra.mxu0 0.0
  %3561 = vmatprep.subr.mxu0 0.0
  %3562 = vmatpush2.msra.mxu0 0.0
  %3563 = vmatprep.subr.mxu0 0.0
  %3564 = vmatpush2.msra.mxu0 0.0
  %3565 = vmatprep.subr.mxu0 0.0
  %3566 = vmatpush2.msra.mxu0 0.0
  %3567 = vmatprep.subr.mxu0 0.0
  %3568 = vmatpush2.msra.mxu0 0.0
  %3569 = vmatprep.subr.mxu0 0.0
  %3570 = vmatpush2.msra.mxu0 0.0
  %3571 = vmatprep.subr.mxu0 0.0
  %3572 = vmatpush2.msra.mxu0 0.0
  %3573 = vmatprep.subr.mxu0 0.0
  %3574 = vmatpush2.msra.mxu0 0.0
  %3575 = vmatprep.subr.mxu0 0.0
  %3576 = vmatpush2.msra.mxu0 0.0
  %3577 = vmatprep.subr.mxu0 0.0
  %3578 = vmatpush2.msra.mxu0 0.0
  %3579 = vmatprep.subr.mxu0 0.0
  %3580 = vmatpush2.msra.mxu0 0.0
  %3581 = vmatprep.subr.mxu0 0.0
  %3582 = vmatpush2.msra.mxu0 0.0
  %3583 = vmatprep.subr.mxu0 0.0
  %3584 = vmatpush2.msra.mxu0 0.0
  %3585 = vmatprep.subr.mxu0 0.0
  %3586 = vmatpush2.msra.mxu0 0.0
  %3587 = vmatprep.subr.mxu0 0.0
  %3588 = vmatpush2.msra.mxu0 0.0
  %3589 = vmatprep.mubr.f32.mxu0 0.0
  %3590 = vmatmul.mubr.f32.gmra.mxu0 %v3509
  %v3591 = vpop.f32.mrf.mxu0
  %v3592 = vadd.f32 0.0, %v3591
  %v3593 = vpop.f32.mrf.mxu0
  %3594 = vmatprep.mubr.f32.mxu0 0.0
  %3595 = vmatmul.mubr.f32.gmra.mxu0 %v3510
  %v3596 = vpop.f32.mrf.mxu0
  %v3597 = vadd.f32 0.0, %v3596
  %v3598 = vpop.f32.mrf.mxu0
  %3599 = vmatprep.mubr.f32.mxu0 0.0
  %3600 = vmatmul.mubr.f32.gmra.mxu0 %v3511
  %v3601 = vpop.f32.mrf.mxu0
  %v3602 = vadd.f32 0.0, %v3601
  %v3603 = vpop.f32.mrf.mxu0
  %3604 = vmatprep.mubr.f32.mxu0 0.0
  %3605 = vmatmul.mubr.f32.gmra.mxu0 %v3512
  %v3606 = vpop.f32.mrf.mxu0
  %v3607 = vadd.f32 0.0, %v3606
  %v3608 = vpop.f32.mrf.mxu0
  %3609 = vmatprep.mubr.f32.mxu0 0.0
  %3610 = vmatmul.mubr.f32.gmra.mxu0 %v3513
  %v3611 = vpop.f32.mrf.mxu0
  %v3612 = vadd.f32 0.0, %v3611
  %v3613 = vpop.f32.mrf.mxu0
  %3614 = vmatprep.mubr.f32.mxu0 0.0
  %3615 = vmatmul.mubr.f32.gmra.mxu0 %v3514
  %v3616 = vpop.f32.mrf.mxu0
  %v3617 = vadd.f32 0.0, %v3616
  %v3618 = vpop.f32.mrf.mxu0
  %3619 = vmatprep.mubr.f32.mxu0 0.0
  %3620 = vmatmul.mubr.f32.gmra.mxu0 %v3515
  %v3621 = vpop.f32.mrf.mxu0
  %v3622 = vadd.f32 0.0, %v3621
  %v3623 = vpop.f32.mrf.mxu0
  %3624 = vmatprep.mubr.f32.mxu0 0.0
  %3625 = vmatmul.mubr.f32.gmra.mxu0 %v3516
  %v3626 = vpop.f32.mrf.mxu0
  %v3627 = vadd.f32 0.0, %v3626
  %v3628 = vpop.f32.mrf.mxu0
  %3629 = vmatprep.mubr.f32.mxu0 0.0
  %3630 = vmatmul.mubr.f32.gmra.mxu0 %v3517
  %v3631 = vpop.f32.mrf.mxu0
  %v3632 = vadd.f32 0.0, %v3631
  %v3633 = vpop.f32.mrf.mxu0
  %3634 = vmatprep.mubr.f32.mxu0 0.0
  %3635 = vmatmul.mubr.f32.gmra.mxu0 %v3518
  %v3636 = vpop.f32.mrf.mxu0
  %v3637 = vadd.f32 0.0, %v3636
  %v3638 = vpop.f32.mrf.mxu0
  %3639 = vmatprep.mubr.f32.mxu0 0.0
  %3640 = vmatmul.mubr.f32.gmra.mxu0 %v3519
  %v3641 = vpop.f32.mrf.mxu0
  %v3642 = vadd.f32 0.0, %v3641
  %v3643 = vpop.f32.mrf.mxu0
  %3644 = vmatprep.mubr.f32.mxu0 0.0
  %3645 = vmatmul.mubr.f32.gmra.mxu0 %v3520
  %v3646 = vpop.f32.mrf.mxu0
  %v3647 = vadd.f32 0.0, %v3646
  %v3648 = vpop.f32.mrf.mxu0
  %3649 = vmatprep.mubr.f32.mxu0 0.0
  %3650 = vmatmul.mubr.f32.gmra.mxu0 %v3521
  %v3651 = vpop.f32.mrf.mxu0
  %v3652 = vadd.f32 0.0, %v3651
  %v3653 = vpop.f32.mrf.mxu0
  %3654 = vmatprep.mubr.f32.mxu0 0.0
  %3655 = vmatmul.mubr.f32.gmra.mxu0 %v3522
  %v3656 = vpop.f32.mrf.mxu0
  %v3657 = vadd.f32 0.0, %v3656
  %v3658 = vpop.f32.mrf.mxu0
  %3659 = vmatprep.mubr.f32.mxu0 0.0
  %3660 = vmatmul.mubr.f32.gmra.mxu0 %v3523
  %v3661 = vpop.f32.mrf.mxu0
  %v3662 = vadd.f32 0.0, %v3661
  %v3663 = vpop.f32.mrf.mxu0
  %3664 = vmatprep.mubr.f32.mxu0 0.0
  %3665 = vmatmul.mubr.f32.gmra.mxu0 %v3524
  %v3666 = vpop.f32.mrf.mxu0
  %v3667 = vadd.f32 0.0, %v3666
  %v3668 = vpop.f32.mrf.mxu0
  %3669 = vdwg.mxu0
  %vm3670 = vcmp.ge.s32.totalorder %v104, 56
  %vm3671 = vcmp.lt.s32.totalorder %v104, 64
  %vm3672 = vmand %vm3670, %vm3671
  %v3673 = vsel %vm3672, %v3592, %v3233
  %v3674 = vsel %vm3672, %v3597, %v3234
  %v3675 = vsel %vm3672, %v3602, %v3235
  %v3676 = vsel %vm3672, %v3607, %v3236
  %v3677 = vsel %vm3672, %v3612, %v3237
  %v3678 = vsel %vm3672, %v3617, %v3238
  %v3679 = vsel %vm3672, %v3622, %v3239
  %v3680 = vsel %vm3672, %v3627, %v3240
  %v3681 = vsel %vm3672, %v3632, %v3241
  %v3682 = vsel %vm3672, %v3637, %v3242
  %v3683 = vsel %vm3672, %v3642, %v3243
  %v3684 = vsel %vm3672, %v3647, %v3244
  %v3685 = vsel %vm3672, %v3652, %v3245
  %v3686 = vsel %vm3672, %v3657, %v3246
  %v3687 = vsel %vm3672, %v3662, %v3247
  %v3688 = vsel %vm3672, %v3667, %v3248
  %v3689 = vld [vmem:[%s4] sm:$0x1]
  %v3691 = vlaneseq
  %v3692 = vshrl.u32 %v3691, 7
  %v3693 = vsub.s32 0, %v3692
  %v3694 = vrot.slane %v3689, %v3693
  %v3696 = vadd.f32 %v3673, %v3694
  %v3697 = vadd.f32 %v3674, %v3694
  %v3698 = vadd.f32 %v3675, %v3694
  %v3699 = vadd.f32 %v3676, %v3694
  %v3700 = vadd.f32 %v3677, %v3694
  %v3701 = vadd.f32 %v3678, %v3694
  %v3702 = vadd.f32 %v3679, %v3694
  %v3703 = vadd.f32 %v3680, %v3694
  %v3704 = vadd.f32 %v3681, %v3694
  %v3705 = vadd.f32 %v3682, %v3694
  %v3706 = vadd.f32 %v3683, %v3694
  %v3707 = vadd.f32 %v3684, %v3694
  %v3708 = vadd.f32 %v3685, %v3694
  %v3709 = vadd.f32 %v3686, %v3694
  %v3710 = vadd.f32 %v3687, %v3694
  %v3711 = vadd.f32 %v3688, %v3694
  %v3712 = vmax.f32 %v3696, 0.0
  %v3713 = vmax.f32 %v3697, 0.0
  %v3714 = vmax.f32 %v3698, 0.0
  %v3715 = vmax.f32 %v3699, 0.0
  %v3716 = vmax.f32 %v3700, 0.0
  %v3717 = vmax.f32 %v3701, 0.0
  %v3718 = vmax.f32 %v3702, 0.0
  %v3719 = vmax.f32 %v3703, 0.0
  %v3720 = vmax.f32 %v3704, 0.0
  %v3721 = vmax.f32 %v3705, 0.0
  %v3722 = vmax.f32 %v3706, 0.0
  %v3723 = vmax.f32 %v3707, 0.0
  %v3724 = vmax.f32 %v3708, 0.0
  %v3725 = vmax.f32 %v3709, 0.0
  %v3726 = vmax.f32 %v3710, 0.0
  %v3727 = vmax.f32 %v3711, 0.0
  %v3728 = vpack.c.bf16 %v3713, %v3712
  %v3729 = vpack.c.bf16 %v3715, %v3714
  %v3730 = vpack.c.bf16 %v3717, %v3716
  %v3731 = vpack.c.bf16 %v3719, %v3718
  %v3732 = vpack.c.bf16 %v3721, %v3720
  %v3733 = vpack.c.bf16 %v3723, %v3722
  %v3734 = vpack.c.bf16 %v3725, %v3724
  %v3735 = vpack.c.bf16 %v3727, %v3726
  %v3744 = vunpack.c.l.b16 %v3728
  %v3745 = vunpack.c.h.b16 %v3728
  %v3746 = vunpack.c.l.b16 %v3729
  %v3747 = vunpack.c.h.b16 %v3729
  %v3748 = vunpack.c.l.b16 %v3730
  %v3749 = vunpack.c.h.b16 %v3730
  %v3750 = vunpack.c.l.b16 %v3731
  %v3751 = vunpack.c.h.b16 %v3731
  %v3752 = vunpack.c.l.b16 %v3732
  %v3753 = vunpack.c.h.b16 %v3732
  %v3754 = vunpack.c.l.b16 %v3733
  %v3755 = vunpack.c.h.b16 %v3733
  %v3756 = vunpack.c.l.b16 %v3734
  %v3757 = vunpack.c.h.b16 %v3734
  %v3758 = vunpack.c.l.b16 %v3735
  %v3759 = vunpack.c.h.b16 %v3735
  %v3760 = vpack.c.b16 %v3744, %v3744
  %v3761 = vpack.c.b16 %v3745, %v3745
  %v3762 = vpack.c.b16 %v3746, %v3746
  %v3763 = vpack.c.b16 %v3747, %v3747
  %v3764 = vpack.c.b16 %v3748, %v3748
  %v3765 = vpack.c.b16 %v3749, %v3749
  %v3766 = vpack.c.b16 %v3750, %v3750
  %v3767 = vpack.c.b16 %v3751, %v3751
  %v3768 = vpack.c.b16 %v3752, %v3752
  %v3769 = vpack.c.b16 %v3753, %v3753
  %v3770 = vpack.c.b16 %v3754, %v3754
  %v3771 = vpack.c.b16 %v3755, %v3755
  %v3772 = vpack.c.b16 %v3756, %v3756
  %v3773 = vpack.c.b16 %v3757, %v3757
  %v3774 = vpack.c.b16 %v3758, %v3758
  %v3775 = vpack.c.b16 %v3759, %v3759
  %3792 = vst [vmem:[%s5] sm:$0xf] %v3760
  %3793 = vst [vmem:[%s5 + $0x4] sm:$0xf] %v3761
  %3794 = vst [vmem:[%s5 + $0x8] sm:$0xf] %v3762
  %3795 = vst [vmem:[%s5 + $0xc] sm:$0xf] %v3763
  %3796 = vst [vmem:[%s5 + $0x10] sm:$0xf] %v3764
  %3797 = vst [vmem:[%s5 + $0x14] sm:$0xf] %v3765
  %3798 = vst [vmem:[%s5 + $0x18] sm:$0xf] %v3766
  %3799 = vst [vmem:[%s5 + $0x1c] sm:$0xf] %v3767
  %3800 = vst [vmem:[%s5 + $0x20] sm:$0xf] %v3768
  %3801 = vst [vmem:[%s5 + $0x24] sm:$0xf] %v3769
  %3802 = vst [vmem:[%s5 + $0x28] sm:$0xf] %v3770
  %3803 = vst [vmem:[%s5 + $0x2c] sm:$0xf] %v3771
  %3804 = vst [vmem:[%s5 + $0x30] sm:$0xf] %v3772
  %3805 = vst [vmem:[%s5 + $0x34] sm:$0xf] %v3773
  %3806 = vst [vmem:[%s5 + $0x38] sm:$0xf] %v3774
  %3807 = vst [vmem:[%s5 + $0x3c] sm:$0xf] %v3775
  // Predicated region
  $region22: #{gat_forward.5} parent=0 // pred_check
    _
  $region23: #{gat_forward.5} parent=0 // pred_check_branch
    %3809 = sbr.rel (0) target = $region25
  $region24: #{gat_forward.5} parent=0 // pred_region
    _
  $region25: #{gat_forward.5} parent=0 // pred_fallthru
    _
  // Predicated region
  $region26: #{gat_forward.5} parent=0 // pred_check
    _
  $region27: #{gat_forward.5} parent=0 // pred_check_branch
    %3811 = sbr.rel (0) target = $region29
  $region28: #{gat_forward.5} parent=0 // pred_region
    _
  $region29: #{gat_forward.5} parent=0 // pred_fallthru
    _

</llo_original>
